<compile_context>
chip_gen: v7x
topology: tpu7x:2x2x1
jax: 0.10.0
libtpu: 0.0.40
codegen_flags: <defaults>
</compile_context>

<pallas_src>
import functools
import math

import jax
import jax.numpy as jnp
import numpy as np
from jax import lax
from jax.experimental import pallas as pl
from jax.experimental.pallas import tpu as pltpu

LANE = 128


def _ceil_to(n, m):
    return ((n + m - 1) // m) * m


# ----------------------------- in-kernel helpers -----------------------------

def _erf(z):
    # Abramowitz & Stegun 7.1.26 rational approximation (|err| < 1.5e-7).
    p = 0.3275911
    a1, a2, a3, a4, a5 = (0.254829592, -0.284496736, 1.421413741,
                          -1.453152027, 1.061405429)
    az = jnp.abs(z)
    t = pl.reciprocal(1.0 + p * az, approx=True)
    poly = t * (a1 + t * (a2 + t * (a3 + t * (a4 + t * a5))))
    y = 1.0 - poly * jnp.exp(-az * az)
    return jnp.where(z >= 0.0, y, -y)


def _gelu(x):
    return 0.5 * x * (1.0 + _erf(x * 0.7071067811865476))


def _layernorm_padded(x, w, b, d_real, eps=1e-5):
    # Centered two-pass LayerNorm over the real d_real feature columns.
    # x's padded lane columns are exactly zero; they are masked out of the
    # variance so statistics match the unpadded op, and w/b are zero-padded so
    # padded output columns stay exactly zero.
    inv_d = 1.0 / d_real
    mu = jnp.sum(x, axis=-1, keepdims=True) * inv_d
    col = lax.broadcasted_iota(jnp.int32, x.shape, x.ndim - 1)
    xc = jnp.where(col < d_real, x - mu, 0.0)
    var = jnp.sum(xc * xc, axis=-1, keepdims=True) * inv_d
    return xc * lax.rsqrt(var + eps) * w + b


# --------------------------------- kernel -------------------------------------

def fused_transformer_kernel(
        x_emb_ref,
        wqkv_ref, bqkv_ref, wo_ref, bo_ref,
        ln1w_ref, ln1b_ref, w1_ref, b1_ref, w2_ref, b2_ref,
        ln2w_ref, ln2b_ref,
        lnf_w_ref, lnf_b_ref, w_out_ref, b_out_ref,
        out_ref, x_scr,
        *, n_heads, d_model, batch, seq_len):
    l = pl.program_id(0)
    last = pl.num_programs(0) - 1
    H, D = n_heads, d_model
    hd = D // H
    BS = batch * seq_len

    @pl.when(l == 0)
    def _():
        x_scr[...] = x_emb_ref[...]           # load embeddings once

    x = x_scr[...]                            # (BS, Dp) f32, resident in VMEM

    # ----- fused QKV projection: one lane-dense (BS,Dp)x(Dp,128) bf16 matmul --
    qkv = jnp.dot(x.astype(jnp.bfloat16), wqkv_ref[0],
                  preferred_element_type=jnp.float32) + bqkv_ref[0]   # (BS, P3)

    def _split_heads(off):                    # -> (H, BS, hd) from lane slices
        return jnp.stack(
            [qkv[:, off + h * hd: off + (h + 1) * hd] for h in range(H)], axis=0)

    q = _split_heads(0)                       # 1/sqrt(hd) folded into packed W/b
    k = _split_heads(D)
    v = _split_heads(2 * D)

    # per-head scores (batched over H); causal + same-sequence mask in-kernel
    s = lax.dot_general(q, k, (((2,), (2,)), ((0,), (0,))),
                        preferred_element_type=jnp.float32)           # (H, BS, BS)
    row = lax.broadcasted_iota(jnp.int32, (BS, BS), 0)
    col = lax.broadcasted_iota(jnp.int32, (BS, BS), 1)
    if (seq_len & (seq_len - 1)) == 0:        # power-of-two seq_len -> shift
        sh = seq_len.bit_length() - 1
        same_seq = (row >> sh) == (col >> sh)
    else:
        # TODO(synk): integer-divide fallback for non-power-of-two seq_len.
        same_seq = (row // seq_len) == (col // seq_len)
    ok = (col <= row) & same_seq
    s = jnp.where(ok[None], s, -jnp.inf)

    m = jnp.max(s, axis=-1, keepdims=True)
    p = jnp.exp(s - m)
    p = p * pl.reciprocal(jnp.sum(p, axis=-1, keepdims=True), approx=True)
    o = lax.dot_general(p, v, (((2,), (1,)), ((0,), (0,))),
                        preferred_element_type=jnp.float32)           # (H, BS, hd)

    # ----- fused output projection: one (BS, H*hd)x(H*hd, Dp) bf16 matmul ----
    o_flat = jnp.concatenate([o[h] for h in range(H)], axis=-1)       # (BS, D)
    attn = jnp.dot(o_flat.astype(jnp.bfloat16), wo_ref[0],
                   preferred_element_type=jnp.float32) + bo_ref[0]    # (BS, Dp)

    h1 = _layernorm_padded(x + attn, ln1w_ref[0], ln1b_ref[0], D)

    # ------------------------------ feed-forward -----------------------------
    hid = jnp.dot(h1.astype(jnp.bfloat16), w1_ref[0],
                  preferred_element_type=jnp.float32) + b1_ref[0]     # (BS, Fp)
    hid = _gelu(hid)
    ff = jnp.dot(hid.astype(jnp.bfloat16), w2_ref[0],
                 preferred_element_type=jnp.float32) + b2_ref[0]      # (BS, Dp)

    x_new = _layernorm_padded(h1 + ff, ln2w_ref[0], ln2b_ref[0], D)
    x_scr[...] = x_new

    # ------- final LayerNorm + vocab head, last position of each seq only ----
    @pl.when(l == last)
    def _():
        x_last = jnp.concatenate(
            [x_new[b * seq_len + seq_len - 1: b * seq_len + seq_len, :]
             for b in range(batch)], axis=0)                          # (B, Dp)
        hN = _layernorm_padded(x_last, lnf_w_ref[...], lnf_b_ref[...], D)
        logits = jnp.dot(hN.astype(jnp.bfloat16), w_out_ref[...],
                         preferred_element_type=jnp.float32)
        out_ref[...] = logits + b_out_ref[...]     # (B, Vp) lane-dense store


# --------------------------------- wrapper -------------------------------------

def _const_spec(shape):
    nd = len(shape)
    return pl.BlockSpec(tuple(shape), lambda l, _nd=nd: (0,) * _nd)


def _stacked_spec(shape):
    nd = len(shape)
    return pl.BlockSpec((1,) + tuple(shape[1:]),
                        lambda l, _nd=nd: (l,) + (0,) * (_nd - 1))


def pack_params(params, n_heads):
    """Pad to 128 lanes, pre-transpose + bf16-cast matmul weights, stack layers."""
    layers = params["layers"]
    L = len(layers)
    V, D = params["tok_emb"].shape
    H = n_heads
    hd = D // H
    Dp = _ceil_to(D, LANE)
    Fp = _ceil_to(4 * D, LANE)
    Vp = _ceil_to(V, LANE)
    P3 = _ceil_to(3 * D, LANE)
    scale = 1.0 / math.sqrt(hd)

    def pad2(a, r, c):
        return jnp.pad(a, ((0, r - a.shape[0]), (0, c - a.shape[1])))

    def mat(a, r, c):           # pre-transposed, zero-padded, bf16 MXU operand
        return pad2(a.T, r, c).astype(jnp.bfloat16)

    acc = {k: [] for k in ("wqkv", "bqkv", "wo", "bo", "ln1w", "ln1b",
                           "w1", "b1", "w2", "b2", "ln2w", "ln2b")}
    for lp in layers:
        w = lp["wqkv"]                                   # (3D, D), rows head-major
        w = jnp.concatenate([w[:D] * scale, w[D:]], 0)   # fold 1/sqrt(hd) into Q
        b = lp["bqkv"]                                   # (1, 3D)
        b = jnp.concatenate([b[:, :D] * scale, b[:, D:]], 1)
        acc["wqkv"].append(mat(w, Dp, P3))               # (Dp, P3)
        acc["bqkv"].append(pad2(b, 1, P3))
        acc["wo"].append(mat(lp["wo"], D, Dp))           # (H*hd, Dp), head-major rows
        acc["bo"].append(pad2(lp["bo"], 1, Dp))
        acc["ln1w"].append(pad2(lp["ln1w"], 1, Dp))
        acc["ln1b"].append(pad2(lp["ln1b"], 1, Dp))
        acc["w1"].append(mat(lp["w1"], Dp, Fp))          # (Dp, Fp)
        acc["b1"].append(pad2(lp["b1"], 1, Fp))
        acc["w2"].append(mat(lp["w2"], Fp, Dp))          # (Fp, Dp)
        acc["b2"].append(pad2(lp["b2"], 1, Dp))
        acc["ln2w"].append(pad2(lp["ln2w"], 1, Dp))
        acc["ln2b"].append(pad2(lp["ln2b"], 1, Dp))

    weights = {k: jnp.stack(v) for k, v in acc.items()}
    weights.update({
        "tok_emb": params["tok_emb"], "pos_emb": params["pos_emb"],
        "lnf_w": pad2(params["lnf_w"], 1, Dp),
        "lnf_b": pad2(params["lnf_b"], 1, Dp),
        "w_out": mat(params["w_out"], Dp, Vp),           # (Dp, Vp)
        "b_out": pad2(params["b_out"], 1, Vp),
    })
    cfg = {"num_layers": L, "d_model": D, "num_tokens": V, "Dp": Dp, "Vp": Vp}
    return weights, cfg


def transformer_forward(inputs, weights, *, cfg, n_heads):
    B, S = inputs.shape
    D, Dp, V, Vp = cfg["d_model"], cfg["Dp"], cfg["num_tokens"], cfg["Vp"]
    L = cfg["num_layers"]
    BS = B * S

    # embedding gathers stay in plain JAX (glue), then pad to 128 lanes
    x = weights["tok_emb"][inputs] + weights["pos_emb"][:S][None, :, :]
    x = x.reshape(BS, D).astype(jnp.float32)
    x = jnp.pad(x, ((0, 0), (0, Dp - D)))

    stacked_keys = ("wqkv", "bqkv", "wo", "bo", "ln1w", "ln1b",
                    "w1", "b1", "w2", "b2", "ln2w", "ln2b")
    head_keys = ("lnf_w", "lnf_b", "w_out", "b_out")

    args = (x,) + tuple(weights[k] for k in stacked_keys) \
           + tuple(weights[k] for k in head_keys)
    in_specs = [_const_spec(x.shape)]
    in_specs += [_stacked_spec(weights[k].shape) for k in stacked_keys]
    in_specs += [_const_spec(weights[k].shape) for k in head_keys]

    out = pl.pallas_call(
        functools.partial(fused_transformer_kernel, n_heads=n_heads,
                          d_model=D, batch=B, seq_len=S),
        out_shape=jax.ShapeDtypeStruct((B, Vp), jnp.float32),
        grid=(L,),
        in_specs=in_specs,
        out_specs=_const_spec((B, Vp)),
        scratch_shapes=[pltpu.VMEM((BS, Dp), jnp.float32)],
        compiler_params=pltpu.CompilerParams(
            dimension_semantics=("arbitrary",)),
    )(*args)
    return out[:, :V]                         # drop padded vocab columns


# ------------------------------ parameter init ---------------------------------

def init_params(key, num_layers, dim_model, num_tokens, seq_len):
    d = dim_model
    keys = jax.random.split(key, 3 + num_layers)

    def lin_w(k, out_d, in_d):
        return jax.random.normal(k, (out_d, in_d), jnp.float32) / math.sqrt(in_d)

    def bias(k, n):
        return (0.02 * jax.random.normal(k, (n,), jnp.float32)).reshape(1, n)

    params = {
        "tok_emb": jax.random.normal(keys[0], (num_tokens, d), jnp.float32),
        "pos_emb": jax.random.normal(keys[1], (seq_len, d), jnp.float32),
        "layers": [],
    }
    for li in range(num_layers):
        ks = jax.random.split(keys[2 + li], 8)
        params["layers"].append({
            "wqkv": lin_w(ks[0], 3 * d, d), "bqkv": bias(ks[1], 3 * d),
            "wo": lin_w(ks[2], d, d), "bo": bias(ks[3], d),
            "ln1w": jnp.ones((1, d), jnp.float32),
            "ln1b": jnp.zeros((1, d), jnp.float32),
            "w1": lin_w(ks[4], 4 * d, d), "b1": bias(ks[5], 4 * d),
            "w2": lin_w(ks[6], d, 4 * d), "b2": bias(ks[7], d),
            "ln2w": jnp.ones((1, d), jnp.float32),
            "ln2b": jnp.zeros((1, d), jnp.float32),
        })
    hk = jax.random.split(keys[-1], 2)
    params["lnf_w"] = jnp.ones((1, d), jnp.float32)
    params["lnf_b"] = jnp.zeros((1, d), jnp.float32)
    params["w_out"] = lin_w(hk[0], num_tokens, d)
    params["b_out"] = bias(hk[1], num_tokens)
    return params


# ------------------------------ pure-JAX reference ------------------------------

def _ln_ref(x, w, b, eps=1e-5):
    mu = jnp.mean(x, axis=-1, keepdims=True)
    xc = x - mu
    var = jnp.mean(xc * xc, axis=-1, keepdims=True)
    return xc * lax.rsqrt(var + eps) * w + b


def reference_forward(inputs, params, n_heads):
    B, S = inputs.shape
    x = params["tok_emb"][inputs] + params["pos_emb"][:S][None, :, :]
    D = x.shape[-1]
    hd = D // n_heads
    mask = jnp.triu(jnp.ones((S, S), bool), k=1)
    for lp in params["layers"]:
        qkv = jnp.einsum("bsd,ed->bse", x, lp["wqkv"]) + lp["bqkv"][0]
        q, k, v = qkv[..., :D], qkv[..., D:2 * D], qkv[..., 2 * D:]

        def split(t):
            return t.reshape(B, S, n_heads, hd).transpose(0, 2, 1, 3)

        qh, kh, vh = split(q), split(k), split(v)
        s = jnp.einsum("bhqd,bhkd->bhqk", qh, kh) / math.sqrt(hd)
        s = jnp.where(mask, -jnp.inf, s)
        p = jax.nn.softmax(s, axis=-1)
        o = jnp.einsum("bhqk,bhkd->bhqd", p, vh).transpose(0, 2, 1, 3)
        o = o.reshape(B, S, D)
        o = jnp.einsum("bsd,ed->bse", o, lp["wo"]) + lp["bo"][0]
        h1 = _ln_ref(x + o, lp["ln1w"], lp["ln1b"])
        ff = jnp.einsum("bsd,ed->bse", h1, lp["w1"]) + lp["b1"][0]
        ff = jax.nn.gelu(ff, approximate=False)
        ff = jnp.einsum("bsd,ed->bse", ff, lp["w2"]) + lp["b2"][0]
        x = _ln_ref(h1 + ff, lp["ln2w"], lp["ln2b"])
    xl = x[:, -1, :]
    h = _ln_ref(xl, params["lnf_w"], params["lnf_b"])
    return h @ params["w_out"].T + params["b_out"][0]


# ----------------------------------- main ---------------------------------------

if __name__ == "__main__":
    num_layers = 2
    dim_model = 32
    num_heads = 4
    num_tokens = 16
    seq_len = 8
    batch = 2

    key = jax.random.PRNGKey(0)
    pkey, ikey = jax.random.split(key)
    params = init_params(pkey, num_layers, dim_model, num_tokens, seq_len)
    inputs = jax.random.randint(ikey, (batch, seq_len), 0, num_tokens,
                                dtype=jnp.int32)

    weights, cfg = pack_params(params, num_heads)
    fwd = jax.jit(functools.partial(transformer_forward, cfg=cfg,
                                    n_heads=num_heads))
    out = jax.block_until_ready(fwd(inputs, weights))
    assert out.shape == (batch, num_tokens)

    ref = reference_forward(inputs, params, num_heads)
    # bf16 MXU operands (per perf review) vs. an all-f32 reference -> relaxed
    # tolerance; structural errors (mask/wiring/scale) would be O(1), far above.
    np.testing.assert_allclose(np.asarray(out), np.asarray(ref),
                               rtol=7e-2, atol=7e-2)
    print("KERNEL_OK")
</pallas_src>

<mosaic_0001>
module attributes {stable_mosaic.version = 11 : i64} {
  func.func @fused_transformer_kernel(%arg0: i32, %arg1: memref<16x128xf32, #tpu.memory_space<vmem>>, %arg2: memref<1x128x128xbf16, #tpu.memory_space<vmem>>, %arg3: memref<1x1x128xf32, #tpu.memory_space<vmem>>, %arg4: memref<1x32x128xbf16, #tpu.memory_space<vmem>>, %arg5: memref<1x1x128xf32, #tpu.memory_space<vmem>>, %arg6: memref<1x1x128xf32, #tpu.memory_space<vmem>>, %arg7: memref<1x1x128xf32, #tpu.memory_space<vmem>>, %arg8: memref<1x128x128xbf16, #tpu.memory_space<vmem>>, %arg9: memref<1x1x128xf32, #tpu.memory_space<vmem>>, %arg10: memref<1x128x128xbf16, #tpu.memory_space<vmem>>, %arg11: memref<1x1x128xf32, #tpu.memory_space<vmem>>, %arg12: memref<1x1x128xf32, #tpu.memory_space<vmem>>, %arg13: memref<1x1x128xf32, #tpu.memory_space<vmem>>, %arg14: memref<1x128xf32, #tpu.memory_space<vmem>>, %arg15: memref<1x128xf32, #tpu.memory_space<vmem>>, %arg16: memref<128x128xbf16, #tpu.memory_space<vmem>>, %arg17: memref<1x128xf32, #tpu.memory_space<vmem>>, %arg18: memref<2x128xf32, #tpu.memory_space<vmem>>, %arg19: memref<16x128xf32, #tpu.memory_space<vmem>>) attributes {dimension_semantics = [#tpu.dimension_semantics<arbitrary>], iteration_bounds = array<i64: 2>, scalar_prefetch = 0 : i64, scratch_operands = 1 : i64, tpu.core_type = #tpu.core_type<tc>, window_params = [{pipeline_mode = #tpu.pipeline_mode<synchronous>, transform_indices = @transform_0, window_bounds = array<i64: 16, 128>}, {transform_indices = @transform_1, window_bounds = array<i64: 1, 128, 128>}, {transform_indices = @transform_2, window_bounds = array<i64: 1, 1, 128>}, {transform_indices = @transform_3, window_bounds = array<i64: 1, 32, 128>}, {transform_indices = @transform_4, window_bounds = array<i64: 1, 1, 128>}, {transform_indices = @transform_5, window_bounds = array<i64: 1, 1, 128>}, {transform_indices = @transform_6, window_bounds = array<i64: 1, 1, 128>}, {transform_indices = @transform_7, window_bounds = array<i64: 1, 128, 128>}, {transform_indices = @transform_8, window_bounds = array<i64: 1, 1, 128>}, {transform_indices = @transform_9, window_bounds = array<i64: 1, 128, 128>}, {transform_indices = @transform_10, window_bounds = array<i64: 1, 1, 128>}, {transform_indices = @transform_11, window_bounds = array<i64: 1, 1, 128>}, {transform_indices = @transform_12, window_bounds = array<i64: 1, 1, 128>}, {pipeline_mode = #tpu.pipeline_mode<synchronous>, transform_indices = @transform_13, window_bounds = array<i64: 1, 128>}, {pipeline_mode = #tpu.pipeline_mode<synchronous>, transform_indices = @transform_14, window_bounds = array<i64: 1, 128>}, {pipeline_mode = #tpu.pipeline_mode<synchronous>, transform_indices = @transform_15, window_bounds = array<i64: 128, 128>}, {pipeline_mode = #tpu.pipeline_mode<synchronous>, transform_indices = @transform_16, window_bounds = array<i64: 1, 128>}, {pipeline_mode = #tpu.pipeline_mode<synchronous>, transform_indices = @transform_17, window_bounds = array<i64: 2, 128>}]} {
    %c0_i32 = arith.constant 0 : i32
    %0 = arith.cmpi eq, %arg0, %c0_i32 : i32
    %1 = arith.extui %0 : i1 to i32
    %c0_i32_0 = arith.constant 0 : i32
    %2 = arith.cmpi ne, %1, %c0_i32_0 : i32
    scf.if %2 {
      %c0_77 = arith.constant 0 : index
      %c0_78 = arith.constant 0 : index
      %201 = vector.load %arg1[%c0_77, %c0_78] : memref<16x128xf32, #tpu.memory_space<vmem>>, vector<16x128xf32>
      %c0_79 = arith.constant 0 : index
      %c0_80 = arith.constant 0 : index
      %202 = vector.load %arg19[%c0_79, %c0_80] : memref<16x128xf32, #tpu.memory_space<vmem>>, vector<16x128xf32>
      tpu.vector_store %arg19[%c0_79, %c0_80], %201 {strides = array<i32>} : memref<16x128xf32, #tpu.memory_space<vmem>>, vector<16x128xf32>,
    } else {
    }
    %c0 = arith.constant 0 : index
    %c0_1 = arith.constant 0 : index
    %3 = vector.load %arg19[%c0, %c0_1] : memref<16x128xf32, #tpu.memory_space<vmem>>, vector<16x128xf32>
    %4 = arith.truncf %3 : vector<16x128xf32> to vector<16x128xbf16>
    %c0_2 = arith.constant 0 : index
    %c0_3 = arith.constant 0 : index
    %c0_4 = arith.constant 0 : index
    %5 = vector.load %arg2[%c0_2, %c0_3, %c0_4] : memref<1x128x128xbf16, #tpu.memory_space<vmem>>, vector<1x128x128xbf16>
    %6 = vector.shape_cast %5 : vector<1x128x128xbf16> to vector<128x128xbf16>
    %cst = arith.constant dense<0.000000e+00> : vector<16x128xf32>
    %7 = tpu.matmul %4, %6, %cst {dimension_numbers = #tpu.dot_dimension_numbers<[1], [0], [0], [1], [0, 0, 1, 1], [], []>} : vector<16x128xbf16>, vector<128x128xbf16>, vector<16x128xf32> -> vector<16x128xf32>
    %c0_5 = arith.constant 0 : index
    %c0_6 = arith.constant 0 : index
    %c0_7 = arith.constant 0 : index
    %8 = vector.load %arg3[%c0_5, %c0_6, %c0_7] : memref<1x1x128xf32, #tpu.memory_space<vmem>>, vector<1x1x128xf32>
    %9 = vector.shape_cast %8 : vector<1x1x128xf32> to vector<1x128xf32>
    %10 = vector.broadcast %9 : vector<1x128xf32> to vector<16x128xf32>
    %11 = arith.addf %7, %10 : vector<16x128xf32>
    %12 = vector.extract_strided_slice %11 {offsets = [0, 0], sizes = [16, 8], strides = [1, 1]} : vector<16x128xf32> to vector<16x8xf32>
    %13 = vector.extract_strided_slice %11 {offsets = [0, 8], sizes = [16, 8], strides = [1, 1]} : vector<16x128xf32> to vector<16x8xf32>
    %14 = vector.extract_strided_slice %11 {offsets = [0, 16], sizes = [16, 8], strides = [1, 1]} : vector<16x128xf32> to vector<16x8xf32>
    %15 = vector.extract_strided_slice %11 {offsets = [0, 24], sizes = [16, 8], strides = [1, 1]} : vector<16x128xf32> to vector<16x8xf32>
    %16 = vector.shape_cast %12 : vector<16x8xf32> to vector<1x16x8xf32>
    %17 = vector.shape_cast %13 : vector<16x8xf32> to vector<1x16x8xf32>
    %18 = vector.shape_cast %14 : vector<16x8xf32> to vector<1x16x8xf32>
    %19 = vector.shape_cast %15 : vector<16x8xf32> to vector<1x16x8xf32>
    %20 = tpu.concatenate %16, %17, %18, %19 in 0 : vector<1x16x8xf32>, vector<1x16x8xf32>, vector<1x16x8xf32>, vector<1x16x8xf32> -> vector<4x16x8xf32>
    %21 = vector.extract_strided_slice %11 {offsets = [0, 32], sizes = [16, 8], strides = [1, 1]} : vector<16x128xf32> to vector<16x8xf32>
    %22 = vector.extract_strided_slice %11 {offsets = [0, 40], sizes = [16, 8], strides = [1, 1]} : vector<16x128xf32> to vector<16x8xf32>
    %23 = vector.extract_strided_slice %11 {offsets = [0, 48], sizes = [16, 8], strides = [1, 1]} : vector<16x128xf32> to vector<16x8xf32>
    %24 = vector.extract_strided_slice %11 {offsets = [0, 56], sizes = [16, 8], strides = [1, 1]} : vector<16x128xf32> to vector<16x8xf32>
    %25 = vector.shape_cast %21 : vector<16x8xf32> to vector<1x16x8xf32>
    %26 = vector.shape_cast %22 : vector<16x8xf32> to vector<1x16x8xf32>
    %27 = vector.shape_cast %23 : vector<16x8xf32> to vector<1x16x8xf32>
    %28 = vector.shape_cast %24 : vector<16x8xf32> to vector<1x16x8xf32>
    %29 = tpu.concatenate %25, %26, %27, %28 in 0 : vector<1x16x8xf32>, vector<1x16x8xf32>, vector<1x16x8xf32>, vector<1x16x8xf32> -> vector<4x16x8xf32>
    %30 = vector.extract_strided_slice %11 {offsets = [0, 64], sizes = [16, 8], strides = [1, 1]} : vector<16x128xf32> to vector<16x8xf32>
    %31 = vector.extract_strided_slice %11 {offsets = [0, 72], sizes = [16, 8], strides = [1, 1]} : vector<16x128xf32> to vector<16x8xf32>
    %32 = vector.extract_strided_slice %11 {offsets = [0, 80], sizes = [16, 8], strides = [1, 1]} : vector<16x128xf32> to vector<16x8xf32>
    %33 = vector.extract_strided_slice %11 {offsets = [0, 88], sizes = [16, 8], strides = [1, 1]} : vector<16x128xf32> to vector<16x8xf32>
    %34 = vector.shape_cast %30 : vector<16x8xf32> to vector<1x16x8xf32>
    %35 = vector.shape_cast %31 : vector<16x8xf32> to vector<1x16x8xf32>
    %36 = vector.shape_cast %32 : vector<16x8xf32> to vector<1x16x8xf32>
    %37 = vector.shape_cast %33 : vector<16x8xf32> to vector<1x16x8xf32>
    %38 = tpu.concatenate %34, %35, %36, %37 in 0 : vector<1x16x8xf32>, vector<1x16x8xf32>, vector<1x16x8xf32>, vector<1x16x8xf32> -> vector<4x16x8xf32>
    %cst_8 = arith.constant dense<0.000000e+00> : vector<4x16x16xf32>
    %39 = tpu.matmul %20, %29, %cst_8 {dimension_numbers = #tpu.dot_dimension_numbers<[2], [2], [1], [1], [0, 0, 0, 1, 1, 1], [0], [0]>} : vector<4x16x8xf32>, vector<4x16x8xf32>, vector<4x16x16xf32> -> vector<4x16x16xf32>
    %40 = tpu.iota {dimensions = array<i32: 0>} : vector<16x16xi32>
    %41 = tpu.iota {dimensions = array<i32: 1>} : vector<16x16xi32>
    %c3_i32 = arith.constant 3 : i32
    %42 = vector.broadcast %c3_i32 : i32 to vector<16x16xi32>
    %43 = arith.shrsi %40, %42 : vector<16x16xi32>
    %c3_i32_9 = arith.constant 3 : i32
    %44 = vector.broadcast %c3_i32_9 : i32 to vector<16x16xi32>
    %45 = arith.shrsi %41, %44 : vector<16x16xi32>
    %46 = arith.cmpi eq, %43, %45 : vector<16x16xi32>
    %47 = arith.cmpi sle, %41, %40 : vector<16x16xi32>
    %48 = arith.andi %47, %46 : vector<16x16xi1>
    %49 = vector.shape_cast %48 : vector<16x16xi1> to vector<1x16x16xi1>
    %cst_10 = arith.constant 0xFF800000 : f32
    %50 = vector.shape_cast %49 : vector<1x16x16xi1> to vector<1x16x16xi1>
    %51 = vector.broadcast %50 : vector<1x16x16xi1> to vector<4x16x16xi1>
    %52 = vector.broadcast %cst_10 : f32 to vector<4x16x16xf32>
    %53 = arith.select %51, %39, %52 : vector<4x16x16xi1>, vector<4x16x16xf32>
    %cst_11 = arith.constant dense<0xFF800000> : vector<4x16xf32>
    %54 = vector.multi_reduction <maximumf>, %53, %cst_11 [2] : vector<4x16x16xf32> to vector<4x16xf32>
    %55 = vector.shape_cast %54 : vector<4x16xf32> to vector<4x16x1xf32>
    %56 = vector.broadcast %55 : vector<4x16x1xf32> to vector<4x16x16xf32>
    %57 = arith.subf %53, %56 : vector<4x16x16xf32>
    %58 = math.exp %57 : vector<4x16x16xf32>
    %cst_12 = arith.constant dense<0.000000e+00> : vector<4x16xf32>
    %59 = vector.multi_reduction <add>, %58, %cst_12 [2] : vector<4x16x16xf32> to vector<4x16xf32>
    %60 = vector.shape_cast %59 : vector<4x16xf32> to vector<4x16x1xf32>
    %61 = tpu.reciprocal %60 {approx = true} : vector<4x16x1xf32> -> vector<4x16x1xf32>
    %62 = vector.broadcast %61 : vector<4x16x1xf32> to vector<4x16x16xf32>
    %63 = arith.mulf %58, %62 : vector<4x16x16xf32>
    %cst_13 = arith.constant dense<0.000000e+00> : vector<4x16x8xf32>
    %64 = tpu.matmul %63, %38, %cst_13 {dimension_numbers = #tpu.dot_dimension_numbers<[2], [1], [1], [2], [0, 0, 0, 1, 1, 2], [0], [0]>} : vector<4x16x16xf32>, vector<4x16x8xf32>, vector<4x16x8xf32> -> vector<4x16x8xf32>
    %65 = vector.extract_strided_slice %64 {offsets = [0, 0, 0], sizes = [1, 16, 8], strides = [1, 1, 1]} : vector<4x16x8xf32> to vector<1x16x8xf32>
    %66 = vector.shape_cast %65 : vector<1x16x8xf32> to vector<16x8xf32>
    %67 = vector.extract_strided_slice %64 {offsets = [1, 0, 0], sizes = [1, 16, 8], strides = [1, 1, 1]} : vector<4x16x8xf32> to vector<1x16x8xf32>
    %68 = vector.shape_cast %67 : vector<1x16x8xf32> to vector<16x8xf32>
    %69 = vector.extract_strided_slice %64 {offsets = [2, 0, 0], sizes = [1, 16, 8], strides = [1, 1, 1]} : vector<4x16x8xf32> to vector<1x16x8xf32>
    %70 = vector.shape_cast %69 : vector<1x16x8xf32> to vector<16x8xf32>
    %71 = vector.extract_strided_slice %64 {offsets = [3, 0, 0], sizes = [1, 16, 8], strides = [1, 1, 1]} : vector<4x16x8xf32> to vector<1x16x8xf32>
    %72 = vector.shape_cast %71 : vector<1x16x8xf32> to vector<16x8xf32>
    %73 = tpu.concatenate %66, %68, %70, %72 in 1 : vector<16x8xf32>, vector<16x8xf32>, vector<16x8xf32>, vector<16x8xf32> -> vector<16x32xf32>
    %74 = arith.truncf %73 : vector<16x32xf32> to vector<16x32xbf16>
    %c0_14 = arith.constant 0 : index
    %c0_15 = arith.constant 0 : index
    %c0_16 = arith.constant 0 : index
    %75 = vector.load %arg4[%c0_14, %c0_15, %c0_16] : memref<1x32x128xbf16, #tpu.memory_space<vmem>>, vector<1x32x128xbf16>
    %76 = vector.shape_cast %75 : vector<1x32x128xbf16> to vector<32x128xbf16>
    %cst_17 = arith.constant dense<0.000000e+00> : vector<16x128xf32>
    %77 = tpu.matmul %74, %76, %cst_17 {dimension_numbers = #tpu.dot_dimension_numbers<[1], [0], [0], [1], [0, 0, 1, 1], [], []>} : vector<16x32xbf16>, vector<32x128xbf16>, vector<16x128xf32> -> vector<16x128xf32>
    %c0_18 = arith.constant 0 : index
    %c0_19 = arith.constant 0 : index
    %c0_20 = arith.constant 0 : index
    %78 = vector.load %arg5[%c0_18, %c0_19, %c0_20] : memref<1x1x128xf32, #tpu.memory_space<vmem>>, vector<1x1x128xf32>
    %79 = vector.shape_cast %78 : vector<1x1x128xf32> to vector<1x128xf32>
    %80 = vector.broadcast %79 : vector<1x128xf32> to vector<16x128xf32>
    %81 = arith.addf %77, %80 : vector<16x128xf32>
    %82 = arith.addf %3, %81 : vector<16x128xf32>
    %c0_21 = arith.constant 0 : index
    %c0_22 = arith.constant 0 : index
    %c0_23 = arith.constant 0 : index
    %83 = vector.load %arg6[%c0_21, %c0_22, %c0_23] : memref<1x1x128xf32, #tpu.memory_space<vmem>>, vector<1x1x128xf32>
    %84 = vector.shape_cast %83 : vector<1x1x128xf32> to vector<1x128xf32>
    %c0_24 = arith.constant 0 : index
    %c0_25 = arith.constant 0 : index
    %c0_26 = arith.constant 0 : index
    %85 = vector.load %arg7[%c0_24, %c0_25, %c0_26] : memref<1x1x128xf32, #tpu.memory_space<vmem>>, vector<1x1x128xf32>
    %86 = vector.shape_cast %85 : vector<1x1x128xf32> to vector<1x128xf32>
    %cst_27 = arith.constant dense<0.000000e+00> : vector<16xf32>
    %87 = vector.multi_reduction <add>, %82, %cst_27 [1] : vector<16x128xf32> to vector<16xf32>
    %88 = vector.shape_cast %87 : vector<16xf32> to vector<16x1xf32>
    %cst_28 = arith.constant 3.125000e-02 : f32
    %89 = vector.broadcast %cst_28 : f32 to vector<16x1xf32>
    %90 = arith.mulf %88, %89 : vector<16x1xf32>
    %91 = tpu.iota {dimensions = array<i32: 1>} : vector<16x128xi32>
    %c32_i32 = arith.constant 32 : i32
    %92 = vector.broadcast %c32_i32 : i32 to vector<16x128xi32>
    %93 = arith.cmpi slt, %91, %92 : vector<16x128xi32>
    %94 = vector.broadcast %90 : vector<16x1xf32> to vector<16x128xf32>
    %95 = arith.subf %82, %94 : vector<16x128xf32>
    %cst_29 = arith.constant 0.000000e+00 : f32
    %96 = vector.broadcast %cst_29 : f32 to vector<16x128xf32>
    %97 = arith.select %93, %95, %96 : vector<16x128xi1>, vector<16x128xf32>
    %98 = arith.mulf %97, %97 : vector<16x128xf32>
    %cst_30 = arith.constant dense<0.000000e+00> : vector<16xf32>
    %99 = vector.multi_reduction <add>, %98, %cst_30 [1] : vector<16x128xf32> to vector<16xf32>
    %100 = vector.shape_cast %99 : vector<16xf32> to vector<16x1xf32>
    %cst_31 = arith.constant 3.125000e-02 : f32
    %101 = vector.broadcast %cst_31 : f32 to vector<16x1xf32>
    %102 = arith.mulf %100, %101 : vector<16x1xf32>
    %cst_32 = arith.constant 9.99999974E-6 : f32
    %103 = vector.broadcast %cst_32 : f32 to vector<16x1xf32>
    %104 = arith.addf %102, %103 : vector<16x1xf32>
    %105 = math.rsqrt %104 : vector<16x1xf32>
    %106 = vector.broadcast %105 : vector<16x1xf32> to vector<16x128xf32>
    %107 = arith.mulf %97, %106 : vector<16x128xf32>
    %108 = vector.broadcast %84 : vector<1x128xf32> to vector<16x128xf32>
    %109 = arith.mulf %107, %108 : vector<16x128xf32>
    %110 = vector.broadcast %86 : vector<1x128xf32> to vector<16x128xf32>
    %111 = arith.addf %109, %110 : vector<16x128xf32>
    %112 = arith.truncf %111 : vector<16x128xf32> to vector<16x128xbf16>
    %c0_33 = arith.constant 0 : index
    %c0_34 = arith.constant 0 : index
    %c0_35 = arith.constant 0 : index
    %113 = vector.load %arg8[%c0_33, %c0_34, %c0_35] : memref<1x128x128xbf16, #tpu.memory_space<vmem>>, vector<1x128x128xbf16>
    %114 = vector.shape_cast %113 : vector<1x128x128xbf16> to vector<128x128xbf16>
    %cst_36 = arith.constant dense<0.000000e+00> : vector<16x128xf32>
    %115 = tpu.matmul %112, %114, %cst_36 {dimension_numbers = #tpu.dot_dimension_numbers<[1], [0], [0], [1], [0, 0, 1, 1], [], []>} : vector<16x128xbf16>, vector<128x128xbf16>, vector<16x128xf32> -> vector<16x128xf32>
    %c0_37 = arith.constant 0 : index
    %c0_38 = arith.constant 0 : index
    %c0_39 = arith.constant 0 : index
    %116 = vector.load %arg9[%c0_37, %c0_38, %c0_39] : memref<1x1x128xf32, #tpu.memory_space<vmem>>, vector<1x1x128xf32>
    %117 = vector.shape_cast %116 : vector<1x1x128xf32> to vector<1x128xf32>
    %118 = vector.broadcast %117 : vector<1x128xf32> to vector<16x128xf32>
    %119 = arith.addf %115, %118 : vector<16x128xf32>
    %cst_40 = arith.constant 5.000000e-01 : f32
    %120 = vector.broadcast %cst_40 : f32 to vector<16x128xf32>
    %121 = arith.mulf %120, %119 : vector<16x128xf32>
    %cst_41 = arith.constant 0.707106769 : f32
    %122 = vector.broadcast %cst_41 : f32 to vector<16x128xf32>
    %123 = arith.mulf %119, %122 : vector<16x128xf32>
    %124 = math.absf %123 : vector<16x128xf32>
    %cst_42 = arith.constant 0.327591091 : f32
    %125 = vector.broadcast %cst_42 : f32 to vector<16x128xf32>
    %126 = arith.mulf %125, %124 : vector<16x128xf32>
    %cst_43 = arith.constant 1.000000e+00 : f32
    %127 = vector.broadcast %cst_43 : f32 to vector<16x128xf32>
    %128 = arith.addf %127, %126 : vector<16x128xf32>
    %129 = tpu.reciprocal %128 {approx = true} : vector<16x128xf32> -> vector<16x128xf32>
    %cst_44 = arith.constant 1.06140542 : f32
    %130 = vector.broadcast %cst_44 : f32 to vector<16x128xf32>
    %131 = arith.mulf %129, %130 : vector<16x128xf32>
    %cst_45 = arith.constant -1.45315206 : f32
    %132 = vector.broadcast %cst_45 : f32 to vector<16x128xf32>
    %133 = arith.addf %132, %131 : vector<16x128xf32>
    %134 = arith.mulf %129, %133 : vector<16x128xf32>
    %cst_46 = arith.constant 1.42141378 : f32
    %135 = vector.broadcast %cst_46 : f32 to vector<16x128xf32>
    %136 = arith.addf %135, %134 : vector<16x128xf32>
    %137 = arith.mulf %129, %136 : vector<16x128xf32>
    %cst_47 = arith.constant -0.284496725 : f32
    %138 = vector.broadcast %cst_47 : f32 to vector<16x128xf32>
    %139 = arith.addf %138, %137 : vector<16x128xf32>
    %140 = arith.mulf %129, %139 : vector<16x128xf32>
    %cst_48 = arith.constant 0.254829586 : f32
    %141 = vector.broadcast %cst_48 : f32 to vector<16x128xf32>
    %142 = arith.addf %141, %140 : vector<16x128xf32>
    %143 = arith.mulf %129, %142 : vector<16x128xf32>
    %cst_49 = arith.constant 0.000000e+00 : f32
    %144 = vector.broadcast %cst_49 : f32 to vector<16x128xf32>
    %145 = arith.subf %144, %124 : vector<16x128xf32>
    %146 = arith.mulf %145, %124 : vector<16x128xf32>
    %147 = math.exp %146 : vector<16x128xf32>
    %148 = arith.mulf %143, %147 : vector<16x128xf32>
    %cst_50 = arith.constant 1.000000e+00 : f32
    %149 = vector.broadcast %cst_50 : f32 to vector<16x128xf32>
    %150 = arith.subf %149, %148 : vector<16x128xf32>
    %cst_51 = arith.constant 0.000000e+00 : f32
    %151 = vector.broadcast %cst_51 : f32 to vector<16x128xf32>
    %152 = arith.cmpf oge, %123, %151 : vector<16x128xf32>
    %cst_52 = arith.constant 0.000000e+00 : f32
    %153 = vector.broadcast %cst_52 : f32 to vector<16x128xf32>
    %154 = arith.subf %153, %150 : vector<16x128xf32>
    %155 = arith.select %152, %150, %154 : vector<16x128xi1>, vector<16x128xf32>
    %cst_53 = arith.constant 1.000000e+00 : f32
    %156 = vector.broadcast %cst_53 : f32 to vector<16x128xf32>
    %157 = arith.addf %156, %155 : vector<16x128xf32>
    %158 = arith.mulf %121, %157 : vector<16x128xf32>
    %159 = arith.truncf %158 : vector<16x128xf32> to vector<16x128xbf16>
    %c0_54 = arith.constant 0 : index
    %c0_55 = arith.constant 0 : index
    %c0_56 = arith.constant 0 : index
    %160 = vector.load %arg10[%c0_54, %c0_55, %c0_56] : memref<1x128x128xbf16, #tpu.memory_space<vmem>>, vector<1x128x128xbf16>
    %161 = vector.shape_cast %160 : vector<1x128x128xbf16> to vector<128x128xbf16>
    %cst_57 = arith.constant dense<0.000000e+00> : vector<16x128xf32>
    %162 = tpu.matmul %159, %161, %cst_57 {dimension_numbers = #tpu.dot_dimension_numbers<[1], [0], [0], [1], [0, 0, 1, 1], [], []>} : vector<16x128xbf16>, vector<128x128xbf16>, vector<16x128xf32> -> vector<16x128xf32>
    %c0_58 = arith.constant 0 : index
    %c0_59 = arith.constant 0 : index
    %c0_60 = arith.constant 0 : index
    %163 = vector.load %arg11[%c0_58, %c0_59, %c0_60] : memref<1x1x128xf32, #tpu.memory_space<vmem>>, vector<1x1x128xf32>
    %164 = vector.shape_cast %163 : vector<1x1x128xf32> to vector<1x128xf32>
    %165 = vector.broadcast %164 : vector<1x128xf32> to vector<16x128xf32>
    %166 = arith.addf %162, %165 : vector<16x128xf32>
    %167 = arith.addf %111, %166 : vector<16x128xf32>
    %c0_61 = arith.constant 0 : index
    %c0_62 = arith.constant 0 : index
    %c0_63 = arith.constant 0 : index
    %168 = vector.load %arg12[%c0_61, %c0_62, %c0_63] : memref<1x1x128xf32, #tpu.memory_space<vmem>>, vector<1x1x128xf32>
    %169 = vector.shape_cast %168 : vector<1x1x128xf32> to vector<1x128xf32>
    %c0_64 = arith.constant 0 : index
    %c0_65 = arith.constant 0 : index
    %c0_66 = arith.constant 0 : index
    %170 = vector.load %arg13[%c0_64, %c0_65, %c0_66] : memref<1x1x128xf32, #tpu.memory_space<vmem>>, vector<1x1x128xf32>
    %171 = vector.shape_cast %170 : vector<1x1x128xf32> to vector<1x128xf32>
    %cst_67 = arith.constant dense<0.000000e+00> : vector<16xf32>
    %172 = vector.multi_reduction <add>, %167, %cst_67 [1] : vector<16x128xf32> to vector<16xf32>
    %173 = vector.shape_cast %172 : vector<16xf32> to vector<16x1xf32>
    %cst_68 = arith.constant 3.125000e-02 : f32
    %174 = vector.broadcast %cst_68 : f32 to vector<16x1xf32>
    %175 = arith.mulf %173, %174 : vector<16x1xf32>
    %176 = tpu.iota {dimensions = array<i32: 1>} : vector<16x128xi32>
    %c32_i32_69 = arith.constant 32 : i32
    %177 = vector.broadcast %c32_i32_69 : i32 to vector<16x128xi32>
    %178 = arith.cmpi slt, %176, %177 : vector<16x128xi32>
    %179 = vector.broadcast %175 : vector<16x1xf32> to vector<16x128xf32>
    %180 = arith.subf %167, %179 : vector<16x128xf32>
    %cst_70 = arith.constant 0.000000e+00 : f32
    %181 = vector.broadcast %cst_70 : f32 to vector<16x128xf32>
    %182 = arith.select %178, %180, %181 : vector<16x128xi1>, vector<16x128xf32>
    %183 = arith.mulf %182, %182 : vector<16x128xf32>
    %cst_71 = arith.constant dense<0.000000e+00> : vector<16xf32>
    %184 = vector.multi_reduction <add>, %183, %cst_71 [1] : vector<16x128xf32> to vector<16xf32>
    %185 = vector.shape_cast %184 : vector<16xf32> to vector<16x1xf32>
    %cst_72 = arith.constant 3.125000e-02 : f32
    %186 = vector.broadcast %cst_72 : f32 to vector<16x1xf32>
    %187 = arith.mulf %185, %186 : vector<16x1xf32>
    %cst_73 = arith.constant 9.99999974E-6 : f32
    %188 = vector.broadcast %cst_73 : f32 to vector<16x1xf32>
    %189 = arith.addf %187, %188 : vector<16x1xf32>
    %190 = math.rsqrt %189 : vector<16x1xf32>
    %191 = vector.broadcast %190 : vector<16x1xf32> to vector<16x128xf32>
    %192 = arith.mulf %182, %191 : vector<16x128xf32>
    %193 = vector.broadcast %169 : vector<1x128xf32> to vector<16x128xf32>
    %194 = arith.mulf %192, %193 : vector<16x128xf32>
    %195 = vector.broadcast %171 : vector<1x128xf32> to vector<16x128xf32>
    %196 = arith.addf %194, %195 : vector<16x128xf32>
    %c0_74 = arith.constant 0 : index
    %c0_75 = arith.constant 0 : index
    %197 = vector.load %arg19[%c0_74, %c0_75] : memref<16x128xf32, #tpu.memory_space<vmem>>, vector<16x128xf32>
    tpu.vector_store %arg19[%c0_74, %c0_75], %196 {strides = array<i32>} : memref<16x128xf32, #tpu.memory_space<vmem>>, vector<16x128xf32>,
    %c1_i32 = arith.constant 1 : i32
    %198 = arith.cmpi eq, %arg0, %c1_i32 : i32
    %199 = arith.extui %198 : i1 to i32
    %c0_i32_76 = arith.constant 0 : i32
    %200 = arith.cmpi ne, %199, %c0_i32_76 : i32
    scf.if %200 {
      %201 = vector.extract_strided_slice %196 {offsets = [7, 0], sizes = [1, 128], strides = [1, 1]} : vector<16x128xf32> to vector<1x128xf32>
      %202 = vector.extract_strided_slice %196 {offsets = [15, 0], sizes = [1, 128], strides = [1, 1]} : vector<16x128xf32> to vector<1x128xf32>
      %203 = tpu.concatenate %201, %202 in 0 : vector<1x128xf32>, vector<1x128xf32> -> vector<2x128xf32>
      %c0_77 = arith.constant 0 : index
      %c0_78 = arith.constant 0 : index
      %204 = vector.load %arg14[%c0_77, %c0_78] : memref<1x128xf32, #tpu.memory_space<vmem>>, vector<1x128xf32>
      %c0_79 = arith.constant 0 : index
      %c0_80 = arith.constant 0 : index
      %205 = vector.load %arg15[%c0_79, %c0_80] : memref<1x128xf32, #tpu.memory_space<vmem>>, vector<1x128xf32>
      %cst_81 = arith.constant dense<0.000000e+00> : vector<2xf32>
      %206 = vector.multi_reduction <add>, %203, %cst_81 [1] : vector<2x128xf32> to vector<2xf32>
      %207 = vector.shape_cast %206 : vector<2xf32> to vector<2x1xf32>
      %cst_82 = arith.constant 3.125000e-02 : f32
      %208 = vector.broadcast %cst_82 : f32 to vector<2x1xf32>
      %209 = arith.mulf %207, %208 : vector<2x1xf32>
      %210 = tpu.iota {dimensions = array<i32: 1>} : vector<2x128xi32>
      %c32_i32_83 = arith.constant 32 : i32
      %211 = vector.broadcast %c32_i32_83 : i32 to vector<2x128xi32>
      %212 = arith.cmpi slt, %210, %211 : vector<2x128xi32>
      %213 = vector.broadcast %209 : vector<2x1xf32> to vector<2x128xf32>
      %214 = arith.subf %203, %213 : vector<2x128xf32>
      %cst_84 = arith.constant 0.000000e+00 : f32
      %215 = vector.broadcast %cst_84 : f32 to vector<2x128xf32>
      %216 = arith.select %212, %214, %215 : vector<2x128xi1>, vector<2x128xf32>
      %217 = arith.mulf %216, %216 : vector<2x128xf32>
      %cst_85 = arith.constant dense<0.000000e+00> : vector<2xf32>
      %218 = vector.multi_reduction <add>, %217, %cst_85 [1] : vector<2x128xf32> to vector<2xf32>
      %219 = vector.shape_cast %218 : vector<2xf32> to vector<2x1xf32>
      %cst_86 = arith.constant 3.125000e-02 : f32
      %220 = vector.broadcast %cst_86 : f32 to vector<2x1xf32>
      %221 = arith.mulf %219, %220 : vector<2x1xf32>
      %cst_87 = arith.constant 9.99999974E-6 : f32
      %222 = vector.broadcast %cst_87 : f32 to vector<2x1xf32>
      %223 = arith.addf %221, %222 : vector<2x1xf32>
      %224 = math.rsqrt %223 : vector<2x1xf32>
      %225 = vector.broadcast %224 : vector<2x1xf32> to vector<2x128xf32>
      %226 = arith.mulf %216, %225 : vector<2x128xf32>
      %227 = vector.broadcast %204 : vector<1x128xf32> to vector<2x128xf32>
      %228 = arith.mulf %226, %227 : vector<2x128xf32>
      %229 = vector.broadcast %205 : vector<1x128xf32> to vector<2x128xf32>
      %230 = arith.addf %228, %229 : vector<2x128xf32>
      %231 = arith.truncf %230 : vector<2x128xf32> to vector<2x128xbf16>
      %c0_88 = arith.constant 0 : index
      %c0_89 = arith.constant 0 : index
      %232 = vector.load %arg16[%c0_88, %c0_89] : memref<128x128xbf16, #tpu.memory_space<vmem>>, vector<128x128xbf16>
      %cst_90 = arith.constant dense<0.000000e+00> : vector<2x128xf32>
      %233 = tpu.matmul %231, %232, %cst_90 {dimension_numbers = #tpu.dot_dimension_numbers<[1], [0], [0], [1], [0, 0, 1, 1], [], []>} : vector<2x128xbf16>, vector<128x128xbf16>, vector<2x128xf32> -> vector<2x128xf32>
      %c0_91 = arith.constant 0 : index
      %c0_92 = arith.constant 0 : index
      %234 = vector.load %arg17[%c0_91, %c0_92] : memref<1x128xf32, #tpu.memory_space<vmem>>, vector<1x128xf32>
      %235 = vector.broadcast %234 : vector<1x128xf32> to vector<2x128xf32>
      %236 = arith.addf %233, %235 : vector<2x128xf32>
      %c0_93 = arith.constant 0 : index
      %c0_94 = arith.constant 0 : index
      %237 = vector.load %arg18[%c0_93, %c0_94] : memref<2x128xf32, #tpu.memory_space<vmem>>, vector<2x128xf32>
      tpu.vector_store %arg18[%c0_93, %c0_94], %236 {strides = array<i32>} : memref<2x128xf32, #tpu.memory_space<vmem>>, vector<2x128xf32>,
    } else {
    }
    return
  }
  func.func @transform_0(%arg0: i32) -> (i32, i32) {
    %c0_i32 = arith.constant 0 : i32
    %c0_i32_0 = arith.constant 0 : i32
    %c0_i32_1 = arith.constant 0 : i32
    return %c0_i32, %c0_i32_0 : i32, i32
  }
  func.func @transform_1(%arg0: i32) -> (i32, i32, i32) {
    %c0_i32 = arith.constant 0 : i32
    %c0_i32_0 = arith.constant 0 : i32
    %c0_i32_1 = arith.constant 0 : i32
    return %arg0, %c0_i32, %c0_i32_0 : i32, i32, i32
  }
  func.func @transform_2(%arg0: i32) -> (i32, i32, i32) {
    %c0_i32 = arith.constant 0 : i32
    %c0_i32_0 = arith.constant 0 : i32
    %c0_i32_1 = arith.constant 0 : i32
    return %arg0, %c0_i32, %c0_i32_0 : i32, i32, i32
  }
  func.func @transform_3(%arg0: i32) -> (i32, i32, i32) {
    %c0_i32 = arith.constant 0 : i32
    %c0_i32_0 = arith.constant 0 : i32
    %c0_i32_1 = arith.constant 0 : i32
    return %arg0, %c0_i32, %c0_i32_0 : i32, i32, i32
  }
  func.func @transform_4(%arg0: i32) -> (i32, i32, i32) {
    %c0_i32 = arith.constant 0 : i32
    %c0_i32_0 = arith.constant 0 : i32
    %c0_i32_1 = arith.constant 0 : i32
    return %arg0, %c0_i32, %c0_i32_0 : i32, i32, i32
  }
  func.func @transform_5(%arg0: i32) -> (i32, i32, i32) {
    %c0_i32 = arith.constant 0 : i32
    %c0_i32_0 = arith.constant 0 : i32
    %c0_i32_1 = arith.constant 0 : i32
    return %arg0, %c0_i32, %c0_i32_0 : i32, i32, i32
  }
  func.func @transform_6(%arg0: i32) -> (i32, i32, i32) {
    %c0_i32 = arith.constant 0 : i32
    %c0_i32_0 = arith.constant 0 : i32
    %c0_i32_1 = arith.constant 0 : i32
    return %arg0, %c0_i32, %c0_i32_0 : i32, i32, i32
  }
  func.func @transform_7(%arg0: i32) -> (i32, i32, i32) {
    %c0_i32 = arith.constant 0 : i32
    %c0_i32_0 = arith.constant 0 : i32
    %c0_i32_1 = arith.constant 0 : i32
    return %arg0, %c0_i32, %c0_i32_0 : i32, i32, i32
  }
  func.func @transform_8(%arg0: i32) -> (i32, i32, i32) {
    %c0_i32 = arith.constant 0 : i32
    %c0_i32_0 = arith.constant 0 : i32
    %c0_i32_1 = arith.constant 0 : i32
    return %arg0, %c0_i32, %c0_i32_0 : i32, i32, i32
  }
  func.func @transform_9(%arg0: i32) -> (i32, i32, i32) {
    %c0_i32 = arith.constant 0 : i32
    %c0_i32_0 = arith.constant 0 : i32
    %c0_i32_1 = arith.constant 0 : i32
    return %arg0, %c0_i32, %c0_i32_0 : i32, i32, i32
  }
  func.func @transform_10(%arg0: i32) -> (i32, i32, i32) {
    %c0_i32 = arith.constant 0 : i32
    %c0_i32_0 = arith.constant 0 : i32
    %c0_i32_1 = arith.constant 0 : i32
    return %arg0, %c0_i32, %c0_i32_0 : i32, i32, i32
  }
  func.func @transform_11(%arg0: i32) -> (i32, i32, i32) {
    %c0_i32 = arith.constant 0 : i32
    %c0_i32_0 = arith.constant 0 : i32
    %c0_i32_1 = arith.constant 0 : i32
    return %arg0, %c0_i32, %c0_i32_0 : i32, i32, i32
  }
  func.func @transform_12(%arg0: i32) -> (i32, i32, i32) {
    %c0_i32 = arith.constant 0 : i32
    %c0_i32_0 = arith.constant 0 : i32
    %c0_i32_1 = arith.constant 0 : i32
    return %arg0, %c0_i32, %c0_i32_0 : i32, i32, i32
  }
  func.func @transform_13(%arg0: i32) -> (i32, i32) {
    %c0_i32 = arith.constant 0 : i32
    %c0_i32_0 = arith.constant 0 : i32
    %c0_i32_1 = arith.constant 0 : i32
    return %c0_i32, %c0_i32_0 : i32, i32
  }
  func.func @transform_14(%arg0: i32) -> (i32, i32) {
    %c0_i32 = arith.constant 0 : i32
    %c0_i32_0 = arith.constant 0 : i32
    %c0_i32_1 = arith.constant 0 : i32
    return %c0_i32, %c0_i32_0 : i32, i32
  }
  func.func @transform_15(%arg0: i32) -> (i32, i32) {
    %c0_i32 = arith.constant 0 : i32
    %c0_i32_0 = arith.constant 0 : i32
    %c0_i32_1 = arith.constant 0 : i32
    return %c0_i32, %c0_i32_0 : i32, i32
  }
  func.func @transform_16(%arg0: i32) -> (i32, i32) {
    %c0_i32 = arith.constant 0 : i32
    %c0_i32_0 = arith.constant 0 : i32
    %c0_i32_1 = arith.constant 0 : i32
    return %c0_i32, %c0_i32_0 : i32, i32
  }
  func.func @transform_17(%arg0: i32) -> (i32, i32) {
    %c0_i32 = arith.constant 0 : i32
    %c0_i32_0 = arith.constant 0 : i32
    %c0_i32_1 = arith.constant 0 : i32
    return %c0_i32, %c0_i32_0 : i32, i32
  }
}

</mosaic_0001>

<llo_original>
// kernel: transformer_forward.1
$region0: #{transformer_forward.1}
  #allocation0 [shape = 'u32[]', space=smem, size = 0x4, offset = 0x4, fixed_abs, tag = 'smem constant byte address 0x4 - core index']
  #allocation1 [shape = 'u32[144,128]{1,0:T(1,128)}', space=vmem, size = 0x12000, scoped, tag = 'internal scratch']
  #allocation2 [shape = 'f32[16,128]{1,0:T(8,128)}', space=vmem, size = 0x2000, scoped, tag = 'scratch operand']
  %s0 = inlined_call_operand.vmem [shape: f32[16,128], index: 0, kind: input, shape index: {}]
  %s1 = inlined_call_operand.vmem [shape: bf16[2,128,128], index: 1, kind: input, shape index: {}]
  %s2 = inlined_call_operand.hbm [shape: f32[2,1,128], index: 2, kind: input, shape index: {}]
  %s3 = inlined_call_operand.vmem [shape: bf16[2,32,128], index: 3, kind: input, shape index: {}]
  %s4 = inlined_call_operand.hbm [shape: f32[2,1,128], index: 4, kind: input, shape index: {}]
  %s5 = inlined_call_operand.hbm [shape: f32[2,1,128], index: 5, kind: input, shape index: {}]
  %s6 = inlined_call_operand.hbm [shape: f32[2,1,128], index: 6, kind: input, shape index: {}]
  %s7 = inlined_call_operand.vmem [shape: bf16[2,128,128], index: 7, kind: input, shape index: {}]
  %s8 = inlined_call_operand.hbm [shape: f32[2,1,128], index: 8, kind: input, shape index: {}]
  %s9 = inlined_call_operand.hbm [shape: bf16[2,128,128], index: 9, kind: input, shape index: {}]
  %s10 = inlined_call_operand.hbm [shape: f32[2,1,128], index: 10, kind: input, shape index: {}]
  %s11 = inlined_call_operand.hbm [shape: f32[2,1,128], index: 11, kind: input, shape index: {}]
  %s12 = inlined_call_operand.hbm [shape: f32[2,1,128], index: 12, kind: input, shape index: {}]
  %s13 = inlined_call_operand.hbm [shape: f32[1,128], index: 13, kind: input, shape index: {}]
  %s14 = inlined_call_operand.hbm [shape: f32[1,128], index: 14, kind: input, shape index: {}]
  %s15 = inlined_call_operand.hbm [shape: bf16[128,128], index: 15, kind: input, shape index: {}]
  %s16 = inlined_call_operand.hbm [shape: f32[1,128], index: 16, kind: input, shape index: {}]
  %s17 = inlined_call_operand.hbm [shape: f32[2,128], index: 17, kind: output, shape index: {}]
  %s18 = sld [smem:[#allocation0]]
  $region161: #{transformer_forward.1} parent=0
    _
  %s20 = ssub.s32 1, %s18
  %s21 = scalar_select 0, %s20, %s18
  $region1: #{transformer_forward.1} parent=0
    #allocation3 [shape = 'u8[1024]{0}', space=vmem, size = 0x400, scoped, tag = 'input window, operand 2']
    #allocation4 [shape = 's32[2]{0}', space=sflag, size = 0x8, scoped, tag = 'scoped memory for transformer_forward.1']
    #allocation5 [shape = 's32[2]{0}', space=sflag, size = 0x8, scoped, tag = 'scoped memory for transformer_forward.1']
    #allocation6 [shape = 'u8[1024]{0}', space=vmem, size = 0x400, scoped, tag = 'input window, operand 4']
    #allocation7 [shape = 's32[2]{0}', space=sflag, size = 0x8, scoped, tag = 'scoped memory for transformer_forward.1']
    #allocation8 [shape = 'u8[1024]{0}', space=vmem, size = 0x400, scoped, tag = 'input window, operand 5']
    #allocation9 [shape = 'u8[1024]{0}', space=vmem, size = 0x400, scoped, tag = 'input window, operand 6']
    #allocation10 [shape = 's32[2]{0}', space=sflag, size = 0x8, scoped, tag = 'scoped memory for transformer_forward.1']
    #allocation11 [shape = 'u8[1024]{0}', space=vmem, size = 0x400, scoped, tag = 'input window, operand 8']
    #allocation12 [shape = 'u8[65536]{0}', space=vmem, size = 0x10000, scoped, tag = 'input window, operand 9']
    #allocation13 [shape = 's32[2]{0}', space=sflag, size = 0x8, scoped, tag = 'scoped memory for transformer_forward.1']
    #allocation14 [shape = 'u8[1024]{0}', space=vmem, size = 0x400, scoped, tag = 'input window, operand 10']
    #allocation15 [shape = 'u8[1024]{0}', space=vmem, size = 0x400, scoped, tag = 'input window, operand 11']
    #allocation16 [shape = 's32[2]{0}', space=sflag, size = 0x8, scoped, tag = 'scoped memory for transformer_forward.1']
    #allocation17 [shape = 'u8[1024]{0}', space=vmem, size = 0x400, scoped, tag = 'input window, operand 12']
    #allocation18 [shape = 'u8[512]{0}', space=vmem, size = 0x400, scoped, tag = 'input window, operand 13, single buffered']
    #allocation19 [shape = 's32[1]{0}', space=sflag, size = 0x4, scoped, tag = 'scoped memory for transformer_forward.1']
    #allocation20 [shape = 'u8[512]{0}', space=vmem, size = 0x400, scoped, tag = 'input window, operand 14, single buffered']
    #allocation21 [shape = 'u8[32768]{0}', space=vmem, size = 0x8000, scoped, tag = 'input window, operand 15, single buffered']
    #allocation22 [shape = 's32[1]{0}', space=sflag, size = 0x4, scoped, tag = 'scoped memory for transformer_forward.1']
    #allocation23 [shape = 'u8[512]{0}', space=vmem, size = 0x400, scoped, tag = 'input window, operand 16, single buffered']
    #allocation24 [shape = 'u8[1024]{0}', space=vmem, size = 0x400, scoped, tag = 'output window, operand 0, single buffered']
    %22 = vsyncpa [#allocation4], 0
    %s23 = scalar_lea.sflag [#allocation4], 1
    %24 = vsyncpa %s23, 0
    %25 = vsyncpa [#allocation7], 0
    %s26 = scalar_lea.sflag [#allocation7], 1
    %27 = vsyncpa %s26, 0
    %28 = vsyncpa [#allocation10], 0
    %s29 = scalar_lea.sflag [#allocation10], 1
    %30 = vsyncpa %s29, 0
    %31 = vsyncpa [#allocation13], 0
    %s32 = scalar_lea.sflag [#allocation13], 1
    %33 = vsyncpa %s32, 0
    %34 = vsyncpa [#allocation16], 0
    %s35 = scalar_lea.sflag [#allocation16], 1
    %36 = vsyncpa %s35, 0
    %37 = vsyncpa [#allocation19], 0
    %38 = vsyncpa [#allocation22], 0
    %39 = vsyncpa [#allocation5], 0
    loop: start=0, step=1, limit=4
    $region2: #{transformer_forward.1} parent=1 // loop_pre_header
      _
    $region3: #{transformer_forward.1} parent=1 // loop_header
      %s41 = sphi 0, %s45
      %p42 = scmp.ge.s32.totalorder %s41, 4
      %s49 = sphi 0, %s49
      %s51 = sphi 0, %s49
      %s52 = sphi 0, %s51
      %s66 = sphi 0, %s52
      %s72 = sphi 0, %s74
      %s75 = sphi 0, %s72
      %s76 = sphi 0, %s75
      %s92 = sphi 0, %s76
      %s98 = sphi 0, %s100
      %s101 = sphi 0, %s98
      %s102 = sphi 0, %s101
      %s118 = sphi 0, %s102
      %s124 = sphi 0, %s126
      %s127 = sphi 0, %s124
      %s128 = sphi 0, %s127
      %s144 = sphi 0, %s128
      %s150 = sphi 0, %s152
      %s153 = sphi 0, %s150
      %s154 = sphi 0, %s153
      %s170 = sphi 0, %s154
      %s176 = sphi 0, %s178
      %s179 = sphi 0, %s176
      %s180 = sphi 0, %s179
      %s196 = sphi 0, %s180
      %s202 = sphi 0, %s204
      %s205 = sphi 0, %s202
      %s206 = sphi 0, %s205
      %s222 = sphi 0, %s206
      %s228 = sphi 0, %s230
      %s231 = sphi 0, %s228
      %s232 = sphi 0, %s231
      %s248 = sphi 0, %s232
      %s254 = sphi 0, %s256
      %s257 = sphi 0, %s254
      %s258 = sphi 0, %s257
      %s274 = sphi 0, %s258
      %s280 = sphi 0, %s282
      %s283 = sphi 0, %s280
      %s284 = sphi 0, %s283
      %s300 = sphi 0, %s284
      %s306 = sphi 0, %s308
      %s309 = sphi 0, %s306
      %s310 = sphi 0, %s309
      %s326 = sphi 0, %s310
      %s332 = sphi 0, %s334
      %s335 = sphi 0, %s332
      %s336 = sphi 0, %s335
      %s352 = sphi 0, %s336
      %s358 = sphi 0, %s360
      %s361 = sphi 0, %s358
      %s362 = sphi 0, %s361
      %s378 = sphi 0, %s362
      %s382 = sphi 0, %s382
      %s384 = sphi 0, %s382
      %s385 = sphi 0, %s384
      %s399 = sphi 0, %s385
      %s403 = sphi 0, %s403
      %s405 = sphi 0, %s403
      %s406 = sphi 0, %s405
      %s420 = sphi 0, %s406
      %s424 = sphi 0, %s424
      %s426 = sphi 0, %s424
      %s427 = sphi 0, %s426
      %s441 = sphi 0, %s427
      %s445 = sphi 0, %s445
      %s447 = sphi 0, %s445
      %s448 = sphi 0, %s447
      %s462 = sphi 0, %s448
      %s466 = sphi 0, %s466
      %s468 = sphi 0, %s466
      %s469 = sphi 0, %s468
      %s483 = sphi 0, %s469
    $region4: #{transformer_forward.1} parent=1 // loop_header_branch
      %44 = sbr.rel (%p42) target = $region8
    $region5: #{transformer_forward.1} parent=1 // loop_body
      %s46 = ssub.s32 %s41, 1
      %s47 = ssub.s32 %s41, 2
      %s48 = sadd.s32 %s41, 1
      %s50 = sadd.s32 %s49, 1
      %p53 = scmp.eq.s32.totalorder %s41, 1
      %p54 = scmp.ne.s32.totalorder %s49, %s51
      %p55 = scmp.eq.s32.totalorder %s41, 0
      %p56 = por %p54, %p55
      %p57 = scmp.ne.s32.totalorder %s49, %s51
      %p58 = scmp.eq.s32.totalorder %s46, 1
      %p59 = por %p57, %p58
      %p60 = scmp.ne.s32.totalorder %s51, %s52
      %p61 = scmp.eq.s32.totalorder %s46, 0
      %p62 = por %p60, %p61
      %p63 = scmp.ne.s32.totalorder %s51, %s52
      %p64 = scmp.eq.s32.totalorder %s47, 1
      %p65 = por %p63, %p64
      %p67 = scmp.ne.s32.totalorder %s52, %s66
      %p68 = scmp.eq.s32.totalorder %s47, 0
      %p69 = por %p67, %p68
      %s70 = ssub.s32 %s41, %s48
      %p71 = scmp.eq.s32.totalorder %s70, 0
      %s73 = sadd.s32 %s72, 1
      %s74 = scalar_select %p71, %s72, %s73
      %p77 = pneg %p71
      %p78 = scmp.eq.s32.totalorder %s41, 1
      %p79 = por %p77, %p78
      %p80 = scmp.ne.s32.totalorder %s72, %s75
      %p81 = scmp.eq.s32.totalorder %s41, 0
      %p82 = por %p80, %p81
      %p83 = scmp.ne.s32.totalorder %s72, %s75
      %p84 = scmp.eq.s32.totalorder %s46, 1
      %p85 = por %p83, %p84
      %p86 = scmp.ne.s32.totalorder %s75, %s76
      %p87 = scmp.eq.s32.totalorder %s46, 0
      %p88 = por %p86, %p87
      %p89 = scmp.ne.s32.totalorder %s75, %s76
      %p90 = scmp.eq.s32.totalorder %s47, 1
      %p91 = por %p89, %p90
      %p93 = scmp.ne.s32.totalorder %s76, %s92
      %p94 = scmp.eq.s32.totalorder %s47, 0
      %p95 = por %p93, %p94
      %s96 = ssub.s32 %s41, %s48
      %p97 = scmp.eq.s32.totalorder %s96, 0
      %s99 = sadd.s32 %s98, 1
      %s100 = scalar_select %p97, %s98, %s99
      %p103 = pneg %p97
      %p104 = scmp.eq.s32.totalorder %s41, 1
      %p105 = por %p103, %p104
      %p106 = scmp.ne.s32.totalorder %s98, %s101
      %p107 = scmp.eq.s32.totalorder %s41, 0
      %p108 = por %p106, %p107
      %p109 = scmp.ne.s32.totalorder %s98, %s101
      %p110 = scmp.eq.s32.totalorder %s46, 1
      %p111 = por %p109, %p110
      %p112 = scmp.ne.s32.totalorder %s101, %s102
      %p113 = scmp.eq.s32.totalorder %s46, 0
      %p114 = por %p112, %p113
      %p115 = scmp.ne.s32.totalorder %s101, %s102
      %p116 = scmp.eq.s32.totalorder %s47, 1
      %p117 = por %p115, %p116
      %p119 = scmp.ne.s32.totalorder %s102, %s118
      %p120 = scmp.eq.s32.totalorder %s47, 0
      %p121 = por %p119, %p120
      %s122 = ssub.s32 %s41, %s48
      %p123 = scmp.eq.s32.totalorder %s122, 0
      %s125 = sadd.s32 %s124, 1
      %s126 = scalar_select %p123, %s124, %s125
      %p129 = pneg %p123
      %p130 = scmp.eq.s32.totalorder %s41, 1
      %p131 = por %p129, %p130
      %p132 = scmp.ne.s32.totalorder %s124, %s127
      %p133 = scmp.eq.s32.totalorder %s41, 0
      %p134 = por %p132, %p133
      %p135 = scmp.ne.s32.totalorder %s124, %s127
      %p136 = scmp.eq.s32.totalorder %s46, 1
      %p137 = por %p135, %p136
      %p138 = scmp.ne.s32.totalorder %s127, %s128
      %p139 = scmp.eq.s32.totalorder %s46, 0
      %p140 = por %p138, %p139
      %p141 = scmp.ne.s32.totalorder %s127, %s128
      %p142 = scmp.eq.s32.totalorder %s47, 1
      %p143 = por %p141, %p142
      %p145 = scmp.ne.s32.totalorder %s128, %s144
      %p146 = scmp.eq.s32.totalorder %s47, 0
      %p147 = por %p145, %p146
      %s148 = ssub.s32 %s41, %s48
      %p149 = scmp.eq.s32.totalorder %s148, 0
      %s151 = sadd.s32 %s150, 1
      %s152 = scalar_select %p149, %s150, %s151
      %p155 = pneg %p149
      %p156 = scmp.eq.s32.totalorder %s41, 1
      %p157 = por %p155, %p156
      %p158 = scmp.ne.s32.totalorder %s150, %s153
      %p159 = scmp.eq.s32.totalorder %s41, 0
      %p160 = por %p158, %p159
      %p161 = scmp.ne.s32.totalorder %s150, %s153
      %p162 = scmp.eq.s32.totalorder %s46, 1
      %p163 = por %p161, %p162
      %p164 = scmp.ne.s32.totalorder %s153, %s154
      %p165 = scmp.eq.s32.totalorder %s46, 0
      %p166 = por %p164, %p165
      %p167 = scmp.ne.s32.totalorder %s153, %s154
      %p168 = scmp.eq.s32.totalorder %s47, 1
      %p169 = por %p167, %p168
      %p171 = scmp.ne.s32.totalorder %s154, %s170
      %p172 = scmp.eq.s32.totalorder %s47, 0
      %p173 = por %p171, %p172
      %s174 = ssub.s32 %s41, %s48
      %p175 = scmp.eq.s32.totalorder %s174, 0
      %s177 = sadd.s32 %s176, 1
      %s178 = scalar_select %p175, %s176, %s177
      %p181 = pneg %p175
      %p182 = scmp.eq.s32.totalorder %s41, 1
      %p183 = por %p181, %p182
      %p184 = scmp.ne.s32.totalorder %s176, %s179
      %p185 = scmp.eq.s32.totalorder %s41, 0
      %p186 = por %p184, %p185
      %p187 = scmp.ne.s32.totalorder %s176, %s179
      %p188 = scmp.eq.s32.totalorder %s46, 1
      %p189 = por %p187, %p188
      %p190 = scmp.ne.s32.totalorder %s179, %s180
      %p191 = scmp.eq.s32.totalorder %s46, 0
      %p192 = por %p190, %p191
      %p193 = scmp.ne.s32.totalorder %s179, %s180
      %p194 = scmp.eq.s32.totalorder %s47, 1
      %p195 = por %p193, %p194
      %p197 = scmp.ne.s32.totalorder %s180, %s196
      %p198 = scmp.eq.s32.totalorder %s47, 0
      %p199 = por %p197, %p198
      %s200 = ssub.s32 %s41, %s48
      %p201 = scmp.eq.s32.totalorder %s200, 0
      %s203 = sadd.s32 %s202, 1
      %s204 = scalar_select %p201, %s202, %s203
      %p207 = pneg %p201
      %p208 = scmp.eq.s32.totalorder %s41, 1
      %p209 = por %p207, %p208
      %p210 = scmp.ne.s32.totalorder %s202, %s205
      %p211 = scmp.eq.s32.totalorder %s41, 0
      %p212 = por %p210, %p211
      %p213 = scmp.ne.s32.totalorder %s202, %s205
      %p214 = scmp.eq.s32.totalorder %s46, 1
      %p215 = por %p213, %p214
      %p216 = scmp.ne.s32.totalorder %s205, %s206
      %p217 = scmp.eq.s32.totalorder %s46, 0
      %p218 = por %p216, %p217
      %p219 = scmp.ne.s32.totalorder %s205, %s206
      %p220 = scmp.eq.s32.totalorder %s47, 1
      %p221 = por %p219, %p220
      %p223 = scmp.ne.s32.totalorder %s206, %s222
      %p224 = scmp.eq.s32.totalorder %s47, 0
      %p225 = por %p223, %p224
      %s226 = ssub.s32 %s41, %s48
      %p227 = scmp.eq.s32.totalorder %s226, 0
      %s229 = sadd.s32 %s228, 1
      %s230 = scalar_select %p227, %s228, %s229
      %p233 = pneg %p227
      %p234 = scmp.eq.s32.totalorder %s41, 1
      %p235 = por %p233, %p234
      %p236 = scmp.ne.s32.totalorder %s228, %s231
      %p237 = scmp.eq.s32.totalorder %s41, 0
      %p238 = por %p236, %p237
      %p239 = scmp.ne.s32.totalorder %s228, %s231
      %p240 = scmp.eq.s32.totalorder %s46, 1
      %p241 = por %p239, %p240
      %p242 = scmp.ne.s32.totalorder %s231, %s232
      %p243 = scmp.eq.s32.totalorder %s46, 0
      %p244 = por %p242, %p243
      %p245 = scmp.ne.s32.totalorder %s231, %s232
      %p246 = scmp.eq.s32.totalorder %s47, 1
      %p247 = por %p245, %p246
      %p249 = scmp.ne.s32.totalorder %s232, %s248
      %p250 = scmp.eq.s32.totalorder %s47, 0
      %p251 = por %p249, %p250
      %s252 = ssub.s32 %s41, %s48
      %p253 = scmp.eq.s32.totalorder %s252, 0
      %s255 = sadd.s32 %s254, 1
      %s256 = scalar_select %p253, %s254, %s255
      %p259 = pneg %p253
      %p260 = scmp.eq.s32.totalorder %s41, 1
      %p261 = por %p259, %p260
      %p262 = scmp.ne.s32.totalorder %s254, %s257
      %p263 = scmp.eq.s32.totalorder %s41, 0
      %p264 = por %p262, %p263
      %p265 = scmp.ne.s32.totalorder %s254, %s257
      %p266 = scmp.eq.s32.totalorder %s46, 1
      %p267 = por %p265, %p266
      %p268 = scmp.ne.s32.totalorder %s257, %s258
      %p269 = scmp.eq.s32.totalorder %s46, 0
      %p270 = por %p268, %p269
      %p271 = scmp.ne.s32.totalorder %s257, %s258
      %p272 = scmp.eq.s32.totalorder %s47, 1
      %p273 = por %p271, %p272
      %p275 = scmp.ne.s32.totalorder %s258, %s274
      %p276 = scmp.eq.s32.totalorder %s47, 0
      %p277 = por %p275, %p276
      %s278 = ssub.s32 %s41, %s48
      %p279 = scmp.eq.s32.totalorder %s278, 0
      %s281 = sadd.s32 %s280, 1
      %s282 = scalar_select %p279, %s280, %s281
      %p285 = pneg %p279
      %p286 = scmp.eq.s32.totalorder %s41, 1
      %p287 = por %p285, %p286
      %p288 = scmp.ne.s32.totalorder %s280, %s283
      %p289 = scmp.eq.s32.totalorder %s41, 0
      %p290 = por %p288, %p289
      %p291 = scmp.ne.s32.totalorder %s280, %s283
      %p292 = scmp.eq.s32.totalorder %s46, 1
      %p293 = por %p291, %p292
      %p294 = scmp.ne.s32.totalorder %s283, %s284
      %p295 = scmp.eq.s32.totalorder %s46, 0
      %p296 = por %p294, %p295
      %p297 = scmp.ne.s32.totalorder %s283, %s284
      %p298 = scmp.eq.s32.totalorder %s47, 1
      %p299 = por %p297, %p298
      %p301 = scmp.ne.s32.totalorder %s284, %s300
      %p302 = scmp.eq.s32.totalorder %s47, 0
      %p303 = por %p301, %p302
      %s304 = ssub.s32 %s41, %s48
      %p305 = scmp.eq.s32.totalorder %s304, 0
      %s307 = sadd.s32 %s306, 1
      %s308 = scalar_select %p305, %s306, %s307
      %p311 = pneg %p305
      %p312 = scmp.eq.s32.totalorder %s41, 1
      %p313 = por %p311, %p312
      %p314 = scmp.ne.s32.totalorder %s306, %s309
      %p315 = scmp.eq.s32.totalorder %s41, 0
      %p316 = por %p314, %p315
      %p317 = scmp.ne.s32.totalorder %s306, %s309
      %p318 = scmp.eq.s32.totalorder %s46, 1
      %p319 = por %p317, %p318
      %p320 = scmp.ne.s32.totalorder %s309, %s310
      %p321 = scmp.eq.s32.totalorder %s46, 0
      %p322 = por %p320, %p321
      %p323 = scmp.ne.s32.totalorder %s309, %s310
      %p324 = scmp.eq.s32.totalorder %s47, 1
      %p325 = por %p323, %p324
      %p327 = scmp.ne.s32.totalorder %s310, %s326
      %p328 = scmp.eq.s32.totalorder %s47, 0
      %p329 = por %p327, %p328
      %s330 = ssub.s32 %s41, %s48
      %p331 = scmp.eq.s32.totalorder %s330, 0
      %s333 = sadd.s32 %s332, 1
      %s334 = scalar_select %p331, %s332, %s333
      %p337 = pneg %p331
      %p338 = scmp.eq.s32.totalorder %s41, 1
      %p339 = por %p337, %p338
      %p340 = scmp.ne.s32.totalorder %s332, %s335
      %p341 = scmp.eq.s32.totalorder %s41, 0
      %p342 = por %p340, %p341
      %p343 = scmp.ne.s32.totalorder %s332, %s335
      %p344 = scmp.eq.s32.totalorder %s46, 1
      %p345 = por %p343, %p344
      %p346 = scmp.ne.s32.totalorder %s335, %s336
      %p347 = scmp.eq.s32.totalorder %s46, 0
      %p348 = por %p346, %p347
      %p349 = scmp.ne.s32.totalorder %s335, %s336
      %p350 = scmp.eq.s32.totalorder %s47, 1
      %p351 = por %p349, %p350
      %p353 = scmp.ne.s32.totalorder %s336, %s352
      %p354 = scmp.eq.s32.totalorder %s47, 0
      %p355 = por %p353, %p354
      %s356 = ssub.s32 %s41, %s48
      %p357 = scmp.eq.s32.totalorder %s356, 0
      %s359 = sadd.s32 %s358, 1
      %s360 = scalar_select %p357, %s358, %s359
      %p363 = pneg %p357
      %p364 = scmp.eq.s32.totalorder %s41, 1
      %p365 = por %p363, %p364
      %p366 = scmp.ne.s32.totalorder %s358, %s361
      %p367 = scmp.eq.s32.totalorder %s41, 0
      %p368 = por %p366, %p367
      %p369 = scmp.ne.s32.totalorder %s358, %s361
      %p370 = scmp.eq.s32.totalorder %s46, 1
      %p371 = por %p369, %p370
      %p372 = scmp.ne.s32.totalorder %s361, %s362
      %p373 = scmp.eq.s32.totalorder %s46, 0
      %p374 = por %p372, %p373
      %p375 = scmp.ne.s32.totalorder %s361, %s362
      %p376 = scmp.eq.s32.totalorder %s47, 1
      %p377 = por %p375, %p376
      %p379 = scmp.ne.s32.totalorder %s362, %s378
      %p380 = scmp.eq.s32.totalorder %s47, 0
      %p381 = por %p379, %p380
      %s383 = sadd.s32 %s382, 1
      %p386 = scmp.eq.s32.totalorder %s41, 1
      %p387 = scmp.ne.s32.totalorder %s382, %s384
      %p388 = scmp.eq.s32.totalorder %s41, 0
      %p389 = por %p387, %p388
      %p390 = scmp.ne.s32.totalorder %s382, %s384
      %p391 = scmp.eq.s32.totalorder %s46, 1
      %p392 = por %p390, %p391
      %p393 = scmp.ne.s32.totalorder %s384, %s385
      %p394 = scmp.eq.s32.totalorder %s46, 0
      %p395 = por %p393, %p394
      %p396 = scmp.ne.s32.totalorder %s384, %s385
      %p397 = scmp.eq.s32.totalorder %s47, 1
      %p398 = por %p396, %p397
      %p400 = scmp.ne.s32.totalorder %s385, %s399
      %p401 = scmp.eq.s32.totalorder %s47, 0
      %p402 = por %p400, %p401
      %s404 = sadd.s32 %s403, 1
      %p407 = scmp.eq.s32.totalorder %s41, 1
      %p408 = scmp.ne.s32.totalorder %s403, %s405
      %p409 = scmp.eq.s32.totalorder %s41, 0
      %p410 = por %p408, %p409
      %p411 = scmp.ne.s32.totalorder %s403, %s405
      %p412 = scmp.eq.s32.totalorder %s46, 1
      %p413 = por %p411, %p412
      %p414 = scmp.ne.s32.totalorder %s405, %s406
      %p415 = scmp.eq.s32.totalorder %s46, 0
      %p416 = por %p414, %p415
      %p417 = scmp.ne.s32.totalorder %s405, %s406
      %p418 = scmp.eq.s32.totalorder %s47, 1
      %p419 = por %p417, %p418
      %p421 = scmp.ne.s32.totalorder %s406, %s420
      %p422 = scmp.eq.s32.totalorder %s47, 0
      %p423 = por %p421, %p422
      %s425 = sadd.s32 %s424, 1
      %p428 = scmp.eq.s32.totalorder %s41, 1
      %p429 = scmp.ne.s32.totalorder %s424, %s426
      %p430 = scmp.eq.s32.totalorder %s41, 0
      %p431 = por %p429, %p430
      %p432 = scmp.ne.s32.totalorder %s424, %s426
      %p433 = scmp.eq.s32.totalorder %s46, 1
      %p434 = por %p432, %p433
      %p435 = scmp.ne.s32.totalorder %s426, %s427
      %p436 = scmp.eq.s32.totalorder %s46, 0
      %p437 = por %p435, %p436
      %p438 = scmp.ne.s32.totalorder %s426, %s427
      %p439 = scmp.eq.s32.totalorder %s47, 1
      %p440 = por %p438, %p439
      %p442 = scmp.ne.s32.totalorder %s427, %s441
      %p443 = scmp.eq.s32.totalorder %s47, 0
      %p444 = por %p442, %p443
      %s446 = sadd.s32 %s445, 1
      %p449 = scmp.eq.s32.totalorder %s41, 1
      %p450 = scmp.ne.s32.totalorder %s445, %s447
      %p451 = scmp.eq.s32.totalorder %s41, 0
      %p452 = por %p450, %p451
      %p453 = scmp.ne.s32.totalorder %s445, %s447
      %p454 = scmp.eq.s32.totalorder %s46, 1
      %p455 = por %p453, %p454
      %p456 = scmp.ne.s32.totalorder %s447, %s448
      %p457 = scmp.eq.s32.totalorder %s46, 0
      %p458 = por %p456, %p457
      %p459 = scmp.ne.s32.totalorder %s447, %s448
      %p460 = scmp.eq.s32.totalorder %s47, 1
      %p461 = por %p459, %p460
      %p463 = scmp.ne.s32.totalorder %s448, %s462
      %p464 = scmp.eq.s32.totalorder %s47, 0
      %p465 = por %p463, %p464
      %s467 = sadd.s32 %s466, 1
      %p470 = scmp.eq.s32.totalorder %s41, 1
      %p471 = scmp.ne.s32.totalorder %s466, %s468
      %p472 = scmp.eq.s32.totalorder %s41, 0
      %p473 = por %p471, %p472
      %p474 = scmp.ne.s32.totalorder %s466, %s468
      %p475 = scmp.eq.s32.totalorder %s46, 1
      %p476 = por %p474, %p475
      %p477 = scmp.ne.s32.totalorder %s468, %s469
      %p478 = scmp.eq.s32.totalorder %s46, 0
      %p479 = por %p477, %p478
      %p480 = scmp.ne.s32.totalorder %s468, %s469
      %p481 = scmp.eq.s32.totalorder %s47, 1
      %p482 = por %p480, %p481
      %p484 = scmp.ne.s32.totalorder %s469, %s483
      %p485 = scmp.eq.s32.totalorder %s47, 0
      %p486 = por %p484, %p485
      %p487 = scmp.le.s32.totalorder 1, %s41
      %p488 = scmp.lt.s32.totalorder %s41, 3
      %p489 = pnand %p487, %p488
      %p490 = pneg %p489
      // Predicated region
      $region9: #{transformer_forward.1} parent=5 // pred_check
        _
      $region10: #{transformer_forward.1} parent=5 // pred_check_branch
        %492 = sbr.rel (%p489) target = $region12
      $region11: #{transformer_forward.1} parent=5 // pred_region
        %s493 = ssub.s32 %s41, 1
        // Predicated region
        $region13: #{transformer_forward.1} parent=11 // pred_check
          %p494 = pneg %p62
        $region14: #{transformer_forward.1} parent=11 // pred_check_branch
          %496 = sbr.rel (%p494) target = $region16
        $region15: #{transformer_forward.1} parent=11 // pred_region
          _
        $region16: #{transformer_forward.1} parent=11 // pred_fallthru
          _
        // Predicated region
        $region17: #{transformer_forward.1} parent=11 // pred_check
          %p497 = pneg %p395
        $region18: #{transformer_forward.1} parent=11 // pred_check_branch
          %499 = sbr.rel (%p497) target = $region20
        $region19: #{transformer_forward.1} parent=11 // pred_region
          %s501 = ssub.s32 16, 16
          %502 = vsyncadd [#allocation19], %s501
          %s504 = sshll.u32 [#allocation18], 4
          %s505 = int_to_ptr.vmem [resolvable:$true] %s504
          %507 = dma.hbm_to_vmem [thread:$0]  %s13, 16, %s505, [#allocation19]
        $region20: #{transformer_forward.1} parent=11 // pred_fallthru
          _
        // Predicated region
        $region21: #{transformer_forward.1} parent=11 // pred_check
          %p508 = pneg %p416
        $region22: #{transformer_forward.1} parent=11 // pred_check_branch
          %510 = sbr.rel (%p508) target = $region24
        $region23: #{transformer_forward.1} parent=11 // pred_region
          %s512 = ssub.s32 16, 16
          %513 = vsyncadd [#allocation19], %s512
          %s515 = sshll.u32 [#allocation20], 4
          %s516 = int_to_ptr.vmem [resolvable:$true] %s515
          %518 = dma.hbm_to_vmem [thread:$0]  %s14, 16, %s516, [#allocation19]
        $region24: #{transformer_forward.1} parent=11 // pred_fallthru
          _
        // Predicated region
        $region25: #{transformer_forward.1} parent=11 // pred_check
          %p519 = pneg %p437
        $region26: #{transformer_forward.1} parent=11 // pred_check_branch
          %521 = sbr.rel (%p519) target = $region28
        $region27: #{transformer_forward.1} parent=11 // pred_region
          %s523 = ssub.s32 1024, 1024
          %524 = vsyncadd [#allocation22], %s523
          %s525 = sshll.u32 [#allocation21], 4
          %s526 = int_to_ptr.vmem [resolvable:$true] %s525
          %531 = dma.hbm_to_vmem [thread:$0]  %s15, 1024, %s526, [#allocation22], 64, 64, 4
        $region28: #{transformer_forward.1} parent=11 // pred_fallthru
          _
        // Predicated region
        $region29: #{transformer_forward.1} parent=11 // pred_check
          %p532 = pneg %p458
        $region30: #{transformer_forward.1} parent=11 // pred_check_branch
          %534 = sbr.rel (%p532) target = $region32
        $region31: #{transformer_forward.1} parent=11 // pred_region
          %s536 = ssub.s32 16, 16
          %537 = vsyncadd [#allocation22], %s536
          %s539 = sshll.u32 [#allocation23], 4
          %s540 = int_to_ptr.vmem [resolvable:$true] %s539
          %542 = dma.hbm_to_vmem [thread:$0]  %s16, 16, %s540, [#allocation22]
        $region32: #{transformer_forward.1} parent=11 // pred_fallthru
          _
      $region12: #{transformer_forward.1} parent=5 // pred_fallthru
        _
      %p543 = scmp.lt.s32.totalorder %s41, 2
      // Predicated region
      $region33: #{transformer_forward.1} parent=5 // pred_check
        %p544 = pneg %p543
      $region34: #{transformer_forward.1} parent=5 // pred_check_branch
        %546 = sbr.rel (%p544) target = $region36
      $region35: #{transformer_forward.1} parent=5 // pred_region
        // Predicated region
        $region37: #{transformer_forward.1} parent=35 // pred_check
          %p547 = pneg %p82
        $region38: #{transformer_forward.1} parent=35 // pred_check_branch
          %549 = sbr.rel (%p547) target = $region40
        $region39: #{transformer_forward.1} parent=35 // pred_region
          %p550 = scmp.lt.s32.totalorder %s41, 1
          %s551 = scalar_select %p550, %s41, 1
          %s552 = smul.addr %s551, 16
          %s553 = smul.addr %s552, 4
          %s554 = scalar_lea.vmem %s1, %s553
        $region40: #{transformer_forward.1} parent=35 // pred_fallthru
          _
        // Predicated region
        $region41: #{transformer_forward.1} parent=35 // pred_check
          %p555 = pneg %p108
        $region42: #{transformer_forward.1} parent=35 // pred_check_branch
          %557 = sbr.rel (%p555) target = $region44
        $region43: #{transformer_forward.1} parent=35 // pred_region
          %s558 = sand.u32 %s98, 1
          %s559 = scalar_lea.sflag [#allocation4], %s558
          %s560 = sand.u32 %s98, 1
          %s561 = scalar_lea.vmem [#allocation3], %s560
          %s563 = ssub.s32 16, 16
          %564 = vsyncadd %s559, %s563
          %s565 = smul.addr %s41, 16
          %s566 = scalar_lea.hbm %s2, %s565
          %s568 = sshll.u32 %s561, 4
          %s569 = int_to_ptr.vmem [resolvable:$true] %s568
          %571 = dma.hbm_to_vmem [thread:$0]  %s566, 16, %s569, %s559
        $region44: #{transformer_forward.1} parent=35 // pred_fallthru
          _
        // Predicated region
        $region45: #{transformer_forward.1} parent=35 // pred_check
          %p572 = pneg %p134
        $region46: #{transformer_forward.1} parent=35 // pred_check_branch
          %574 = sbr.rel (%p572) target = $region48
        $region47: #{transformer_forward.1} parent=35 // pred_region
          %p575 = scmp.lt.s32.totalorder %s41, 1
          %s576 = scalar_select %p575, %s41, 1
          %s577 = smul.addr %s576, 4
          %s578 = smul.addr %s577, 4
          %s579 = scalar_lea.vmem %s3, %s578
        $region48: #{transformer_forward.1} parent=35 // pred_fallthru
          _
        // Predicated region
        $region49: #{transformer_forward.1} parent=35 // pred_check
          %p580 = pneg %p160
        $region50: #{transformer_forward.1} parent=35 // pred_check_branch
          %582 = sbr.rel (%p580) target = $region52
        $region51: #{transformer_forward.1} parent=35 // pred_region
          %s583 = sand.u32 %s41, 1
          %s584 = scalar_lea.sflag [#allocation7], %s583
          %s585 = sand.u32 %s150, 1
          %s586 = scalar_lea.vmem [#allocation6], %s585
          %s588 = ssub.s32 16, 16
          %589 = vsyncadd %s584, %s588
          %s590 = smul.addr %s41, 16
          %s591 = scalar_lea.hbm %s4, %s590
          %s593 = sshll.u32 %s586, 4
          %s594 = int_to_ptr.vmem [resolvable:$true] %s593
          %596 = dma.hbm_to_vmem [thread:$0]  %s591, 16, %s594, %s584
        $region52: #{transformer_forward.1} parent=35 // pred_fallthru
          _
        // Predicated region
        $region53: #{transformer_forward.1} parent=35 // pred_check
          %p597 = pneg %p186
        $region54: #{transformer_forward.1} parent=35 // pred_check_branch
          %599 = sbr.rel (%p597) target = $region56
        $region55: #{transformer_forward.1} parent=35 // pred_region
          %s600 = sand.u32 %s41, 1
          %s601 = scalar_lea.sflag [#allocation7], %s600
          %s602 = sand.u32 %s176, 1
          %s603 = scalar_lea.vmem [#allocation8], %s602
          %s605 = ssub.s32 16, 16
          %606 = vsyncadd %s601, %s605
          %s607 = smul.addr %s41, 16
          %s608 = scalar_lea.hbm %s5, %s607
          %s610 = sshll.u32 %s603, 4
          %s611 = int_to_ptr.vmem [resolvable:$true] %s610
          %613 = dma.hbm_to_vmem [thread:$0]  %s608, 16, %s611, %s601
        $region56: #{transformer_forward.1} parent=35 // pred_fallthru
          _
        // Predicated region
        $region57: #{transformer_forward.1} parent=35 // pred_check
          %p614 = pneg %p212
        $region58: #{transformer_forward.1} parent=35 // pred_check_branch
          %616 = sbr.rel (%p614) target = $region60
        $region59: #{transformer_forward.1} parent=35 // pred_region
          %s617 = sand.u32 %s41, 1
          %s618 = scalar_lea.sflag [#allocation10], %s617
          %s619 = sand.u32 %s202, 1
          %s620 = scalar_lea.vmem [#allocation9], %s619
          %s622 = ssub.s32 16, 16
          %623 = vsyncadd %s618, %s622
          %s624 = smul.addr %s41, 16
          %s625 = scalar_lea.hbm %s6, %s624
          %s627 = sshll.u32 %s620, 4
          %s628 = int_to_ptr.vmem [resolvable:$true] %s627
          %630 = dma.hbm_to_vmem [thread:$0]  %s625, 16, %s628, %s618
        $region60: #{transformer_forward.1} parent=35 // pred_fallthru
          _
        // Predicated region
        $region61: #{transformer_forward.1} parent=35 // pred_check
          %p631 = pneg %p238
        $region62: #{transformer_forward.1} parent=35 // pred_check_branch
          %633 = sbr.rel (%p631) target = $region64
        $region63: #{transformer_forward.1} parent=35 // pred_region
          %p634 = scmp.lt.s32.totalorder %s41, 1
          %s635 = scalar_select %p634, %s41, 1
          %s636 = smul.addr %s635, 16
          %s637 = smul.addr %s636, 4
          %s638 = scalar_lea.vmem %s7, %s637
        $region64: #{transformer_forward.1} parent=35 // pred_fallthru
          _
        // Predicated region
        $region65: #{transformer_forward.1} parent=35 // pred_check
          %p639 = pneg %p264
        $region66: #{transformer_forward.1} parent=35 // pred_check_branch
          %641 = sbr.rel (%p639) target = $region68
        $region67: #{transformer_forward.1} parent=35 // pred_region
          %s642 = sand.u32 %s41, 1
          %s643 = scalar_lea.sflag [#allocation10], %s642
          %s644 = sand.u32 %s254, 1
          %s645 = scalar_lea.vmem [#allocation11], %s644
          %s647 = ssub.s32 16, 16
          %648 = vsyncadd %s643, %s647
          %s649 = smul.addr %s41, 16
          %s650 = scalar_lea.hbm %s8, %s649
          %s652 = sshll.u32 %s645, 4
          %s653 = int_to_ptr.vmem [resolvable:$true] %s652
          %655 = dma.hbm_to_vmem [thread:$0]  %s650, 16, %s653, %s643
        $region68: #{transformer_forward.1} parent=35 // pred_fallthru
          _
        // Predicated region
        $region69: #{transformer_forward.1} parent=35 // pred_check
          %p656 = pneg %p290
        $region70: #{transformer_forward.1} parent=35 // pred_check_branch
          %658 = sbr.rel (%p656) target = $region72
        $region71: #{transformer_forward.1} parent=35 // pred_region
          %s659 = sand.u32 %s41, 1
          %s660 = scalar_lea.sflag [#allocation13], %s659
          %s661 = sand.u32 %s280, 1
          %s662 = smul.addr %s661, 64
          %s663 = scalar_lea.vmem [#allocation12], %s662
          %s665 = ssub.s32 1024, 1024
          %666 = vsyncadd %s660, %s665
          %s667 = smul.addr %s41, 16
          %s668 = smul.addr %s667, 64
          %s669 = scalar_lea.hbm %s9, %s668
          %s670 = sshll.u32 %s663, 4
          %s671 = int_to_ptr.vmem [resolvable:$true] %s670
          %676 = dma.hbm_to_vmem [thread:$0]  %s669, 1024, %s671, %s660, 64, 64, 4
        $region72: #{transformer_forward.1} parent=35 // pred_fallthru
          _
        // Predicated region
        $region73: #{transformer_forward.1} parent=35 // pred_check
          %p677 = pneg %p316
        $region74: #{transformer_forward.1} parent=35 // pred_check_branch
          %679 = sbr.rel (%p677) target = $region76
        $region75: #{transformer_forward.1} parent=35 // pred_region
          %s680 = sand.u32 %s41, 1
          %s681 = scalar_lea.sflag [#allocation13], %s680
          %s682 = sand.u32 %s306, 1
          %s683 = scalar_lea.vmem [#allocation14], %s682
          %s685 = ssub.s32 16, 16
          %686 = vsyncadd %s681, %s685
          %s687 = smul.addr %s41, 16
          %s688 = scalar_lea.hbm %s10, %s687
          %s690 = sshll.u32 %s683, 4
          %s691 = int_to_ptr.vmem [resolvable:$true] %s690
          %693 = dma.hbm_to_vmem [thread:$0]  %s688, 16, %s691, %s681
        $region76: #{transformer_forward.1} parent=35 // pred_fallthru
          _
        // Predicated region
        $region77: #{transformer_forward.1} parent=35 // pred_check
          %p694 = pneg %p342
        $region78: #{transformer_forward.1} parent=35 // pred_check_branch
          %696 = sbr.rel (%p694) target = $region80
        $region79: #{transformer_forward.1} parent=35 // pred_region
          %s697 = sand.u32 %s41, 1
          %s698 = scalar_lea.sflag [#allocation16], %s697
          %s699 = sand.u32 %s332, 1
          %s700 = scalar_lea.vmem [#allocation15], %s699
          %s702 = ssub.s32 16, 16
          %703 = vsyncadd %s698, %s702
          %s704 = smul.addr %s41, 16
          %s705 = scalar_lea.hbm %s11, %s704
          %s707 = sshll.u32 %s700, 4
          %s708 = int_to_ptr.vmem [resolvable:$true] %s707
          %710 = dma.hbm_to_vmem [thread:$0]  %s705, 16, %s708, %s698
        $region80: #{transformer_forward.1} parent=35 // pred_fallthru
          _
        // Predicated region
        $region81: #{transformer_forward.1} parent=35 // pred_check
          %p711 = pneg %p368
        $region82: #{transformer_forward.1} parent=35 // pred_check_branch
          %713 = sbr.rel (%p711) target = $region84
        $region83: #{transformer_forward.1} parent=35 // pred_region
          %s714 = sand.u32 %s41, 1
          %s715 = scalar_lea.sflag [#allocation16], %s714
          %s716 = sand.u32 %s358, 1
          %s717 = scalar_lea.vmem [#allocation17], %s716
          %s719 = ssub.s32 16, 16
          %720 = vsyncadd %s715, %s719
          %s721 = smul.addr %s41, 16
          %s722 = scalar_lea.hbm %s12, %s721
          %s724 = sshll.u32 %s717, 4
          %s725 = int_to_ptr.vmem [resolvable:$true] %s724
          %727 = dma.hbm_to_vmem [thread:$0]  %s722, 16, %s725, %s715
        $region84: #{transformer_forward.1} parent=35 // pred_fallthru
          _
      $region36: #{transformer_forward.1} parent=5 // pred_fallthru
        _
      %p728 = scmp.le.s32.totalorder 1, %s41
      %p729 = scmp.lt.s32.totalorder %s41, 3
      %p730 = pnand %p728, %p729
      %p731 = pneg %p730
      // Predicated region
      $region85: #{transformer_forward.1} parent=5 // pred_check
        _
      $region86: #{transformer_forward.1} parent=5 // pred_check_branch
        %733 = sbr.rel (%p730) target = $region88
      $region87: #{transformer_forward.1} parent=5 // pred_region
        %s734 = ssub.s32 %s41, 1
        %s735 = sand.u32 %s101, 1
        %s736 = scalar_lea.sflag [#allocation4], %s735
        %s737 = sand.u32 %s101, 1
        %s738 = scalar_lea.vmem [#allocation3], %s737
        // Predicated region
        $region89: #{transformer_forward.1} parent=87 // pred_check
          %p739 = pneg %p114
        $region90: #{transformer_forward.1} parent=87 // pred_check_branch
          %741 = sbr.rel (%p739) target = $region92
        $region91: #{transformer_forward.1} parent=87 // pred_region
          %742 = dma.done %s736, 16
        $region92: #{transformer_forward.1} parent=87 // pred_fallthru
          _
        %s743 = sand.u32 %s46, 1
        %s744 = scalar_lea.sflag [#allocation7], %s743
        %s745 = sand.u32 %s153, 1
        %s746 = scalar_lea.vmem [#allocation6], %s745
        // Predicated region
        $region93: #{transformer_forward.1} parent=87 // pred_check
          %p747 = pneg %p166
        $region94: #{transformer_forward.1} parent=87 // pred_check_branch
          %749 = sbr.rel (%p747) target = $region96
        $region95: #{transformer_forward.1} parent=87 // pred_region
          %750 = dma.done %s744, 16
        $region96: #{transformer_forward.1} parent=87 // pred_fallthru
          _
        %s751 = sand.u32 %s46, 1
        %s752 = scalar_lea.sflag [#allocation7], %s751
        %s753 = sand.u32 %s179, 1
        %s754 = scalar_lea.vmem [#allocation8], %s753
        // Predicated region
        $region97: #{transformer_forward.1} parent=87 // pred_check
          %p755 = pneg %p192
        $region98: #{transformer_forward.1} parent=87 // pred_check_branch
          %757 = sbr.rel (%p755) target = $region100
        $region99: #{transformer_forward.1} parent=87 // pred_region
          %758 = dma.done %s752, 16
        $region100: #{transformer_forward.1} parent=87 // pred_fallthru
          _
        %s759 = sand.u32 %s46, 1
        %s760 = scalar_lea.sflag [#allocation10], %s759
        %s761 = sand.u32 %s205, 1
        %s762 = scalar_lea.vmem [#allocation9], %s761
        // Predicated region
        $region101: #{transformer_forward.1} parent=87 // pred_check
          %p763 = pneg %p218
        $region102: #{transformer_forward.1} parent=87 // pred_check_branch
          %765 = sbr.rel (%p763) target = $region104
        $region103: #{transformer_forward.1} parent=87 // pred_region
          %766 = dma.done %s760, 16
        $region104: #{transformer_forward.1} parent=87 // pred_fallthru
          _
        %s767 = sand.u32 %s46, 1
        %s768 = scalar_lea.sflag [#allocation10], %s767
        %s769 = sand.u32 %s257, 1
        %s770 = scalar_lea.vmem [#allocation11], %s769
        // Predicated region
        $region105: #{transformer_forward.1} parent=87 // pred_check
          %p771 = pneg %p270
        $region106: #{transformer_forward.1} parent=87 // pred_check_branch
          %773 = sbr.rel (%p771) target = $region108
        $region107: #{transformer_forward.1} parent=87 // pred_region
          %774 = dma.done %s768, 16
        $region108: #{transformer_forward.1} parent=87 // pred_fallthru
          _
        %s775 = sand.u32 %s46, 1
        %s776 = scalar_lea.sflag [#allocation13], %s775
        %s777 = sand.u32 %s283, 1
        %s778 = smul.addr %s777, 64
        %s779 = scalar_lea.vmem [#allocation12], %s778
        // Predicated region
        $region109: #{transformer_forward.1} parent=87 // pred_check
          %p780 = pneg %p296
        $region110: #{transformer_forward.1} parent=87 // pred_check_branch
          %782 = sbr.rel (%p780) target = $region112
        $region111: #{transformer_forward.1} parent=87 // pred_region
          %783 = dma.done %s776, 1024
        $region112: #{transformer_forward.1} parent=87 // pred_fallthru
          _
        %s784 = sand.u32 %s46, 1
        %s785 = scalar_lea.sflag [#allocation13], %s784
        %s786 = sand.u32 %s309, 1
        %s787 = scalar_lea.vmem [#allocation14], %s786
        // Predicated region
        $region113: #{transformer_forward.1} parent=87 // pred_check
          %p788 = pneg %p322
        $region114: #{transformer_forward.1} parent=87 // pred_check_branch
          %790 = sbr.rel (%p788) target = $region116
        $region115: #{transformer_forward.1} parent=87 // pred_region
          %791 = dma.done %s785, 16
        $region116: #{transformer_forward.1} parent=87 // pred_fallthru
          _
        %s792 = sand.u32 %s46, 1
        %s793 = scalar_lea.sflag [#allocation16], %s792
        %s794 = sand.u32 %s335, 1
        %s795 = scalar_lea.vmem [#allocation15], %s794
        // Predicated region
        $region117: #{transformer_forward.1} parent=87 // pred_check
          %p796 = pneg %p348
        $region118: #{transformer_forward.1} parent=87 // pred_check_branch
          %798 = sbr.rel (%p796) target = $region120
        $region119: #{transformer_forward.1} parent=87 // pred_region
          %799 = dma.done %s793, 16
        $region120: #{transformer_forward.1} parent=87 // pred_fallthru
          _
        %s800 = sand.u32 %s46, 1
        %s801 = scalar_lea.sflag [#allocation16], %s800
        %s802 = sand.u32 %s361, 1
        %s803 = scalar_lea.vmem [#allocation17], %s802
        // Predicated region
        $region121: #{transformer_forward.1} parent=87 // pred_check
          %p804 = pneg %p374
        $region122: #{transformer_forward.1} parent=87 // pred_check_branch
          %806 = sbr.rel (%p804) target = $region124
        $region123: #{transformer_forward.1} parent=87 // pred_region
          %807 = dma.done %s801, 16
        $region124: #{transformer_forward.1} parent=87 // pred_fallthru
          _
        // Predicated region
        $region125: #{transformer_forward.1} parent=87 // pred_check
          %p808 = pneg %p395
        $region126: #{transformer_forward.1} parent=87 // pred_check_branch
          %810 = sbr.rel (%p808) target = $region128
        $region127: #{transformer_forward.1} parent=87 // pred_region
          %811 = dma.done [#allocation19], 16
        $region128: #{transformer_forward.1} parent=87 // pred_fallthru
          _
        // Predicated region
        $region129: #{transformer_forward.1} parent=87 // pred_check
          %p812 = pneg %p416
        $region130: #{transformer_forward.1} parent=87 // pred_check_branch
          %814 = sbr.rel (%p812) target = $region132
        $region131: #{transformer_forward.1} parent=87 // pred_region
          %815 = dma.done [#allocation19], 16
        $region132: #{transformer_forward.1} parent=87 // pred_fallthru
          _
        // Predicated region
        $region133: #{transformer_forward.1} parent=87 // pred_check
          %p816 = pneg %p437
        $region134: #{transformer_forward.1} parent=87 // pred_check_branch
          %818 = sbr.rel (%p816) target = $region136
        $region135: #{transformer_forward.1} parent=87 // pred_region
          %819 = dma.done [#allocation22], 1024
        $region136: #{transformer_forward.1} parent=87 // pred_fallthru
          _
        // Predicated region
        $region137: #{transformer_forward.1} parent=87 // pred_check
          %p820 = pneg %p458
        $region138: #{transformer_forward.1} parent=87 // pred_check_branch
          %822 = sbr.rel (%p820) target = $region140
        $region139: #{transformer_forward.1} parent=87 // pred_region
          %823 = dma.done [#allocation22], 16
        $region140: #{transformer_forward.1} parent=87 // pred_fallthru
          _
        %p824 = pneg %p62
        %p825 = pneg %p59
        %p826 = scmp.lt.s32.totalorder %s46, 1
        %s827 = scalar_select %p826, %s46, 1
        %s828 = smul.addr %s827, 16
        %s829 = smul.addr %s828, 4
        %s830 = scalar_lea.vmem %s1, %s829
        %p831 = pneg %p88
        %p832 = pneg %p85
        %s833 = sand.u32 %s101, 1
        %s834 = scalar_lea.sflag [#allocation4], %s833
        %s835 = sand.u32 %s101, 1
        %s836 = scalar_lea.vmem [#allocation3], %s835
        %p837 = pneg %p114
        %p838 = pneg %p111
        %p839 = scmp.lt.s32.totalorder %s46, 1
        %s840 = scalar_select %p839, %s46, 1
        %s841 = smul.addr %s840, 4
        %s842 = smul.addr %s841, 4
        %s843 = scalar_lea.vmem %s3, %s842
        %p844 = pneg %p140
        %p845 = pneg %p137
        %s846 = sand.u32 %s46, 1
        %s847 = scalar_lea.sflag [#allocation7], %s846
        %s848 = sand.u32 %s153, 1
        %s849 = scalar_lea.vmem [#allocation6], %s848
        %p850 = pneg %p166
        %p851 = pneg %p163
        %s852 = sand.u32 %s46, 1
        %s853 = scalar_lea.sflag [#allocation7], %s852
        %s854 = sand.u32 %s179, 1
        %s855 = scalar_lea.vmem [#allocation8], %s854
        %p856 = pneg %p192
        %p857 = pneg %p189
        %s858 = sand.u32 %s46, 1
        %s859 = scalar_lea.sflag [#allocation10], %s858
        %s860 = sand.u32 %s205, 1
        %s861 = scalar_lea.vmem [#allocation9], %s860
        %p862 = pneg %p218
        %p863 = pneg %p215
        %p864 = scmp.lt.s32.totalorder %s46, 1
        %s865 = scalar_select %p864, %s46, 1
        %s866 = smul.addr %s865, 16
        %s867 = smul.addr %s866, 4
        %s868 = scalar_lea.vmem %s7, %s867
        %p869 = pneg %p244
        %p870 = pneg %p241
        %s871 = sand.u32 %s46, 1
        %s872 = scalar_lea.sflag [#allocation10], %s871
        %s873 = sand.u32 %s257, 1
        %s874 = scalar_lea.vmem [#allocation11], %s873
        %p875 = pneg %p270
        %p876 = pneg %p267
        %s877 = sand.u32 %s46, 1
        %s878 = scalar_lea.sflag [#allocation13], %s877
        %s879 = sand.u32 %s283, 1
        %s880 = smul.addr %s879, 64
        %s881 = scalar_lea.vmem [#allocation12], %s880
        %p882 = pneg %p296
        %p883 = pneg %p293
        %s884 = sand.u32 %s46, 1
        %s885 = scalar_lea.sflag [#allocation13], %s884
        %s886 = sand.u32 %s309, 1
        %s887 = scalar_lea.vmem [#allocation14], %s886
        %p888 = pneg %p322
        %p889 = pneg %p319
        %s890 = sand.u32 %s46, 1
        %s891 = scalar_lea.sflag [#allocation16], %s890
        %s892 = sand.u32 %s335, 1
        %s893 = scalar_lea.vmem [#allocation15], %s892
        %p894 = pneg %p348
        %p895 = pneg %p345
        %s896 = sand.u32 %s46, 1
        %s897 = scalar_lea.sflag [#allocation16], %s896
        %s898 = sand.u32 %s361, 1
        %s899 = scalar_lea.vmem [#allocation17], %s898
        %p900 = pneg %p374
        %p901 = pneg %p371
        %p902 = pneg %p395
        %p903 = pneg %p392
        %p904 = pneg %p416
        %p905 = pneg %p413
        %p906 = pneg %p437
        %p907 = pneg %p434
        %p908 = pneg %p458
        %p909 = pneg %p455
        %p910 = pneg %p479
        %p911 = pneg %p476
        %p912 = scmp.lt.s32.totalorder %s46, 1
        %s913 = scalar_select %p912, %s46, 1
        %s914 = smul.addr %s913, 16
        %s915 = smul.addr %s914, 4
        %s916 = scalar_lea.vmem %s1, %s915
        %p917 = scmp.lt.s32.totalorder %s46, 1
        %s918 = scalar_select %p917, %s46, 1
        %s919 = smul.addr %s918, 4
        %s920 = smul.addr %s919, 4
        %s921 = scalar_lea.vmem %s3, %s920
        %p922 = scmp.lt.s32.totalorder %s46, 1
        %s923 = scalar_select %p922, %s46, 1
        %s924 = smul.addr %s923, 16
        %s925 = smul.addr %s924, 4
        %s926 = scalar_lea.vmem %s7, %s925
        %p928 = scmp.eq.s32.totalorder %s46, 0
        // Predicated region
        $region141: #{transformer_forward.1} parent=87 // pred_check
          %p929 = pneg %p928
        $region142: #{transformer_forward.1} parent=87 // pred_check_branch
          %931 = sbr.rel (%p929) target = $region144
        $region143: #{transformer_forward.1} parent=87 // pred_region
          %v932 = vld [vmem:[%s0] sm:$0xff]
          %v933 = vld [vmem:[%s0 + $0x8] sm:$0xff]
          %934 = vst [vmem:[#allocation2] sm:$0xff] %v932
          %935 = vst [vmem:[#allocation2 + $0x8] sm:$0xff] %v933
        $region144: #{transformer_forward.1} parent=87 // pred_fallthru
          _
        %v936 = vld [vmem:[#allocation2] sm:$0xff]
        %v937 = vld [vmem:[#allocation2 + $0x8] sm:$0xff]
        %v938 = vpack.c.bf16 %v937, %v936
        %v939 = vld [vmem:[%s916] sm:$0xf]
        %v940 = vld [vmem:[%s916 + $0x4] sm:$0xf]
        %v941 = vld [vmem:[%s916 + $0x8] sm:$0xf]
        %v942 = vld [vmem:[%s916 + $0xc] sm:$0xf]
        %v943 = vld [vmem:[%s916 + $0x10] sm:$0xf]
        %v944 = vld [vmem:[%s916 + $0x14] sm:$0xf]
        %v945 = vld [vmem:[%s916 + $0x18] sm:$0xf]
        %v946 = vld [vmem:[%s916 + $0x1c] sm:$0xf]
        %v947 = vld [vmem:[%s916 + $0x20] sm:$0xf]
        %v948 = vld [vmem:[%s916 + $0x24] sm:$0xf]
        %v949 = vld [vmem:[%s916 + $0x28] sm:$0xf]
        %v950 = vld [vmem:[%s916 + $0x2c] sm:$0xf]
        %v951 = vld [vmem:[%s916 + $0x30] sm:$0xf]
        %v952 = vld [vmem:[%s916 + $0x34] sm:$0xf]
        %v953 = vld [vmem:[%s916 + $0x38] sm:$0xf]
        %v954 = vld [vmem:[%s916 + $0x3c] sm:$0xf]
        %v955 = vld [vmem:[%s738] sm:$0x1]
        %v957 = vlaneseq
        %v958 = vshrl.u32 %v957, 7
        %v959 = vsub.s32 0, %v958
        %v960 = vrot.slane %v955, %v959
        %v978 = vunpack.c.l.b16 %v939
        %v979 = vunpack.c.l.b16 %v940
        %v980 = vunpack.c.l.b16 %v941
        %v981 = vunpack.c.l.b16 %v942
        %v982 = vunpack.c.l.b16 %v943
        %v983 = vunpack.c.l.b16 %v944
        %v984 = vunpack.c.l.b16 %v945
        %v985 = vunpack.c.l.b16 %v946
        %v986 = vunpack.c.l.b16 %v947
        %v987 = vunpack.c.l.b16 %v948
        %v988 = vunpack.c.l.b16 %v949
        %v989 = vunpack.c.l.b16 %v950
        %v990 = vunpack.c.l.b16 %v951
        %v991 = vunpack.c.l.b16 %v952
        %v992 = vunpack.c.l.b16 %v953
        %v993 = vunpack.c.l.b16 %v954
        %v994 = vpack.c.b16 %v979, %v978
        %v995 = vpack.c.b16 %v981, %v980
        %v996 = vpack.c.b16 %v983, %v982
        %v997 = vpack.c.b16 %v985, %v984
        %v998 = vpack.c.b16 %v987, %v986
        %v999 = vpack.c.b16 %v989, %v988
        %v1000 = vpack.c.b16 %v991, %v990
        %v1001 = vpack.c.b16 %v993, %v992
        %1010 = vmatprep.subr.bf16.mxu0 0
        %1011 = vmatpush1.bf16.msra.mxu0 %v994
        %1012 = vmatprep.subr.bf16.mxu0 0
        %1013 = vmatpush1.bf16.msra.mxu0 %v995
        %1014 = vmatprep.subr.bf16.mxu0 0
        %1015 = vmatpush1.bf16.msra.mxu0 %v996
        %1016 = vmatprep.subr.bf16.mxu0 0
        %1017 = vmatpush1.bf16.msra.mxu0 %v997
        %1018 = vmatprep.subr.bf16.mxu0 0
        %1019 = vmatpush1.bf16.msra.mxu0 %v998
        %1020 = vmatprep.subr.bf16.mxu0 0
        %1021 = vmatpush1.bf16.msra.mxu0 %v999
        %1022 = vmatprep.subr.bf16.mxu0 0
        %1023 = vmatpush1.bf16.msra.mxu0 %v1000
        %1024 = vmatprep.subr.bf16.mxu0 0
        %1025 = vmatpush1.bf16.msra.mxu0 %v1001
        %1026 = vmatprep.subr.bf16.mxu0 0
        %1027 = vmatpush1.bf16.msra.mxu0 0
        %1028 = vmatprep.subr.bf16.mxu0 0
        %1029 = vmatpush1.bf16.msra.mxu0 0
        %1030 = vmatprep.subr.bf16.mxu0 0
        %1031 = vmatpush1.bf16.msra.mxu0 0
        %1032 = vmatprep.subr.bf16.mxu0 0
        %1033 = vmatpush1.bf16.msra.mxu0 0
        %1034 = vmatprep.subr.bf16.mxu0 0
        %1035 = vmatpush1.bf16.msra.mxu0 0
        %1036 = vmatprep.subr.bf16.mxu0 0
        %1037 = vmatpush1.bf16.msra.mxu0 0
        %1038 = vmatprep.subr.bf16.mxu0 0
        %1039 = vmatpush1.bf16.msra.mxu0 0
        %1040 = vmatprep.subr.bf16.mxu0 0
        %1041 = vmatpush1.bf16.msra.mxu0 0
        %1042 = vmatprep.mubr.bf16.mxu0 0
        %1043 = vmatmul.mubr.bf16.gmra.mrb[0].mxu0 %v938
        %v1044 = vpop.f32.mrb[0].mxu0
        %v1045 = vadd.f32 %v960, %v1044
        %v1046 = vpop.f32.mrb[0].mxu0
        %v1047 = vpop.f32.mrb[0].mxu0
        %v1048 = vadd.f32 %v960, %v1047
        %v1049 = vpop.f32.mrb[0].mxu0
        %1050 = vdwg.mxu0
        %1053 = vrot.lane.b32.xlu0 %v1045, 120
        %v1054 = vpop.permute.xlu0 %1053
        %1055 = vrot.lane.b32.xlu0 %v1048, 120
        %v1056 = vpop.permute.xlu0 %1055
        %1057 = vrot.lane.b32.xlu0 %v1045, 112
        %v1058 = vpop.permute.xlu0 %1057
        %1059 = vrot.lane.b32.xlu0 %v1048, 112
        %v1060 = vpop.permute.xlu0 %1059
        %1061 = vrot.lane.b32.xlu0 %v1045, 104
        %v1062 = vpop.permute.xlu0 %1061
        %1063 = vrot.lane.b32.xlu0 %v1048, 104
        %v1064 = vpop.permute.xlu0 %1063
        %1065 = vrot.lane.b32.xlu0 %v1045, 96
        %v1066 = vpop.permute.xlu0 %1065
        %1067 = vrot.lane.b32.xlu0 %v1048, 96
        %v1068 = vpop.permute.xlu0 %1067
        %vm1069 = vcmask 64512
        %v1070 = vsel %vm1069, %v1045, 0
        %v1072 = vsel %vm1069, %v1048, 0
        %v1074 = vsel %vm1069, %v1066, 0
        %v1076 = vsel %vm1069, %v1068, 0
        %1078 = vmatprep.subr.mxu0 0.0
        %1079 = vmatpush1.xpose.msra.mxu0 %v1074
        %1080 = vmatprep.subr.mxu0 0.0
        %1081 = vmatpush1.xpose.msra.mxu0 %v1076
        %1082 = vmatprep.subr.mxu0 0.0
        %1083 = vmatpush1.xpose.msra.mxu0 0.0
        %1084 = vmatprep.subr.mxu0 0.0
        %1085 = vmatpush1.xpose.msra.mxu0 0.0
        %1086 = vmatprep.subr.mxu0 0.0
        %1087 = vmatpush1.xpose.msra.mxu0 0.0
        %1088 = vmatprep.subr.mxu0 0.0
        %1089 = vmatpush1.xpose.msra.mxu0 0.0
        %1090 = vmatprep.subr.mxu0 0.0
        %1091 = vmatpush1.xpose.msra.mxu0 0.0
        %1092 = vmatprep.subr.mxu0 0.0
        %1093 = vmatpush1.xpose.msra.mxu0 0.0
        %1094 = vmatprep.subr.mxu0 0.0
        %1095 = vmatpush1.xpose.msra.mxu0 0.0
        %1096 = vmatprep.subr.mxu0 0.0
        %1097 = vmatpush1.xpose.msra.mxu0 0.0
        %1098 = vmatprep.subr.mxu0 0.0
        %1099 = vmatpush1.xpose.msra.mxu0 0.0
        %1100 = vmatprep.subr.mxu0 0.0
        %1101 = vmatpush1.xpose.msra.mxu0 0.0
        %1102 = vmatprep.subr.mxu0 0.0
        %1103 = vmatpush1.xpose.msra.mxu0 0.0
        %1104 = vmatprep.subr.mxu0 0.0
        %1105 = vmatpush1.xpose.msra.mxu0 0.0
        %1106 = vmatprep.subr.mxu0 0.0
        %1107 = vmatpush1.xpose.msra.mxu0 0.0
        %1108 = vmatprep.subr.mxu0 0.0
        %1109 = vmatpush1.xpose.msra.mxu0 0.0
        %1110 = vmatprep.subr.mxu0 0.0
        %1111 = vmatpush1.xpose.msra.mxu0 0.0
        %1112 = vmatprep.subr.mxu0 0.0
        %1113 = vmatpush1.xpose.msra.mxu0 0.0
        %1114 = vmatprep.subr.mxu0 0.0
        %1115 = vmatpush1.xpose.msra.mxu0 0.0
        %1116 = vmatprep.subr.mxu0 0.0
        %1117 = vmatpush1.xpose.msra.mxu0 0.0
        %1118 = vmatprep.subr.mxu0 0.0
        %1119 = vmatpush1.xpose.msra.mxu0 0.0
        %1120 = vmatprep.subr.mxu0 0.0
        %1121 = vmatpush1.xpose.msra.mxu0 0.0
        %1122 = vmatprep.subr.mxu0 0.0
        %1123 = vmatpush1.xpose.msra.mxu0 0.0
        %1124 = vmatprep.subr.mxu0 0.0
        %1125 = vmatpush1.xpose.msra.mxu0 0.0
        %1126 = vmatprep.subr.mxu0 0.0
        %1127 = vmatpush1.xpose.msra.mxu0 0.0
        %1128 = vmatprep.subr.mxu0 0.0
        %1129 = vmatpush1.xpose.msra.mxu0 0.0
        %1130 = vmatprep.subr.mxu0 0.0
        %1131 = vmatpush1.xpose.msra.mxu0 0.0
        %1132 = vmatprep.subr.mxu0 0.0
        %1133 = vmatpush1.xpose.msra.mxu0 0.0
        %1134 = vmatprep.subr.mxu0 0.0
        %1135 = vmatpush1.xpose.msra.mxu0 0.0
        %1136 = vmatprep.subr.mxu0 0.0
        %1137 = vmatpush1.xpose.msra.mxu0 0.0
        %1138 = vmatprep.subr.mxu0 0.0
        %1139 = vmatpush1.xpose.msra.mxu0 0.0
        %1140 = vmatprep.subr.mxu0 0.0
        %1141 = vmatpush1.xpose.msra.mxu0 0.0
        %1142 = vmatprep.mubr.f32.mxu0 0.0
        %1143 = vmatmul.mubr.f32.gmra.mrb[0].mxu0 %v1070
        %v1144 = vpop.f32.mrb[0].mxu0
        %v1145 = vadd.f32 0.0, %v1144
        %v1146 = vpop.f32.mrb[0].mxu0
        %1147 = vmatprep.mubr.f32.mxu0 0.0
        %1148 = vmatmul.mubr.f32.gmra.mrb[0].mxu0 %v1072
        %v1149 = vpop.f32.mrb[0].mxu0
        %v1150 = vadd.f32 0.0, %v1149
        %v1151 = vpop.f32.mrb[0].mxu0
        %1152 = vdwg.mxu0
        %1153 = vrot.lane.b32.xlu0 %v1054, 96
        %v1154 = vpop.permute.xlu0 %1153
        %1155 = vrot.lane.b32.xlu0 %v1056, 96
        %v1156 = vpop.permute.xlu0 %1155
        %v1157 = vsel %vm1069, %v1054, 0
        %v1159 = vsel %vm1069, %v1056, 0
        %v1161 = vsel %vm1069, %v1154, 0
        %v1163 = vsel %vm1069, %v1156, 0
        %1165 = vmatprep.subr.mxu0 0.0
        %1166 = vmatpush1.xpose.msra.mxu0 %v1161
        %1167 = vmatprep.subr.mxu0 0.0
        %1168 = vmatpush1.xpose.msra.mxu0 %v1163
        %1169 = vmatprep.subr.mxu0 0.0
        %1170 = vmatpush1.xpose.msra.mxu0 0.0
        %1171 = vmatprep.subr.mxu0 0.0
        %1172 = vmatpush1.xpose.msra.mxu0 0.0
        %1173 = vmatprep.subr.mxu0 0.0
        %1174 = vmatpush1.xpose.msra.mxu0 0.0
        %1175 = vmatprep.subr.mxu0 0.0
        %1176 = vmatpush1.xpose.msra.mxu0 0.0
        %1177 = vmatprep.subr.mxu0 0.0
        %1178 = vmatpush1.xpose.msra.mxu0 0.0
        %1179 = vmatprep.subr.mxu0 0.0
        %1180 = vmatpush1.xpose.msra.mxu0 0.0
        %1181 = vmatprep.subr.mxu0 0.0
        %1182 = vmatpush1.xpose.msra.mxu0 0.0
        %1183 = vmatprep.subr.mxu0 0.0
        %1184 = vmatpush1.xpose.msra.mxu0 0.0
        %1185 = vmatprep.subr.mxu0 0.0
        %1186 = vmatpush1.xpose.msra.mxu0 0.0
        %1187 = vmatprep.subr.mxu0 0.0
        %1188 = vmatpush1.xpose.msra.mxu0 0.0
        %1189 = vmatprep.subr.mxu0 0.0
        %1190 = vmatpush1.xpose.msra.mxu0 0.0
        %1191 = vmatprep.subr.mxu0 0.0
        %1192 = vmatpush1.xpose.msra.mxu0 0.0
        %1193 = vmatprep.subr.mxu0 0.0
        %1194 = vmatpush1.xpose.msra.mxu0 0.0
        %1195 = vmatprep.subr.mxu0 0.0
        %1196 = vmatpush1.xpose.msra.mxu0 0.0
        %1197 = vmatprep.subr.mxu0 0.0
        %1198 = vmatpush1.xpose.msra.mxu0 0.0
        %1199 = vmatprep.subr.mxu0 0.0
        %1200 = vmatpush1.xpose.msra.mxu0 0.0
        %1201 = vmatprep.subr.mxu0 0.0
        %1202 = vmatpush1.xpose.msra.mxu0 0.0
        %1203 = vmatprep.subr.mxu0 0.0
        %1204 = vmatpush1.xpose.msra.mxu0 0.0
        %1205 = vmatprep.subr.mxu0 0.0
        %1206 = vmatpush1.xpose.msra.mxu0 0.0
        %1207 = vmatprep.subr.mxu0 0.0
        %1208 = vmatpush1.xpose.msra.mxu0 0.0
        %1209 = vmatprep.subr.mxu0 0.0
        %1210 = vmatpush1.xpose.msra.mxu0 0.0
        %1211 = vmatprep.subr.mxu0 0.0
        %1212 = vmatpush1.xpose.msra.mxu0 0.0
        %1213 = vmatprep.subr.mxu0 0.0
        %1214 = vmatpush1.xpose.msra.mxu0 0.0
        %1215 = vmatprep.subr.mxu0 0.0
        %1216 = vmatpush1.xpose.msra.mxu0 0.0
        %1217 = vmatprep.subr.mxu0 0.0
        %1218 = vmatpush1.xpose.msra.mxu0 0.0
        %1219 = vmatprep.subr.mxu0 0.0
        %1220 = vmatpush1.xpose.msra.mxu0 0.0
        %1221 = vmatprep.subr.mxu0 0.0
        %1222 = vmatpush1.xpose.msra.mxu0 0.0
        %1223 = vmatprep.subr.mxu0 0.0
        %1224 = vmatpush1.xpose.msra.mxu0 0.0
        %1225 = vmatprep.subr.mxu0 0.0
        %1226 = vmatpush1.xpose.msra.mxu0 0.0
        %1227 = vmatprep.subr.mxu0 0.0
        %1228 = vmatpush1.xpose.msra.mxu0 0.0
        %1229 = vmatprep.mubr.f32.mxu0 0.0
        %1230 = vmatmul.mubr.f32.gmra.mrb[0].mxu0 %v1157
        %v1231 = vpop.f32.mrb[0].mxu0
        %v1232 = vadd.f32 0.0, %v1231
        %v1233 = vpop.f32.mrb[0].mxu0
        %1234 = vmatprep.mubr.f32.mxu0 0.0
        %1235 = vmatmul.mubr.f32.gmra.mrb[0].mxu0 %v1159
        %v1236 = vpop.f32.mrb[0].mxu0
        %v1237 = vadd.f32 0.0, %v1236
        %v1238 = vpop.f32.mrb[0].mxu0
        %1239 = vdwg.mxu0
        %1240 = vrot.lane.b32.xlu0 %v1058, 96
        %v1241 = vpop.permute.xlu0 %1240
        %1242 = vrot.lane.b32.xlu0 %v1060, 96
        %v1243 = vpop.permute.xlu0 %1242
        %v1244 = vsel %vm1069, %v1058, 0
        %v1246 = vsel %vm1069, %v1060, 0
        %v1248 = vsel %vm1069, %v1241, 0
        %v1250 = vsel %vm1069, %v1243, 0
        %1252 = vmatprep.subr.mxu0 0.0
        %1253 = vmatpush1.xpose.msra.mxu0 %v1248
        %1254 = vmatprep.subr.mxu0 0.0
        %1255 = vmatpush1.xpose.msra.mxu0 %v1250
        %1256 = vmatprep.subr.mxu0 0.0
        %1257 = vmatpush1.xpose.msra.mxu0 0.0
        %1258 = vmatprep.subr.mxu0 0.0
        %1259 = vmatpush1.xpose.msra.mxu0 0.0
        %1260 = vmatprep.subr.mxu0 0.0
        %1261 = vmatpush1.xpose.msra.mxu0 0.0
        %1262 = vmatprep.subr.mxu0 0.0
        %1263 = vmatpush1.xpose.msra.mxu0 0.0
        %1264 = vmatprep.subr.mxu0 0.0
        %1265 = vmatpush1.xpose.msra.mxu0 0.0
        %1266 = vmatprep.subr.mxu0 0.0
        %1267 = vmatpush1.xpose.msra.mxu0 0.0
        %1268 = vmatprep.subr.mxu0 0.0
        %1269 = vmatpush1.xpose.msra.mxu0 0.0
        %1270 = vmatprep.subr.mxu0 0.0
        %1271 = vmatpush1.xpose.msra.mxu0 0.0
        %1272 = vmatprep.subr.mxu0 0.0
        %1273 = vmatpush1.xpose.msra.mxu0 0.0
        %1274 = vmatprep.subr.mxu0 0.0
        %1275 = vmatpush1.xpose.msra.mxu0 0.0
        %1276 = vmatprep.subr.mxu0 0.0
        %1277 = vmatpush1.xpose.msra.mxu0 0.0
        %1278 = vmatprep.subr.mxu0 0.0
        %1279 = vmatpush1.xpose.msra.mxu0 0.0
        %1280 = vmatprep.subr.mxu0 0.0
        %1281 = vmatpush1.xpose.msra.mxu0 0.0
        %1282 = vmatprep.subr.mxu0 0.0
        %1283 = vmatpush1.xpose.msra.mxu0 0.0
        %1284 = vmatprep.subr.mxu0 0.0
        %1285 = vmatpush1.xpose.msra.mxu0 0.0
        %1286 = vmatprep.subr.mxu0 0.0
        %1287 = vmatpush1.xpose.msra.mxu0 0.0
        %1288 = vmatprep.subr.mxu0 0.0
        %1289 = vmatpush1.xpose.msra.mxu0 0.0
        %1290 = vmatprep.subr.mxu0 0.0
        %1291 = vmatpush1.xpose.msra.mxu0 0.0
        %1292 = vmatprep.subr.mxu0 0.0
        %1293 = vmatpush1.xpose.msra.mxu0 0.0
        %1294 = vmatprep.subr.mxu0 0.0
        %1295 = vmatpush1.xpose.msra.mxu0 0.0
        %1296 = vmatprep.subr.mxu0 0.0
        %1297 = vmatpush1.xpose.msra.mxu0 0.0
        %1298 = vmatprep.subr.mxu0 0.0
        %1299 = vmatpush1.xpose.msra.mxu0 0.0
        %1300 = vmatprep.subr.mxu0 0.0
        %1301 = vmatpush1.xpose.msra.mxu0 0.0
        %1302 = vmatprep.subr.mxu0 0.0
        %1303 = vmatpush1.xpose.msra.mxu0 0.0
        %1304 = vmatprep.subr.mxu0 0.0
        %1305 = vmatpush1.xpose.msra.mxu0 0.0
        %1306 = vmatprep.subr.mxu0 0.0
        %1307 = vmatpush1.xpose.msra.mxu0 0.0
        %1308 = vmatprep.subr.mxu0 0.0
        %1309 = vmatpush1.xpose.msra.mxu0 0.0
        %1310 = vmatprep.subr.mxu0 0.0
        %1311 = vmatpush1.xpose.msra.mxu0 0.0
        %1312 = vmatprep.subr.mxu0 0.0
        %1313 = vmatpush1.xpose.msra.mxu0 0.0
        %1314 = vmatprep.subr.mxu0 0.0
        %1315 = vmatpush1.xpose.msra.mxu0 0.0
        %1316 = vmatprep.mubr.f32.mxu0 0.0
        %1317 = vmatmul.mubr.f32.gmra.mrb[0].mxu0 %v1244
        %v1318 = vpop.f32.mrb[0].mxu0
        %v1319 = vadd.f32 0.0, %v1318
        %v1320 = vpop.f32.mrb[0].mxu0
        %1321 = vmatprep.mubr.f32.mxu0 0.0
        %1322 = vmatmul.mubr.f32.gmra.mrb[0].mxu0 %v1246
        %v1323 = vpop.f32.mrb[0].mxu0
        %v1324 = vadd.f32 0.0, %v1323
        %v1325 = vpop.f32.mrb[0].mxu0
        %1326 = vdwg.mxu0
        %1327 = vrot.lane.b32.xlu0 %v1062, 96
        %v1328 = vpop.permute.xlu0 %1327
        %1329 = vrot.lane.b32.xlu0 %v1064, 96
        %v1330 = vpop.permute.xlu0 %1329
        %v1331 = vsel %vm1069, %v1062, 0
        %v1333 = vsel %vm1069, %v1064, 0
        %v1335 = vsel %vm1069, %v1328, 0
        %v1337 = vsel %vm1069, %v1330, 0
        %1339 = vmatprep.subr.mxu0 0.0
        %1340 = vmatpush1.xpose.msra.mxu0 %v1335
        %1341 = vmatprep.subr.mxu0 0.0
        %1342 = vmatpush1.xpose.msra.mxu0 %v1337
        %1343 = vmatprep.subr.mxu0 0.0
        %1344 = vmatpush1.xpose.msra.mxu0 0.0
        %1345 = vmatprep.subr.mxu0 0.0
        %1346 = vmatpush1.xpose.msra.mxu0 0.0
        %1347 = vmatprep.subr.mxu0 0.0
        %1348 = vmatpush1.xpose.msra.mxu0 0.0
        %1349 = vmatprep.subr.mxu0 0.0
        %1350 = vmatpush1.xpose.msra.mxu0 0.0
        %1351 = vmatprep.subr.mxu0 0.0
        %1352 = vmatpush1.xpose.msra.mxu0 0.0
        %1353 = vmatprep.subr.mxu0 0.0
        %1354 = vmatpush1.xpose.msra.mxu0 0.0
        %1355 = vmatprep.subr.mxu0 0.0
        %1356 = vmatpush1.xpose.msra.mxu0 0.0
        %1357 = vmatprep.subr.mxu0 0.0
        %1358 = vmatpush1.xpose.msra.mxu0 0.0
        %1359 = vmatprep.subr.mxu0 0.0
        %1360 = vmatpush1.xpose.msra.mxu0 0.0
        %1361 = vmatprep.subr.mxu0 0.0
        %1362 = vmatpush1.xpose.msra.mxu0 0.0
        %1363 = vmatprep.subr.mxu0 0.0
        %1364 = vmatpush1.xpose.msra.mxu0 0.0
        %1365 = vmatprep.subr.mxu0 0.0
        %1366 = vmatpush1.xpose.msra.mxu0 0.0
        %1367 = vmatprep.subr.mxu0 0.0
        %1368 = vmatpush1.xpose.msra.mxu0 0.0
        %1369 = vmatprep.subr.mxu0 0.0
        %1370 = vmatpush1.xpose.msra.mxu0 0.0
        %1371 = vmatprep.subr.mxu0 0.0
        %1372 = vmatpush1.xpose.msra.mxu0 0.0
        %1373 = vmatprep.subr.mxu0 0.0
        %1374 = vmatpush1.xpose.msra.mxu0 0.0
        %1375 = vmatprep.subr.mxu0 0.0
        %1376 = vmatpush1.xpose.msra.mxu0 0.0
        %1377 = vmatprep.subr.mxu0 0.0
        %1378 = vmatpush1.xpose.msra.mxu0 0.0
        %1379 = vmatprep.subr.mxu0 0.0
        %1380 = vmatpush1.xpose.msra.mxu0 0.0
        %1381 = vmatprep.subr.mxu0 0.0
        %1382 = vmatpush1.xpose.msra.mxu0 0.0
        %1383 = vmatprep.subr.mxu0 0.0
        %1384 = vmatpush1.xpose.msra.mxu0 0.0
        %1385 = vmatprep.subr.mxu0 0.0
        %1386 = vmatpush1.xpose.msra.mxu0 0.0
        %1387 = vmatprep.subr.mxu0 0.0
        %1388 = vmatpush1.xpose.msra.mxu0 0.0
        %1389 = vmatprep.subr.mxu0 0.0
        %1390 = vmatpush1.xpose.msra.mxu0 0.0
        %1391 = vmatprep.subr.mxu0 0.0
        %1392 = vmatpush1.xpose.msra.mxu0 0.0
        %1393 = vmatprep.subr.mxu0 0.0
        %1394 = vmatpush1.xpose.msra.mxu0 0.0
        %1395 = vmatprep.subr.mxu0 0.0
        %1396 = vmatpush1.xpose.msra.mxu0 0.0
        %1397 = vmatprep.subr.mxu0 0.0
        %1398 = vmatpush1.xpose.msra.mxu0 0.0
        %1399 = vmatprep.subr.mxu0 0.0
        %1400 = vmatpush1.xpose.msra.mxu0 0.0
        %1401 = vmatprep.subr.mxu0 0.0
        %1402 = vmatpush1.xpose.msra.mxu0 0.0
        %1403 = vmatprep.mubr.f32.mxu0 0.0
        %1404 = vmatmul.mubr.f32.gmra.mrb[0].mxu0 %v1331
        %v1405 = vpop.f32.mrb[0].mxu0
        %v1406 = vadd.f32 0.0, %v1405
        %v1407 = vpop.f32.mrb[0].mxu0
        %1408 = vmatprep.mubr.f32.mxu0 0.0
        %1409 = vmatmul.mubr.f32.gmra.mrb[0].mxu0 %v1333
        %v1410 = vpop.f32.mrb[0].mxu0
        %v1411 = vadd.f32 0.0, %v1410
        %v1412 = vpop.f32.mrb[0].mxu0
        %1413 = vdwg.mxu0
        %v1414 = vlaneseq
        %v1415 = vshrl.u32 %v1414, 7
        %v1416 = vadd.s32 %v1415, 8
        %v1417 = vlaneseq
        %v1418 = vand.u32 %v1417, 127
        %v1419 = vshra.s32 %v1415, 3
        %v1420 = vshra.s32 %v1416, 3
        %v1421 = vshra.s32 %v1418, 3
        %vm1422 = vcmp.eq.s32.totalorder %v1419, %v1421
        %vm1423 = vcmp.eq.s32.totalorder %v1420, %v1421
        %vm1424 = vcmp.le.s32.totalorder %v1418, %v1415
        %vm1425 = vcmp.le.s32.totalorder %v1418, %v1416
        %vm1426 = vmand %vm1424, %vm1422
        %vm1427 = vmand %vm1425, %vm1423
        %v1428 = vsel %vm1426, 1, 0
        %v1429 = vsel %vm1427, 1, 0
        %vm1430 = vcmp.eq.s32.totalorder %v1428, 1
        %vm1431 = vcmp.eq.s32.totalorder %v1429, 1
        %v1432 = vsel %vm1430, %v1145, -inf
        %v1433 = vsel %vm1431, %v1150, -inf
        %v1434 = vsel %vm1430, %v1232, -inf
        %v1435 = vsel %vm1431, %v1237, -inf
        %v1436 = vsel %vm1430, %v1319, -inf
        %v1437 = vsel %vm1431, %v1324, -inf
        %v1438 = vsel %vm1430, %v1406, -inf
        %v1439 = vsel %vm1431, %v1411, -inf
        %vm1440 = vcmask 130048
        %v1441 = vsel %vm1440, %v1432, -inf
        %1442 = vmax.xlane.f32.xlu0 %v1441
        %v1443 = vpop.xlane.xlu0 %1442
        %v1444 = vsel %vm1440, %v1433, -inf
        %1445 = vmax.xlane.f32.xlu0 %v1444
        %v1446 = vpop.xlane.xlu0 %1445
        %v1447 = vsel %vm1440, %v1434, -inf
        %1448 = vmax.xlane.f32.xlu0 %v1447
        %v1449 = vpop.xlane.xlu0 %1448
        %v1450 = vsel %vm1440, %v1435, -inf
        %1451 = vmax.xlane.f32.xlu0 %v1450
        %v1452 = vpop.xlane.xlu0 %1451
        %v1453 = vsel %vm1440, %v1436, -inf
        %1454 = vmax.xlane.f32.xlu0 %v1453
        %v1455 = vpop.xlane.xlu0 %1454
        %v1456 = vsel %vm1440, %v1437, -inf
        %1457 = vmax.xlane.f32.xlu0 %v1456
        %v1458 = vpop.xlane.xlu0 %1457
        %v1459 = vsel %vm1440, %v1438, -inf
        %1460 = vmax.xlane.f32.xlu0 %v1459
        %v1461 = vpop.xlane.xlu0 %1460
        %v1462 = vsel %vm1440, %v1439, -inf
        %1463 = vmax.xlane.f32.xlu0 %v1462
        %v1464 = vpop.xlane.xlu0 %1463
        %v1465 = vsub.f32 %v1432, %v1443
        %v1466 = vsub.f32 %v1433, %v1446
        %v1467 = vsub.f32 %v1434, %v1449
        %v1468 = vsub.f32 %v1435, %v1452
        %v1469 = vsub.f32 %v1436, %v1455
        %v1470 = vsub.f32 %v1437, %v1458
        %v1471 = vsub.f32 %v1438, %v1461
        %v1472 = vsub.f32 %v1439, %v1464
        %v1473 = vmul.f32 %v1465, 1.442695
        %v1474 = vpow.pop %v1473
        %v1475 = vmul.f32 %v1466, 1.442695
        %v1476 = vpow.pop %v1475
        %v1477 = vmul.f32 %v1467, 1.442695
        %v1478 = vpow.pop %v1477
        %v1479 = vmul.f32 %v1468, 1.442695
        %v1480 = vpow.pop %v1479
        %v1481 = vmul.f32 %v1469, 1.442695
        %v1482 = vpow.pop %v1481
        %v1483 = vmul.f32 %v1470, 1.442695
        %v1484 = vpow.pop %v1483
        %v1485 = vmul.f32 %v1471, 1.442695
        %v1486 = vpow.pop %v1485
        %v1487 = vmul.f32 %v1472, 1.442695
        %v1488 = vpow.pop %v1487
        %v1489 = vsel %vm1440, %v1474, 0.0
        %1490 = vadd.xlane.f32.xlu0 %v1489
        %v1491 = vpop.xlane.xlu0 %1490
        %v1492 = vsel %vm1440, %v1476, 0.0
        %1493 = vadd.xlane.f32.xlu0 %v1492
        %v1494 = vpop.xlane.xlu0 %1493
        %v1495 = vsel %vm1440, %v1478, 0.0
        %1496 = vadd.xlane.f32.xlu0 %v1495
        %v1497 = vpop.xlane.xlu0 %1496
        %v1498 = vsel %vm1440, %v1480, 0.0
        %1499 = vadd.xlane.f32.xlu0 %v1498
        %v1500 = vpop.xlane.xlu0 %1499
        %v1501 = vsel %vm1440, %v1482, 0.0
        %1502 = vadd.xlane.f32.xlu0 %v1501
        %v1503 = vpop.xlane.xlu0 %1502
        %v1504 = vsel %vm1440, %v1484, 0.0
        %1505 = vadd.xlane.f32.xlu0 %v1504
        %v1506 = vpop.xlane.xlu0 %1505
        %v1507 = vsel %vm1440, %v1486, 0.0
        %1508 = vadd.xlane.f32.xlu0 %v1507
        %v1509 = vpop.xlane.xlu0 %1508
        %v1510 = vsel %vm1440, %v1488, 0.0
        %1511 = vadd.xlane.f32.xlu0 %v1510
        %v1512 = vpop.xlane.xlu0 %1511
        %v1513 = vrcp.pop %v1491
        %v1514 = vrcp.pop %v1494
        %v1515 = vrcp.pop %v1497
        %v1516 = vrcp.pop %v1500
        %v1517 = vrcp.pop %v1503
        %v1518 = vrcp.pop %v1506
        %v1519 = vrcp.pop %v1509
        %v1520 = vrcp.pop %v1512
        %v1521 = vmul.f32 %v1474, %v1513
        %v1522 = vmul.f32 %v1476, %v1514
        %v1523 = vmul.f32 %v1478, %v1515
        %v1524 = vmul.f32 %v1480, %v1516
        %v1525 = vmul.f32 %v1482, %v1517
        %v1526 = vmul.f32 %v1484, %v1518
        %v1527 = vmul.f32 %v1486, %v1519
        %v1528 = vmul.f32 %v1488, %v1520
        %1529 = vrot.lane.b32.xlu0 %v1045, 64
        %v1530 = vpop.permute.xlu0 %1529
        %1531 = vrot.lane.b32.xlu0 %v1048, 64
        %v1532 = vpop.permute.xlu0 %1531
        %v1536 = vsel %vm1440, %v1521, 0
        %v1539 = vsel %vm1440, %v1522, 0
        %1541 = vmatprep.subr.mxu0 0.0
        %1542 = vmatpush1.msra.mxu0 %v1530
        %1543 = vmatprep.subr.mxu0 0.0
        %1544 = vmatpush1.msra.mxu0 %v1532
        %1545 = vmatprep.subr.mxu0 0.0
        %1546 = vmatpush1.msra.mxu0 0.0
        %1547 = vmatprep.subr.mxu0 0.0
        %1548 = vmatpush1.msra.mxu0 0.0
        %1549 = vmatprep.subr.mxu0 0.0
        %1550 = vmatpush1.msra.mxu0 0.0
        %1551 = vmatprep.subr.mxu0 0.0
        %1552 = vmatpush1.msra.mxu0 0.0
        %1553 = vmatprep.subr.mxu0 0.0
        %1554 = vmatpush1.msra.mxu0 0.0
        %1555 = vmatprep.subr.mxu0 0.0
        %1556 = vmatpush1.msra.mxu0 0.0
        %1557 = vmatprep.subr.mxu0 0.0
        %1558 = vmatpush1.msra.mxu0 0.0
        %1559 = vmatprep.subr.mxu0 0.0
        %1560 = vmatpush1.msra.mxu0 0.0
        %1561 = vmatprep.subr.mxu0 0.0
        %1562 = vmatpush1.msra.mxu0 0.0
        %1563 = vmatprep.subr.mxu0 0.0
        %1564 = vmatpush1.msra.mxu0 0.0
        %1565 = vmatprep.subr.mxu0 0.0
        %1566 = vmatpush1.msra.mxu0 0.0
        %1567 = vmatprep.subr.mxu0 0.0
        %1568 = vmatpush1.msra.mxu0 0.0
        %1569 = vmatprep.subr.mxu0 0.0
        %1570 = vmatpush1.msra.mxu0 0.0
        %1571 = vmatprep.subr.mxu0 0.0
        %1572 = vmatpush1.msra.mxu0 0.0
        %1573 = vmatprep.subr.mxu0 0.0
        %1574 = vmatpush1.msra.mxu0 0.0
        %1575 = vmatprep.subr.mxu0 0.0
        %1576 = vmatpush1.msra.mxu0 0.0
        %1577 = vmatprep.subr.mxu0 0.0
        %1578 = vmatpush1.msra.mxu0 0.0
        %1579 = vmatprep.subr.mxu0 0.0
        %1580 = vmatpush1.msra.mxu0 0.0
        %1581 = vmatprep.subr.mxu0 0.0
        %1582 = vmatpush1.msra.mxu0 0.0
        %1583 = vmatprep.subr.mxu0 0.0
        %1584 = vmatpush1.msra.mxu0 0.0
        %1585 = vmatprep.subr.mxu0 0.0
        %1586 = vmatpush1.msra.mxu0 0.0
        %1587 = vmatprep.subr.mxu0 0.0
        %1588 = vmatpush1.msra.mxu0 0.0
        %1589 = vmatprep.subr.mxu0 0.0
        %1590 = vmatpush1.msra.mxu0 0.0
        %1591 = vmatprep.subr.mxu0 0.0
        %1592 = vmatpush1.msra.mxu0 0.0
        %1593 = vmatprep.subr.mxu0 0.0
        %1594 = vmatpush1.msra.mxu0 0.0
        %1595 = vmatprep.subr.mxu0 0.0
        %1596 = vmatpush1.msra.mxu0 0.0
        %1597 = vmatprep.subr.mxu0 0.0
        %1598 = vmatpush1.msra.mxu0 0.0
        %1599 = vmatprep.subr.mxu0 0.0
        %1600 = vmatpush1.msra.mxu0 0.0
        %1601 = vmatprep.subr.mxu0 0.0
        %1602 = vmatpush1.msra.mxu0 0.0
        %1603 = vmatprep.subr.mxu0 0.0
        %1604 = vmatpush1.msra.mxu0 0.0
        %1605 = vmatprep.mubr.f32.mxu0 0.0
        %1606 = vmatmul.mubr.f32.gmra.mrb[0].mxu0 %v1536
        %v1607 = vpop.f32.mrb[0].mxu0
        %v1608 = vadd.f32 0.0, %v1607
        %v1609 = vpop.f32.mrb[0].mxu0
        %1610 = vmatprep.mubr.f32.mxu0 0.0
        %1611 = vmatmul.mubr.f32.gmra.mrb[0].mxu0 %v1539
        %v1612 = vpop.f32.mrb[0].mxu0
        %v1613 = vadd.f32 0.0, %v1612
        %v1614 = vpop.f32.mrb[0].mxu0
        %1615 = vdwg.mxu0
        %1616 = vrot.lane.b32.xlu0 %v1054, 64
        %v1617 = vpop.permute.xlu0 %1616
        %1618 = vrot.lane.b32.xlu0 %v1056, 64
        %v1619 = vpop.permute.xlu0 %1618
        %v1623 = vsel %vm1440, %v1523, 0
        %v1626 = vsel %vm1440, %v1524, 0
        %1628 = vmatprep.subr.mxu0 0.0
        %1629 = vmatpush1.msra.mxu0 %v1617
        %1630 = vmatprep.subr.mxu0 0.0
        %1631 = vmatpush1.msra.mxu0 %v1619
        %1632 = vmatprep.subr.mxu0 0.0
        %1633 = vmatpush1.msra.mxu0 0.0
        %1634 = vmatprep.subr.mxu0 0.0
        %1635 = vmatpush1.msra.mxu0 0.0
        %1636 = vmatprep.subr.mxu0 0.0
        %1637 = vmatpush1.msra.mxu0 0.0
        %1638 = vmatprep.subr.mxu0 0.0
        %1639 = vmatpush1.msra.mxu0 0.0
        %1640 = vmatprep.subr.mxu0 0.0
        %1641 = vmatpush1.msra.mxu0 0.0
        %1642 = vmatprep.subr.mxu0 0.0
        %1643 = vmatpush1.msra.mxu0 0.0
        %1644 = vmatprep.subr.mxu0 0.0
        %1645 = vmatpush1.msra.mxu0 0.0
        %1646 = vmatprep.subr.mxu0 0.0
        %1647 = vmatpush1.msra.mxu0 0.0
        %1648 = vmatprep.subr.mxu0 0.0
        %1649 = vmatpush1.msra.mxu0 0.0
        %1650 = vmatprep.subr.mxu0 0.0
        %1651 = vmatpush1.msra.mxu0 0.0
        %1652 = vmatprep.subr.mxu0 0.0
        %1653 = vmatpush1.msra.mxu0 0.0
        %1654 = vmatprep.subr.mxu0 0.0
        %1655 = vmatpush1.msra.mxu0 0.0
        %1656 = vmatprep.subr.mxu0 0.0
        %1657 = vmatpush1.msra.mxu0 0.0
        %1658 = vmatprep.subr.mxu0 0.0
        %1659 = vmatpush1.msra.mxu0 0.0
        %1660 = vmatprep.subr.mxu0 0.0
        %1661 = vmatpush1.msra.mxu0 0.0
        %1662 = vmatprep.subr.mxu0 0.0
        %1663 = vmatpush1.msra.mxu0 0.0
        %1664 = vmatprep.subr.mxu0 0.0
        %1665 = vmatpush1.msra.mxu0 0.0
        %1666 = vmatprep.subr.mxu0 0.0
        %1667 = vmatpush1.msra.mxu0 0.0
        %1668 = vmatprep.subr.mxu0 0.0
        %1669 = vmatpush1.msra.mxu0 0.0
        %1670 = vmatprep.subr.mxu0 0.0
        %1671 = vmatpush1.msra.mxu0 0.0
        %1672 = vmatprep.subr.mxu0 0.0
        %1673 = vmatpush1.msra.mxu0 0.0
        %1674 = vmatprep.subr.mxu0 0.0
        %1675 = vmatpush1.msra.mxu0 0.0
        %1676 = vmatprep.subr.mxu0 0.0
        %1677 = vmatpush1.msra.mxu0 0.0
        %1678 = vmatprep.subr.mxu0 0.0
        %1679 = vmatpush1.msra.mxu0 0.0
        %1680 = vmatprep.subr.mxu0 0.0
        %1681 = vmatpush1.msra.mxu0 0.0
        %1682 = vmatprep.subr.mxu0 0.0
        %1683 = vmatpush1.msra.mxu0 0.0
        %1684 = vmatprep.subr.mxu0 0.0
        %1685 = vmatpush1.msra.mxu0 0.0
        %1686 = vmatprep.subr.mxu0 0.0
        %1687 = vmatpush1.msra.mxu0 0.0
        %1688 = vmatprep.subr.mxu0 0.0
        %1689 = vmatpush1.msra.mxu0 0.0
        %1690 = vmatprep.subr.mxu0 0.0
        %1691 = vmatpush1.msra.mxu0 0.0
        %1692 = vmatprep.mubr.f32.mxu0 0.0
        %1693 = vmatmul.mubr.f32.gmra.mrb[0].mxu0 %v1623
        %v1694 = vpop.f32.mrb[0].mxu0
        %v1695 = vadd.f32 0.0, %v1694
        %v1696 = vpop.f32.mrb[0].mxu0
        %1697 = vmatprep.mubr.f32.mxu0 0.0
        %1698 = vmatmul.mubr.f32.gmra.mrb[0].mxu0 %v1626
        %v1699 = vpop.f32.mrb[0].mxu0
        %v1700 = vadd.f32 0.0, %v1699
        %v1701 = vpop.f32.mrb[0].mxu0
        %1702 = vdwg.mxu0
        %1703 = vrot.lane.b32.xlu0 %v1058, 64
        %v1704 = vpop.permute.xlu0 %1703
        %1705 = vrot.lane.b32.xlu0 %v1060, 64
        %v1706 = vpop.permute.xlu0 %1705
        %v1710 = vsel %vm1440, %v1525, 0
        %v1713 = vsel %vm1440, %v1526, 0
        %1715 = vmatprep.subr.mxu0 0.0
        %1716 = vmatpush1.msra.mxu0 %v1704
        %1717 = vmatprep.subr.mxu0 0.0
        %1718 = vmatpush1.msra.mxu0 %v1706
        %1719 = vmatprep.subr.mxu0 0.0
        %1720 = vmatpush1.msra.mxu0 0.0
        %1721 = vmatprep.subr.mxu0 0.0
        %1722 = vmatpush1.msra.mxu0 0.0
        %1723 = vmatprep.subr.mxu0 0.0
        %1724 = vmatpush1.msra.mxu0 0.0
        %1725 = vmatprep.subr.mxu0 0.0
        %1726 = vmatpush1.msra.mxu0 0.0
        %1727 = vmatprep.subr.mxu0 0.0
        %1728 = vmatpush1.msra.mxu0 0.0
        %1729 = vmatprep.subr.mxu0 0.0
        %1730 = vmatpush1.msra.mxu0 0.0
        %1731 = vmatprep.subr.mxu0 0.0
        %1732 = vmatpush1.msra.mxu0 0.0
        %1733 = vmatprep.subr.mxu0 0.0
        %1734 = vmatpush1.msra.mxu0 0.0
        %1735 = vmatprep.subr.mxu0 0.0
        %1736 = vmatpush1.msra.mxu0 0.0
        %1737 = vmatprep.subr.mxu0 0.0
        %1738 = vmatpush1.msra.mxu0 0.0
        %1739 = vmatprep.subr.mxu0 0.0
        %1740 = vmatpush1.msra.mxu0 0.0
        %1741 = vmatprep.subr.mxu0 0.0
        %1742 = vmatpush1.msra.mxu0 0.0
        %1743 = vmatprep.subr.mxu0 0.0
        %1744 = vmatpush1.msra.mxu0 0.0
        %1745 = vmatprep.subr.mxu0 0.0
        %1746 = vmatpush1.msra.mxu0 0.0
        %1747 = vmatprep.subr.mxu0 0.0
        %1748 = vmatpush1.msra.mxu0 0.0
        %1749 = vmatprep.subr.mxu0 0.0
        %1750 = vmatpush1.msra.mxu0 0.0
        %1751 = vmatprep.subr.mxu0 0.0
        %1752 = vmatpush1.msra.mxu0 0.0
        %1753 = vmatprep.subr.mxu0 0.0
        %1754 = vmatpush1.msra.mxu0 0.0
        %1755 = vmatprep.subr.mxu0 0.0
        %1756 = vmatpush1.msra.mxu0 0.0
        %1757 = vmatprep.subr.mxu0 0.0
        %1758 = vmatpush1.msra.mxu0 0.0
        %1759 = vmatprep.subr.mxu0 0.0
        %1760 = vmatpush1.msra.mxu0 0.0
        %1761 = vmatprep.subr.mxu0 0.0
        %1762 = vmatpush1.msra.mxu0 0.0
        %1763 = vmatprep.subr.mxu0 0.0
        %1764 = vmatpush1.msra.mxu0 0.0
        %1765 = vmatprep.subr.mxu0 0.0
        %1766 = vmatpush1.msra.mxu0 0.0
        %1767 = vmatprep.subr.mxu0 0.0
        %1768 = vmatpush1.msra.mxu0 0.0
        %1769 = vmatprep.subr.mxu0 0.0
        %1770 = vmatpush1.msra.mxu0 0.0
        %1771 = vmatprep.subr.mxu0 0.0
        %1772 = vmatpush1.msra.mxu0 0.0
        %1773 = vmatprep.subr.mxu0 0.0
        %1774 = vmatpush1.msra.mxu0 0.0
        %1775 = vmatprep.subr.mxu0 0.0
        %1776 = vmatpush1.msra.mxu0 0.0
        %1777 = vmatprep.subr.mxu0 0.0
        %1778 = vmatpush1.msra.mxu0 0.0
        %1779 = vmatprep.mubr.f32.mxu0 0.0
        %1780 = vmatmul.mubr.f32.gmra.mrb[0].mxu0 %v1710
        %v1781 = vpop.f32.mrb[0].mxu0
        %v1782 = vadd.f32 0.0, %v1781
        %v1783 = vpop.f32.mrb[0].mxu0
        %1784 = vmatprep.mubr.f32.mxu0 0.0
        %1785 = vmatmul.mubr.f32.gmra.mrb[0].mxu0 %v1713
        %v1786 = vpop.f32.mrb[0].mxu0
        %v1787 = vadd.f32 0.0, %v1786
        %v1788 = vpop.f32.mrb[0].mxu0
        %1789 = vdwg.mxu0
        %1790 = vrot.lane.b32.xlu0 %v1062, 64
        %v1791 = vpop.permute.xlu0 %1790
        %1792 = vrot.lane.b32.xlu0 %v1064, 64
        %v1793 = vpop.permute.xlu0 %1792
        %v1797 = vsel %vm1440, %v1527, 0
        %v1800 = vsel %vm1440, %v1528, 0
        %1802 = vmatprep.subr.mxu0 0.0
        %1803 = vmatpush1.msra.mxu0 %v1791
        %1804 = vmatprep.subr.mxu0 0.0
        %1805 = vmatpush1.msra.mxu0 %v1793
        %1806 = vmatprep.subr.mxu0 0.0
        %1807 = vmatpush1.msra.mxu0 0.0
        %1808 = vmatprep.subr.mxu0 0.0
        %1809 = vmatpush1.msra.mxu0 0.0
        %1810 = vmatprep.subr.mxu0 0.0
        %1811 = vmatpush1.msra.mxu0 0.0
        %1812 = vmatprep.subr.mxu0 0.0
        %1813 = vmatpush1.msra.mxu0 0.0
        %1814 = vmatprep.subr.mxu0 0.0
        %1815 = vmatpush1.msra.mxu0 0.0
        %1816 = vmatprep.subr.mxu0 0.0
        %1817 = vmatpush1.msra.mxu0 0.0
        %1818 = vmatprep.subr.mxu0 0.0
        %1819 = vmatpush1.msra.mxu0 0.0
        %1820 = vmatprep.subr.mxu0 0.0
        %1821 = vmatpush1.msra.mxu0 0.0
        %1822 = vmatprep.subr.mxu0 0.0
        %1823 = vmatpush1.msra.mxu0 0.0
        %1824 = vmatprep.subr.mxu0 0.0
        %1825 = vmatpush1.msra.mxu0 0.0
        %1826 = vmatprep.subr.mxu0 0.0
        %1827 = vmatpush1.msra.mxu0 0.0
        %1828 = vmatprep.subr.mxu0 0.0
        %1829 = vmatpush1.msra.mxu0 0.0
        %1830 = vmatprep.subr.mxu0 0.0
        %1831 = vmatpush1.msra.mxu0 0.0
        %1832 = vmatprep.subr.mxu0 0.0
        %1833 = vmatpush1.msra.mxu0 0.0
        %1834 = vmatprep.subr.mxu0 0.0
        %1835 = vmatpush1.msra.mxu0 0.0
        %1836 = vmatprep.subr.mxu0 0.0
        %1837 = vmatpush1.msra.mxu0 0.0
        %1838 = vmatprep.subr.mxu0 0.0
        %1839 = vmatpush1.msra.mxu0 0.0
        %1840 = vmatprep.subr.mxu0 0.0
        %1841 = vmatpush1.msra.mxu0 0.0
        %1842 = vmatprep.subr.mxu0 0.0
        %1843 = vmatpush1.msra.mxu0 0.0
        %1844 = vmatprep.subr.mxu0 0.0
        %1845 = vmatpush1.msra.mxu0 0.0
        %1846 = vmatprep.subr.mxu0 0.0
        %1847 = vmatpush1.msra.mxu0 0.0
        %1848 = vmatprep.subr.mxu0 0.0
        %1849 = vmatpush1.msra.mxu0 0.0
        %1850 = vmatprep.subr.mxu0 0.0
        %1851 = vmatpush1.msra.mxu0 0.0
        %1852 = vmatprep.subr.mxu0 0.0
        %1853 = vmatpush1.msra.mxu0 0.0
        %1854 = vmatprep.subr.mxu0 0.0
        %1855 = vmatpush1.msra.mxu0 0.0
        %1856 = vmatprep.subr.mxu0 0.0
        %1857 = vmatpush1.msra.mxu0 0.0
        %1858 = vmatprep.subr.mxu0 0.0
        %1859 = vmatpush1.msra.mxu0 0.0
        %1860 = vmatprep.subr.mxu0 0.0
        %1861 = vmatpush1.msra.mxu0 0.0
        %1862 = vmatprep.subr.mxu0 0.0
        %1863 = vmatpush1.msra.mxu0 0.0
        %1864 = vmatprep.subr.mxu0 0.0
        %1865 = vmatpush1.msra.mxu0 0.0
        %1866 = vmatprep.mubr.f32.mxu0 0.0
        %1867 = vmatmul.mubr.f32.gmra.mrb[0].mxu0 %v1797
        %v1868 = vpop.f32.mrb[0].mxu0
        %v1869 = vadd.f32 0.0, %v1868
        %v1870 = vpop.f32.mrb[0].mxu0
        %1871 = vmatprep.mubr.f32.mxu0 0.0
        %1872 = vmatmul.mubr.f32.gmra.mrb[0].mxu0 %v1800
        %v1873 = vpop.f32.mrb[0].mxu0
        %v1874 = vadd.f32 0.0, %v1873
        %v1875 = vpop.f32.mrb[0].mxu0
        %1876 = vdwg.mxu0
        %1879 = vrot.lane.b32.xlu0 %v1695, 8
        %v1880 = vpop.permute.xlu0 %1879
        %1881 = vrot.lane.b32.xlu0 %v1700, 8
        %v1882 = vpop.permute.xlu0 %1881
        %1887 = vrot.lane.b32.xlu0 %v1782, 16
        %v1888 = vpop.permute.xlu0 %1887
        %1889 = vrot.lane.b32.xlu0 %v1787, 16
        %v1890 = vpop.permute.xlu0 %1889
        %1895 = vrot.lane.b32.xlu0 %v1869, 24
        %v1896 = vpop.permute.xlu0 %1895
        %1897 = vrot.lane.b32.xlu0 %v1874, 24
        %v1898 = vpop.permute.xlu0 %1897
        %v1901 = vsel %vm1069, %v1608, %v1880
        %v1902 = vsel %vm1069, %v1613, %v1882
        %v1903 = vsel %vm1440, %v1901, %v1888
        %v1904 = vsel %vm1440, %v1902, %v1890
        %vm1905 = vcmask 195584
        %v1906 = vsel %vm1905, %v1903, %v1896
        %v1907 = vsel %vm1905, %v1904, %v1898
        %v1908 = vpack.c.bf16 %v1907, %v1906
        %v1909 = vld [vmem:[%s921] sm:$0xf]
        %v1910 = vld [vmem:[%s921 + $0x4] sm:$0xf]
        %v1911 = vld [vmem:[%s921 + $0x8] sm:$0xf]
        %v1912 = vld [vmem:[%s921 + $0xc] sm:$0xf]
        %v1913 = vld [vmem:[%s746] sm:$0x1]
        %v1915 = vlaneseq
        %v1916 = vshrl.u32 %v1915, 7
        %v1917 = vsub.s32 0, %v1916
        %v1918 = vrot.slane %v1913, %v1917
        %v1924 = vunpack.c.l.b16 %v1909
        %v1925 = vunpack.c.l.b16 %v1910
        %v1926 = vunpack.c.l.b16 %v1911
        %v1927 = vunpack.c.l.b16 %v1912
        %v1928 = vpack.c.b16 %v1925, %v1924
        %v1929 = vpack.c.b16 %v1927, %v1926
        %vm1932 = vcmask 261120
        %v1934 = vsel %vm1932, %v1908, 0
        %1936 = vmatprep.subr.bf16.mxu0 0
        %1937 = vmatpush1.bf16.msra.mxu0 %v1928
        %1938 = vmatprep.subr.bf16.mxu0 0
        %1939 = vmatpush1.bf16.msra.mxu0 %v1929
        %1940 = vmatprep.subr.bf16.mxu0 0
        %1941 = vmatpush1.bf16.msra.mxu0 0
        %1942 = vmatprep.subr.bf16.mxu0 0
        %1943 = vmatpush1.bf16.msra.mxu0 0
        %1944 = vmatprep.subr.bf16.mxu0 0
        %1945 = vmatpush1.bf16.msra.mxu0 0
        %1946 = vmatprep.subr.bf16.mxu0 0
        %1947 = vmatpush1.bf16.msra.mxu0 0
        %1948 = vmatprep.subr.bf16.mxu0 0
        %1949 = vmatpush1.bf16.msra.mxu0 0
        %1950 = vmatprep.subr.bf16.mxu0 0
        %1951 = vmatpush1.bf16.msra.mxu0 0
        %1952 = vmatprep.subr.bf16.mxu0 0
        %1953 = vmatpush1.bf16.msra.mxu0 0
        %1954 = vmatprep.subr.bf16.mxu0 0
        %1955 = vmatpush1.bf16.msra.mxu0 0
        %1956 = vmatprep.subr.bf16.mxu0 0
        %1957 = vmatpush1.bf16.msra.mxu0 0
        %1958 = vmatprep.subr.bf16.mxu0 0
        %1959 = vmatpush1.bf16.msra.mxu0 0
        %1960 = vmatprep.subr.bf16.mxu0 0
        %1961 = vmatpush1.bf16.msra.mxu0 0
        %1962 = vmatprep.subr.bf16.mxu0 0
        %1963 = vmatpush1.bf16.msra.mxu0 0
        %1964 = vmatprep.subr.bf16.mxu0 0
        %1965 = vmatpush1.bf16.msra.mxu0 0
        %1966 = vmatprep.subr.bf16.mxu0 0
        %1967 = vmatpush1.bf16.msra.mxu0 0
        %1968 = vmatprep.mubr.bf16.mxu0 0
        %1969 = vmatmul.mubr.bf16.gmra.mrb[0].mxu0 %v1934
        %v1970 = vpop.f32.mrb[0].mxu0
        %v1971 = vadd.f32 %v1918, %v1970
        %v1972 = vpop.f32.mrb[0].mxu0
        %v1973 = vpop.f32.mrb[0].mxu0
        %v1974 = vadd.f32 %v1918, %v1973
        %v1975 = vpop.f32.mrb[0].mxu0
        %1976 = vdwg.mxu0
        %v1977 = vadd.f32 %v936, %v1971
        %v1978 = vadd.f32 %v937, %v1974
        %v1979 = vld [vmem:[%s754] sm:$0x1]
        %v1980 = vld [vmem:[%s762] sm:$0x1]
        %1981 = vadd.xlane.f32.xlu0 %v1977
        %v1982 = vpop.xlane.xlu0 %1981
        %1983 = vadd.xlane.f32.xlu0 %v1978
        %v1984 = vpop.xlane.xlu0 %1983
        %v1985 = vmul.f32 %v1982, 0.03125
        %v1986 = vmul.f32 %v1984, 0.03125
        %vm1987 = vcmp.lt.s32.totalorder %v1418, 32
        %v1988 = vsub.f32 %v1977, %v1985
        %v1989 = vsub.f32 %v1978, %v1986
        %v1990 = vsel %vm1987, %v1988, 0.0
        %v1991 = vsel %vm1987, %v1989, 0.0
        %v1992 = vmul.f32 %v1990, %v1990
        %v1993 = vmul.f32 %v1991, %v1991
        %1994 = vadd.xlane.f32.xlu0 %v1992
        %v1995 = vpop.xlane.xlu0 %1994
        %1996 = vadd.xlane.f32.xlu0 %v1993
        %v1997 = vpop.xlane.xlu0 %1996
        %v1998 = vmul.f32 %v1995, 0.03125
        %v1999 = vmul.f32 %v1997, 0.03125
        %v2000 = vadd.f32 %v1998, 1e-05
        %v2001 = vadd.f32 %v1999, 1e-05
        %v2002 = vrsqrt.pop %v2000
        %v2003 = vrsqrt.pop %v2001
        %v2004 = vmul.f32 %v1990, %v2002
        %v2005 = vmul.f32 %v1991, %v2003
        %v2007 = vlaneseq
        %v2008 = vshrl.u32 %v2007, 7
        %v2009 = vsub.s32 0, %v2008
        %v2010 = vrot.slane %v1979, %v2009
        %v2012 = vmul.f32 %v2004, %v2010
        %v2013 = vmul.f32 %v2005, %v2010
        %v2015 = vlaneseq
        %v2016 = vshrl.u32 %v2015, 7
        %v2017 = vsub.s32 0, %v2016
        %v2018 = vrot.slane %v1980, %v2017
        %v2020 = vadd.f32 %v2012, %v2018
        %v2021 = vadd.f32 %v2013, %v2018
        %v2022 = vpack.c.bf16 %v2021, %v2020
        %v2023 = vld [vmem:[%s926] sm:$0xf]
        %v2024 = vld [vmem:[%s926 + $0x4] sm:$0xf]
        %v2025 = vld [vmem:[%s926 + $0x8] sm:$0xf]
        %v2026 = vld [vmem:[%s926 + $0xc] sm:$0xf]
        %v2027 = vld [vmem:[%s926 + $0x10] sm:$0xf]
        %v2028 = vld [vmem:[%s926 + $0x14] sm:$0xf]
        %v2029 = vld [vmem:[%s926 + $0x18] sm:$0xf]
        %v2030 = vld [vmem:[%s926 + $0x1c] sm:$0xf]
        %v2031 = vld [vmem:[%s926 + $0x20] sm:$0xf]
        %v2032 = vld [vmem:[%s926 + $0x24] sm:$0xf]
        %v2033 = vld [vmem:[%s926 + $0x28] sm:$0xf]
        %v2034 = vld [vmem:[%s926 + $0x2c] sm:$0xf]
        %v2035 = vld [vmem:[%s926 + $0x30] sm:$0xf]
        %v2036 = vld [vmem:[%s926 + $0x34] sm:$0xf]
        %v2037 = vld [vmem:[%s926 + $0x38] sm:$0xf]
        %v2038 = vld [vmem:[%s926 + $0x3c] sm:$0xf]
        %v2039 = vld [vmem:[%s770] sm:$0x1]
        %v2041 = vlaneseq
        %v2042 = vshrl.u32 %v2041, 7
        %v2043 = vsub.s32 0, %v2042
        %v2044 = vrot.slane %v2039, %v2043
        %v2062 = vunpack.c.l.b16 %v2023
        %v2063 = vunpack.c.l.b16 %v2024
        %v2064 = vunpack.c.l.b16 %v2025
        %v2065 = vunpack.c.l.b16 %v2026
        %v2066 = vunpack.c.l.b16 %v2027
        %v2067 = vunpack.c.l.b16 %v2028
        %v2068 = vunpack.c.l.b16 %v2029
        %v2069 = vunpack.c.l.b16 %v2030
        %v2070 = vunpack.c.l.b16 %v2031
        %v2071 = vunpack.c.l.b16 %v2032
        %v2072 = vunpack.c.l.b16 %v2033
        %v2073 = vunpack.c.l.b16 %v2034
        %v2074 = vunpack.c.l.b16 %v2035
        %v2075 = vunpack.c.l.b16 %v2036
        %v2076 = vunpack.c.l.b16 %v2037
        %v2077 = vunpack.c.l.b16 %v2038
        %v2078 = vpack.c.b16 %v2063, %v2062
        %v2079 = vpack.c.b16 %v2065, %v2064
        %v2080 = vpack.c.b16 %v2067, %v2066
        %v2081 = vpack.c.b16 %v2069, %v2068
        %v2082 = vpack.c.b16 %v2071, %v2070
        %v2083 = vpack.c.b16 %v2073, %v2072
        %v2084 = vpack.c.b16 %v2075, %v2074
        %v2085 = vpack.c.b16 %v2077, %v2076
        %2094 = vmatprep.subr.bf16.mxu0 0
        %2095 = vmatpush1.bf16.msra.mxu0 %v2078
        %2096 = vmatprep.subr.bf16.mxu0 0
        %2097 = vmatpush1.bf16.msra.mxu0 %v2079
        %2098 = vmatprep.subr.bf16.mxu0 0
        %2099 = vmatpush1.bf16.msra.mxu0 %v2080
        %2100 = vmatprep.subr.bf16.mxu0 0
        %2101 = vmatpush1.bf16.msra.mxu0 %v2081
        %2102 = vmatprep.subr.bf16.mxu0 0
        %2103 = vmatpush1.bf16.msra.mxu0 %v2082
        %2104 = vmatprep.subr.bf16.mxu0 0
        %2105 = vmatpush1.bf16.msra.mxu0 %v2083
        %2106 = vmatprep.subr.bf16.mxu0 0
        %2107 = vmatpush1.bf16.msra.mxu0 %v2084
        %2108 = vmatprep.subr.bf16.mxu0 0
        %2109 = vmatpush1.bf16.msra.mxu0 %v2085
        %2110 = vmatprep.subr.bf16.mxu0 0
        %2111 = vmatpush1.bf16.msra.mxu0 0
        %2112 = vmatprep.subr.bf16.mxu0 0
        %2113 = vmatpush1.bf16.msra.mxu0 0
        %2114 = vmatprep.subr.bf16.mxu0 0
        %2115 = vmatpush1.bf16.msra.mxu0 0
        %2116 = vmatprep.subr.bf16.mxu0 0
        %2117 = vmatpush1.bf16.msra.mxu0 0
        %2118 = vmatprep.subr.bf16.mxu0 0
        %2119 = vmatpush1.bf16.msra.mxu0 0
        %2120 = vmatprep.subr.bf16.mxu0 0
        %2121 = vmatpush1.bf16.msra.mxu0 0
        %2122 = vmatprep.subr.bf16.mxu0 0
        %2123 = vmatpush1.bf16.msra.mxu0 0
        %2124 = vmatprep.subr.bf16.mxu0 0
        %2125 = vmatpush1.bf16.msra.mxu0 0
        %2126 = vmatprep.mubr.bf16.mxu0 0
        %2127 = vmatmul.mubr.bf16.gmra.mrb[0].mxu0 %v2022
        %v2128 = vpop.f32.mrb[0].mxu0
        %v2129 = vadd.f32 %v2044, %v2128
        %v2130 = vpop.f32.mrb[0].mxu0
        %v2131 = vpop.f32.mrb[0].mxu0
        %v2132 = vadd.f32 %v2044, %v2131
        %v2133 = vpop.f32.mrb[0].mxu0
        %2134 = vdwg.mxu0
        %v2135 = vmul.f32 %v2129, 0.5
        %v2136 = vmul.f32 %v2132, 0.5
        %v2137 = vmul.f32 %v2129, 0.70710677
        %v2138 = vmul.f32 %v2132, 0.70710677
        %v2139 = vand.u32 2147483647, %v2137
        %v2140 = vand.u32 2147483647, %v2138
        %v2141 = vmul.f32 %v2139, 0.3275911
        %v2142 = vmul.f32 %v2140, 0.3275911
        %v2143 = vadd.f32 %v2141, 1.0
        %v2144 = vadd.f32 %v2142, 1.0
        %v2145 = vrcp.pop %v2143
        %v2146 = vrcp.pop %v2144
        %v2147 = vmul.f32 %v2145, 1.0614054
        %v2148 = vmul.f32 %v2146, 1.0614054
        %v2149 = vadd.f32 %v2147, -1.4531521
        %v2150 = vadd.f32 %v2148, -1.4531521
        %v2151 = vmul.f32 %v2145, %v2149
        %v2152 = vmul.f32 %v2146, %v2150
        %v2153 = vadd.f32 %v2151, 1.4214138
        %v2154 = vadd.f32 %v2152, 1.4214138
        %v2155 = vmul.f32 %v2145, %v2153
        %v2156 = vmul.f32 %v2146, %v2154
        %v2157 = vadd.f32 %v2155, -0.28449672
        %v2158 = vadd.f32 %v2156, -0.28449672
        %v2159 = vmul.f32 %v2145, %v2157
        %v2160 = vmul.f32 %v2146, %v2158
        %v2161 = vadd.f32 %v2159, 0.2548296
        %v2162 = vadd.f32 %v2160, 0.2548296
        %v2163 = vmul.f32 %v2145, %v2161
        %v2164 = vmul.f32 %v2146, %v2162
        %v2165 = vsub.f32 0.0, %v2139
        %v2166 = vsub.f32 0.0, %v2140
        %v2167 = vmul.f32 %v2165, %v2139
        %v2168 = vmul.f32 %v2166, %v2140
        %v2169 = vmul.f32 %v2167, 1.442695
        %v2170 = vpow.pop %v2169
        %v2171 = vmul.f32 %v2168, 1.442695
        %v2172 = vpow.pop %v2171
        %v2173 = vmul.f32 %v2163, %v2170
        %v2174 = vmul.f32 %v2164, %v2172
        %v2175 = vsub.f32 1.0, %v2173
        %v2176 = vsub.f32 1.0, %v2174
        %vm2177 = vcmp.ge.f32.partialorder %v2137, 0.0
        %vm2178 = vcmp.ge.f32.partialorder %v2138, 0.0
        %v2179 = vsub.f32 0.0, %v2175
        %v2180 = vsub.f32 0.0, %v2176
        %v2181 = vsel %vm2177, %v2175, %v2179
        %v2182 = vsel %vm2178, %v2176, %v2180
        %v2183 = vadd.f32 %v2181, 1.0
        %v2184 = vadd.f32 %v2182, 1.0
        %v2185 = vmul.f32 %v2135, %v2183
        %v2186 = vmul.f32 %v2136, %v2184
        %v2187 = vpack.c.bf16 %v2186, %v2185
        %v2188 = vld [vmem:[%s779] sm:$0xf]
        %v2189 = vld [vmem:[%s779 + $0x4] sm:$0xf]
        %v2190 = vld [vmem:[%s779 + $0x8] sm:$0xf]
        %v2191 = vld [vmem:[%s779 + $0xc] sm:$0xf]
        %v2192 = vld [vmem:[%s779 + $0x10] sm:$0xf]
        %v2193 = vld [vmem:[%s779 + $0x14] sm:$0xf]
        %v2194 = vld [vmem:[%s779 + $0x18] sm:$0xf]
        %v2195 = vld [vmem:[%s779 + $0x1c] sm:$0xf]
        %v2196 = vld [vmem:[%s779 + $0x20] sm:$0xf]
        %v2197 = vld [vmem:[%s779 + $0x24] sm:$0xf]
        %v2198 = vld [vmem:[%s779 + $0x28] sm:$0xf]
        %v2199 = vld [vmem:[%s779 + $0x2c] sm:$0xf]
        %v2200 = vld [vmem:[%s779 + $0x30] sm:$0xf]
        %v2201 = vld [vmem:[%s779 + $0x34] sm:$0xf]
        %v2202 = vld [vmem:[%s779 + $0x38] sm:$0xf]
        %v2203 = vld [vmem:[%s779 + $0x3c] sm:$0xf]
        %v2204 = vld [vmem:[%s787] sm:$0x1]
        %v2206 = vlaneseq
        %v2207 = vshrl.u32 %v2206, 7
        %v2208 = vsub.s32 0, %v2207
        %v2209 = vrot.slane %v2204, %v2208
        %v2227 = vunpack.c.l.b16 %v2188
        %v2228 = vunpack.c.l.b16 %v2189
        %v2229 = vunpack.c.l.b16 %v2190
        %v2230 = vunpack.c.l.b16 %v2191
        %v2231 = vunpack.c.l.b16 %v2192
        %v2232 = vunpack.c.l.b16 %v2193
        %v2233 = vunpack.c.l.b16 %v2194
        %v2234 = vunpack.c.l.b16 %v2195
        %v2235 = vunpack.c.l.b16 %v2196
        %v2236 = vunpack.c.l.b16 %v2197
        %v2237 = vunpack.c.l.b16 %v2198
        %v2238 = vunpack.c.l.b16 %v2199
        %v2239 = vunpack.c.l.b16 %v2200
        %v2240 = vunpack.c.l.b16 %v2201
        %v2241 = vunpack.c.l.b16 %v2202
        %v2242 = vunpack.c.l.b16 %v2203
        %v2243 = vpack.c.b16 %v2228, %v2227
        %v2244 = vpack.c.b16 %v2230, %v2229
        %v2245 = vpack.c.b16 %v2232, %v2231
        %v2246 = vpack.c.b16 %v2234, %v2233
        %v2247 = vpack.c.b16 %v2236, %v2235
        %v2248 = vpack.c.b16 %v2238, %v2237
        %v2249 = vpack.c.b16 %v2240, %v2239
        %v2250 = vpack.c.b16 %v2242, %v2241
        %2259 = vmatprep.subr.bf16.mxu0 0
        %2260 = vmatpush1.bf16.msra.mxu0 %v2243
        %2261 = vmatprep.subr.bf16.mxu0 0
        %2262 = vmatpush1.bf16.msra.mxu0 %v2244
        %2263 = vmatprep.subr.bf16.mxu0 0
        %2264 = vmatpush1.bf16.msra.mxu0 %v2245
        %2265 = vmatprep.subr.bf16.mxu0 0
        %2266 = vmatpush1.bf16.msra.mxu0 %v2246
        %2267 = vmatprep.subr.bf16.mxu0 0
        %2268 = vmatpush1.bf16.msra.mxu0 %v2247
        %2269 = vmatprep.subr.bf16.mxu0 0
        %2270 = vmatpush1.bf16.msra.mxu0 %v2248
        %2271 = vmatprep.subr.bf16.mxu0 0
        %2272 = vmatpush1.bf16.msra.mxu0 %v2249
        %2273 = vmatprep.subr.bf16.mxu0 0
        %2274 = vmatpush1.bf16.msra.mxu0 %v2250
        %2275 = vmatprep.subr.bf16.mxu0 0
        %2276 = vmatpush1.bf16.msra.mxu0 0
        %2277 = vmatprep.subr.bf16.mxu0 0
        %2278 = vmatpush1.bf16.msra.mxu0 0
        %2279 = vmatprep.subr.bf16.mxu0 0
        %2280 = vmatpush1.bf16.msra.mxu0 0
        %2281 = vmatprep.subr.bf16.mxu0 0
        %2282 = vmatpush1.bf16.msra.mxu0 0
        %2283 = vmatprep.subr.bf16.mxu0 0
        %2284 = vmatpush1.bf16.msra.mxu0 0
        %2285 = vmatprep.subr.bf16.mxu0 0
        %2286 = vmatpush1.bf16.msra.mxu0 0
        %2287 = vmatprep.subr.bf16.mxu0 0
        %2288 = vmatpush1.bf16.msra.mxu0 0
        %2289 = vmatprep.subr.bf16.mxu0 0
        %2290 = vmatpush1.bf16.msra.mxu0 0
        %2291 = vmatprep.mubr.bf16.mxu0 0
        %2292 = vmatmul.mubr.bf16.gmra.mrb[0].mxu0 %v2187
        %v2293 = vpop.f32.mrb[0].mxu0
        %v2294 = vadd.f32 %v2209, %v2293
        %v2295 = vpop.f32.mrb[0].mxu0
        %v2296 = vpop.f32.mrb[0].mxu0
        %v2297 = vadd.f32 %v2209, %v2296
        %v2298 = vpop.f32.mrb[0].mxu0
        %2299 = vdwg.mxu0
        %v2300 = vadd.f32 %v2020, %v2294
        %v2301 = vadd.f32 %v2021, %v2297
        %v2302 = vld [vmem:[%s795] sm:$0x1]
        %v2303 = vld [vmem:[%s803] sm:$0x1]
        %2304 = vadd.xlane.f32.xlu0 %v2300
        %v2305 = vpop.xlane.xlu0 %2304
        %2306 = vadd.xlane.f32.xlu0 %v2301
        %v2307 = vpop.xlane.xlu0 %2306
        %v2308 = vmul.f32 %v2305, 0.03125
        %v2309 = vmul.f32 %v2307, 0.03125
        %v2310 = vsub.f32 %v2300, %v2308
        %v2311 = vsub.f32 %v2301, %v2309
        %v2312 = vsel %vm1987, %v2310, 0.0
        %v2313 = vsel %vm1987, %v2311, 0.0
        %v2314 = vmul.f32 %v2312, %v2312
        %v2315 = vmul.f32 %v2313, %v2313
        %2316 = vadd.xlane.f32.xlu0 %v2314
        %v2317 = vpop.xlane.xlu0 %2316
        %2318 = vadd.xlane.f32.xlu0 %v2315
        %v2319 = vpop.xlane.xlu0 %2318
        %v2320 = vmul.f32 %v2317, 0.03125
        %v2321 = vmul.f32 %v2319, 0.03125
        %v2322 = vadd.f32 %v2320, 1e-05
        %v2323 = vadd.f32 %v2321, 1e-05
        %v2324 = vrsqrt.pop %v2322
        %v2325 = vrsqrt.pop %v2323
        %v2326 = vmul.f32 %v2312, %v2324
        %v2327 = vmul.f32 %v2313, %v2325
        %v2329 = vlaneseq
        %v2330 = vshrl.u32 %v2329, 7
        %v2331 = vsub.s32 0, %v2330
        %v2332 = vrot.slane %v2302, %v2331
        %v2334 = vmul.f32 %v2326, %v2332
        %v2335 = vmul.f32 %v2327, %v2332
        %v2337 = vlaneseq
        %v2338 = vshrl.u32 %v2337, 7
        %v2339 = vsub.s32 0, %v2338
        %v2340 = vrot.slane %v2303, %v2339
        %v2342 = vadd.f32 %v2334, %v2340
        %v2343 = vadd.f32 %v2335, %v2340
        %2344 = vst [vmem:[#allocation2] sm:$0xff] %v2342
        %2345 = vst [vmem:[#allocation2 + $0x8] sm:$0xff] %v2343
        %p2346 = scmp.eq.s32.totalorder %s46, 1
        // Predicated region
        $region145: #{transformer_forward.1} parent=87 // pred_check
          %p2347 = pneg %p2346
        $region146: #{transformer_forward.1} parent=87 // pred_check_branch
          %2349 = sbr.rel (%p2347) target = $region148
        $region147: #{transformer_forward.1} parent=87 // pred_region
          %v2351 = vrot.slane %v2342, 7
          %v2354 = vrot.slane %v2343, 6
          %vm2356 = vcmask 1040384
          %v2357 = vsel %vm2356, %v2351, %v2354
          %v2358 = vld [vmem:[#allocation18] sm:$0x1]
          %v2359 = vld [vmem:[#allocation20] sm:$0x1]
          %vm2360 = vcmask 1041408
          %v2361 = vsel %vm2360, %v2357, 0.0
          %2362 = vadd.xlane.f32.xlu0 %v2361
          %v2363 = vpop.xlane.xlu0 %2362
          %v2364 = vmul.f32 %v2363, 0.03125
          %v2365 = vsub.f32 %v2357, %v2364
          %v2366 = vsel %vm1987, %v2365, 0.0
          %v2367 = vmul.f32 %v2366, %v2366
          %v2368 = vsel %vm2360, %v2367, 0.0
          %2369 = vadd.xlane.f32.xlu0 %v2368
          %v2370 = vpop.xlane.xlu0 %2369
          %v2371 = vmul.f32 %v2370, 0.03125
          %v2372 = vadd.f32 %v2371, 1e-05
          %v2373 = vrsqrt.pop %v2372
          %v2374 = vmul.f32 %v2366, %v2373
          %v2376 = vlaneseq
          %v2377 = vshrl.u32 %v2376, 7
          %v2378 = vsub.s32 0, %v2377
          %v2379 = vrot.slane %v2358, %v2378
          %v2381 = vmul.f32 %v2374, %v2379
          %v2383 = vlaneseq
          %v2384 = vshrl.u32 %v2383, 7
          %v2385 = vsub.s32 0, %v2384
          %v2386 = vrot.slane %v2359, %v2385
          %v2388 = vadd.f32 %v2381, %v2386
          %v2389 = vpack.c.bf16 %v2388, %v2388
          %v2390 = vld [vmem:[#allocation21] sm:$0xf]
          %v2391 = vld [vmem:[#allocation21 + $0x4] sm:$0xf]
          %v2392 = vld [vmem:[#allocation21 + $0x8] sm:$0xf]
          %v2393 = vld [vmem:[#allocation21 + $0xc] sm:$0xf]
          %v2394 = vld [vmem:[#allocation21 + $0x10] sm:$0xf]
          %v2395 = vld [vmem:[#allocation21 + $0x14] sm:$0xf]
          %v2396 = vld [vmem:[#allocation21 + $0x18] sm:$0xf]
          %v2397 = vld [vmem:[#allocation21 + $0x1c] sm:$0xf]
          %v2398 = vld [vmem:[#allocation21 + $0x20] sm:$0xf]
          %v2399 = vld [vmem:[#allocation21 + $0x24] sm:$0xf]
          %v2400 = vld [vmem:[#allocation21 + $0x28] sm:$0xf]
          %v2401 = vld [vmem:[#allocation21 + $0x2c] sm:$0xf]
          %v2402 = vld [vmem:[#allocation21 + $0x30] sm:$0xf]
          %v2403 = vld [vmem:[#allocation21 + $0x34] sm:$0xf]
          %v2404 = vld [vmem:[#allocation21 + $0x38] sm:$0xf]
          %v2405 = vld [vmem:[#allocation21 + $0x3c] sm:$0xf]
          %v2406 = vld [vmem:[#allocation23] sm:$0x1]
          %v2408 = vlaneseq
          %v2409 = vshrl.u32 %v2408, 7
          %v2410 = vsub.s32 0, %v2409
          %v2411 = vrot.slane %v2406, %v2410
          %v2429 = vunpack.c.l.b16 %v2390
          %v2430 = vunpack.c.l.b16 %v2391
          %v2431 = vunpack.c.l.b16 %v2392
          %v2432 = vunpack.c.l.b16 %v2393
          %v2433 = vunpack.c.l.b16 %v2394
          %v2434 = vunpack.c.l.b16 %v2395
          %v2435 = vunpack.c.l.b16 %v2396
          %v2436 = vunpack.c.l.b16 %v2397
          %v2437 = vunpack.c.l.b16 %v2398
          %v2438 = vunpack.c.l.b16 %v2399
          %v2439 = vunpack.c.l.b16 %v2400
          %v2440 = vunpack.c.l.b16 %v2401
          %v2441 = vunpack.c.l.b16 %v2402
          %v2442 = vunpack.c.l.b16 %v2403
          %v2443 = vunpack.c.l.b16 %v2404
          %v2444 = vunpack.c.l.b16 %v2405
          %v2445 = vpack.c.b16 %v2430, %v2429
          %v2446 = vpack.c.b16 %v2432, %v2431
          %v2447 = vpack.c.b16 %v2434, %v2433
          %v2448 = vpack.c.b16 %v2436, %v2435
          %v2449 = vpack.c.b16 %v2438, %v2437
          %v2450 = vpack.c.b16 %v2440, %v2439
          %v2451 = vpack.c.b16 %v2442, %v2441
          %v2452 = vpack.c.b16 %v2444, %v2443
          %2461 = vmatprep.subr.bf16.mxu0 0
          %2462 = vmatpush1.bf16.msra.mxu0 %v2445
          %2463 = vmatprep.subr.bf16.mxu0 0
          %2464 = vmatpush1.bf16.msra.mxu0 %v2446
          %2465 = vmatprep.subr.bf16.mxu0 0
          %2466 = vmatpush1.bf16.msra.mxu0 %v2447
          %2467 = vmatprep.subr.bf16.mxu0 0
          %2468 = vmatpush1.bf16.msra.mxu0 %v2448
          %2469 = vmatprep.subr.bf16.mxu0 0
          %2470 = vmatpush1.bf16.msra.mxu0 %v2449
          %2471 = vmatprep.subr.bf16.mxu0 0
          %2472 = vmatpush1.bf16.msra.mxu0 %v2450
          %2473 = vmatprep.subr.bf16.mxu0 0
          %2474 = vmatpush1.bf16.msra.mxu0 %v2451
          %2475 = vmatprep.subr.bf16.mxu0 0
          %2476 = vmatpush1.bf16.msra.mxu0 %v2452
          %2477 = vmatprep.subr.bf16.mxu0 0
          %2478 = vmatpush1.bf16.msra.mxu0 0
          %2479 = vmatprep.subr.bf16.mxu0 0
          %2480 = vmatpush1.bf16.msra.mxu0 0
          %2481 = vmatprep.subr.bf16.mxu0 0
          %2482 = vmatpush1.bf16.msra.mxu0 0
          %2483 = vmatprep.subr.bf16.mxu0 0
          %2484 = vmatpush1.bf16.msra.mxu0 0
          %2485 = vmatprep.subr.bf16.mxu0 0
          %2486 = vmatpush1.bf16.msra.mxu0 0
          %2487 = vmatprep.subr.bf16.mxu0 0
          %2488 = vmatpush1.bf16.msra.mxu0 0
          %2489 = vmatprep.subr.bf16.mxu0 0
          %2490 = vmatpush1.bf16.msra.mxu0 0
          %2491 = vmatprep.subr.bf16.mxu0 0
          %2492 = vmatpush1.bf16.msra.mxu0 0
          %2493 = vmatprep.mubr.bf16.mxu0 0
          %2494 = vmatmul.mubr.bf16.gmra.mrb[0].mxu0 %v2389
          %v2495 = vpop.f32.mrb[0].mxu0
          %v2496 = vadd.f32 %v2411, %v2495
          %v2497 = vpop.f32.mrb[0].mxu0
          %v2498 = vpop.f32.mrb[0].mxu0
          %v2499 = vpop.f32.mrb[0].mxu0
          %2500 = vdwg.mxu0
          %2501 = vst [vmem:[#allocation24] sm:$0x3] %v2496
        $region148: #{transformer_forward.1} parent=87 // pred_fallthru
          _
        // Predicated region
        $region149: #{transformer_forward.1} parent=87 // pred_check
          %p2502 = pneg %p476
        $region150: #{transformer_forward.1} parent=87 // pred_check_branch
          %2504 = sbr.rel (%p2502) target = $region152
        $region151: #{transformer_forward.1} parent=87 // pred_region
          %s2506 = ssub.s32 32, 32
          %2507 = vsyncadd [#allocation5], %s2506
          %s2509 = sshll.u32 [#allocation24], 4
          %s2510 = int_to_ptr.vmem [resolvable:$true] %s2509
          %2512 = dma.vmem_to_hbm [thread:$0]  %s2510, 32, %s17, [#allocation5]
        $region152: #{transformer_forward.1} parent=87 // pred_fallthru
          _
        // Predicated region
        $region153: #{transformer_forward.1} parent=87 // pred_check
          %p2513 = pneg %p476
        $region154: #{transformer_forward.1} parent=87 // pred_check_branch
          %2515 = sbr.rel (%p2513) target = $region156
        $region155: #{transformer_forward.1} parent=87 // pred_region
          %2516 = dma.done [#allocation5], 32
        $region156: #{transformer_forward.1} parent=87 // pred_fallthru
          _
      $region88: #{transformer_forward.1} parent=5 // pred_fallthru
        _
      %p2517 = scmp.le.s32.totalorder 2, %s41
      // Predicated region
      $region157: #{transformer_forward.1} parent=5 // pred_check
        %p2518 = pneg %p2517
      $region158: #{transformer_forward.1} parent=5 // pred_check_branch
        %2520 = sbr.rel (%p2518) target = $region160
      $region159: #{transformer_forward.1} parent=5 // pred_region
        %s2521 = ssub.s32 %s41, 2
      $region160: #{transformer_forward.1} parent=5 // pred_fallthru
        _
    $region6: #{transformer_forward.1} parent=1 // loop_footer
      %s45 = sadd.s32 1, %s41
    $region7: #{transformer_forward.1} parent=1 // loop_footer_branch
      %40 = sbr.rel target = $region3
    $region8: #{transformer_forward.1} parent=1 // loop_exit
      _
    %2522 = vsyncpa [#allocation4], 1
    %s2523 = scalar_lea.sflag [#allocation4], 1
    %2524 = vsyncpa %s2523, 1
    %2525 = vsyncpa [#allocation7], 1
    %s2526 = scalar_lea.sflag [#allocation7], 1
    %2527 = vsyncpa %s2526, 1
    %2528 = vsyncpa [#allocation10], 1
    %s2529 = scalar_lea.sflag [#allocation10], 1
    %2530 = vsyncpa %s2529, 1
    %2531 = vsyncpa [#allocation13], 1
    %s2532 = scalar_lea.sflag [#allocation13], 1
    %2533 = vsyncpa %s2532, 1
    %2534 = vsyncpa [#allocation16], 1
    %s2535 = scalar_lea.sflag [#allocation16], 1
    %2536 = vsyncpa %s2535, 1
    %2537 = vsyncpa [#allocation19], 1
    %2538 = vsyncpa [#allocation22], 1
    %2539 = vsyncpa [#allocation5], 1
    %s2540 = scalar_lea.sflag [#allocation5], 1
    %2541 = vsyncpa %s2540, 1

</llo_original>
